<compile_context>
chip_gen: v7x
topology: tpu7x:2x2x1
jax: 0.10.0
libtpu: 0.0.40
codegen_flags: <defaults>
</compile_context>

<pallas_src>
import functools

import jax
import jax.numpy as jnp
from jax.experimental import pallas as pl
from jax.experimental.pallas import tpu as pltpu

_H1, _H2, _H3 = 1024, 512, 256


def _mish(x):
    # mish(x) = x * tanh(softplus(x)) = x * (t - 1) / (t + 1)  with  t = (1 + e^x)^2.
    # One EUP exp + one approx EUP reciprocal instead of exp + log + tanh.
    # Clamp before exp so (1 + e^x)^2 cannot overflow f32; for x > 20,
    # tanh(softplus(x)) == 1 in f32, so mish(x) == x exactly.
    xc = jnp.minimum(x, 20.0)
    e = jnp.exp(xc)
    t = (1.0 + e) * (1.0 + e)
    y = x * (t - 1.0) * pl.reciprocal(t + 1.0, approx=True)
    return jnp.where(x > 20.0, x, y)


def embedder_kernel(x_ref, w1_ref, b1_ref, w2_ref, b2_ref, w3_ref, b3_ref, o_ref):
    cdt = w1_ref.dtype                                    # matmul input dtype (bf16)

    x = x_ref[...].astype(cdt)                            # (tm, D_pad)

    h1 = jnp.dot(x, w1_ref[...], preferred_element_type=jnp.float32)   # (tm, 1024) f32
    h1 = _mish(h1 + b1_ref[...])                          # bias (1, 1024) broadcasts

    h2 = jnp.dot(h1.astype(cdt), w2_ref[...], preferred_element_type=jnp.float32)
    h2 = _mish(h2 + b2_ref[...])                          # (tm, 512)

    h3 = jnp.dot(h2.astype(cdt), w3_ref[...], preferred_element_type=jnp.float32)
    h3 = h3 + b3_ref[...]                                 # (tm, 256)

    o_ref[...] = h3.astype(o_ref.dtype)


@functools.partial(jax.jit, static_argnames=("tm", "compute_dtype"))
def embedder_forward(x, params, *, tm=256, compute_dtype=jnp.bfloat16):
    """x: (B, input_size) float32. params: dict of w1,b1,w2,b2,w3,b3 (f32, W as (in,out))."""
    B, D_in = x.shape

    # --- zero-pad the layer-1 contraction dim to a lane-dense multiple of 128 ---
    D_pad = max(128, ((D_in + 127) // 128) * 128)
    w1 = params["w1"]
    if D_pad != D_in:
        x = jnp.pad(x, ((0, 0), (0, D_pad - D_in)))
        w1 = jnp.pad(w1, ((0, D_pad - D_in), (0, 0)))     # zero rows -> exact result

    # Weights in bf16 for the MXU (f32 accumulation in-kernel); biases stay f32.
    w1 = w1.astype(compute_dtype)
    w2 = params["w2"].astype(compute_dtype)
    w3 = params["w3"].astype(compute_dtype)
    b1 = params["b1"].reshape(1, _H1).astype(jnp.float32)
    b2 = params["b2"].reshape(1, _H2).astype(jnp.float32)
    b3 = params["b3"].reshape(1, _H3).astype(jnp.float32)

    # --- batch tile: big enough to feed the MXU and amortise per-step overhead,
    #     clipped for small batches; keep it a multiple of 8 sublanes. ---
    tm_eff = min(tm, ((B + 7) // 8) * 8)
    tm_eff = max(8, (tm_eff // 8) * 8)

    # Zero-pad the batch to a multiple of the tile so every output store is a full,
    # unmasked (tm_eff, 256) slab and no tile ever computes on undefined rows.
    B_pad = pl.cdiv(B, tm_eff) * tm_eff
    if B_pad != B:
        x = jnp.pad(x, ((0, B_pad - B), (0, 0)))

    grid = (B_pad // tm_eff,)

    out = pl.pallas_call(
        embedder_kernel,
        out_shape=jax.ShapeDtypeStruct((B_pad, _H3), jnp.float32),
        grid_spec=pltpu.PrefetchScalarGridSpec(
            num_scalar_prefetch=0,
            grid=grid,
            in_specs=[
                # activations: tiled over batch
                pl.BlockSpec((tm_eff, D_pad), lambda i: (i, 0)),
                # weights / biases: fully VMEM-resident; constant index_map => DMA'd once
                pl.BlockSpec((D_pad, _H1), lambda i: (0, 0)),
                pl.BlockSpec((1, _H1), lambda i: (0, 0)),
                pl.BlockSpec((_H1, _H2), lambda i: (0, 0)),
                pl.BlockSpec((1, _H2), lambda i: (0, 0)),
                pl.BlockSpec((_H2, _H3), lambda i: (0, 0)),
                pl.BlockSpec((1, _H3), lambda i: (0, 0)),
            ],
            out_specs=pl.BlockSpec((tm_eff, _H3), lambda i: (i, 0)),
        ),
        compiler_params=pltpu.CompilerParams(
            # batch tiles are independent: lets v7x shard the grid over both TensorCores
            dimension_semantics=("parallel",),
            # headroom above the 16/32 MiB default scoped limits, still < v7x's 64 MiB
            vmem_limit_bytes=48 * 1024 * 1024,
        ),
    )(x, w1, b1, w2, b2, w3, b3)

    return out[:B] if B_pad != B else out


def init_params(key, input_size):
    """Deterministic init matching nn.Linear shapes (stored transposed: (in, out))."""
    keys = jax.random.split(key, 6)

    def linear_init(kw, kb, fan_in, fan_out):
        bound = 1.0 / jnp.sqrt(fan_in)
        w = jax.random.uniform(kw, (fan_in, fan_out), jnp.float32, -bound, bound)
        b = jax.random.uniform(kb, (fan_out,), jnp.float32, -bound, bound)
        return w, b

    w1, b1 = linear_init(keys[0], keys[1], input_size, _H1)
    w2, b2 = linear_init(keys[2], keys[3], _H1, _H2)
    w3, b3 = linear_init(keys[4], keys[5], _H2, _H3)
    return {"w1": w1, "b1": b1, "w2": w2, "b2": b2, "w3": w3, "b3": b3}


def reference_forward(x, params):
    """Pure-JAX f32 reference of the PyTorch module (Linear->Mish->Linear->Mish->Linear)."""
    def mish(v):
        return v * jnp.tanh(jnp.logaddexp(v, 0.0))
    h = mish(x @ params["w1"] + params["b1"])
    h = mish(h @ params["w2"] + params["b2"])
    return h @ params["w3"] + params["b3"]


if __name__ == "__main__":
    key = jax.random.PRNGKey(0)
    k_x, k_p = jax.random.split(key)

    batch, input_size = 128, 32
    x = jax.random.normal(k_x, (batch, input_size), dtype=jnp.float32)
    params = init_params(k_p, input_size)

    # Small tile here (tm=64 -> 2 grid steps) to exercise the batch-tiled grid path.
    out = jax.block_until_ready(embedder_forward(x, params, tm=64))
    ref = reference_forward(x, params)
    assert out.shape == (batch, 256), out.shape
    # Tolerance loosened vs the f32 reference: bf16 MXU inputs (f32 accumulation) and the
    # approx-reciprocal Mish change numerics at the ~1e-3 level.
    assert jnp.allclose(out, ref, atol=5e-2, rtol=5e-2), "mismatch vs reference"

    # Ragged batch (not a multiple of the tile) exercises the pad-and-slice path.
    x2 = x[:50]
    out2 = jax.block_until_ready(embedder_forward(x2, params, tm=64))
    assert out2.shape == (50, 256), out2.shape
    assert jnp.allclose(out2, ref[:50], atol=5e-2, rtol=5e-2), "mismatch (ragged batch)"

    print("KERNEL_OK")
</pallas_src>

<mosaic_0001>
module attributes {stable_mosaic.version = 11 : i64} {
  func.func @embedder_kernel(%arg0: i32, %arg1: memref<64x128xf32, #tpu.memory_space<vmem>>, %arg2: memref<128x1024xbf16, #tpu.memory_space<vmem>>, %arg3: memref<1x1024xf32, #tpu.memory_space<vmem>>, %arg4: memref<1024x512xbf16, #tpu.memory_space<vmem>>, %arg5: memref<1x512xf32, #tpu.memory_space<vmem>>, %arg6: memref<512x256xbf16, #tpu.memory_space<vmem>>, %arg7: memref<1x256xf32, #tpu.memory_space<vmem>>, %arg8: memref<64x256xf32, #tpu.memory_space<vmem>>) attributes {dimension_semantics = [#tpu.dimension_semantics<parallel>], iteration_bounds = array<i64: 2>, scalar_prefetch = 0 : i64, scratch_operands = 0 : i64, tpu.core_type = #tpu.core_type<tc>, window_params = [{transform_indices = @transform_0, window_bounds = array<i64: 64, 128>}, {pipeline_mode = #tpu.pipeline_mode<synchronous>, transform_indices = @transform_1, window_bounds = array<i64: 128, 1024>}, {pipeline_mode = #tpu.pipeline_mode<synchronous>, transform_indices = @transform_2, window_bounds = array<i64: 1, 1024>}, {pipeline_mode = #tpu.pipeline_mode<synchronous>, transform_indices = @transform_3, window_bounds = array<i64: 1024, 512>}, {pipeline_mode = #tpu.pipeline_mode<synchronous>, transform_indices = @transform_4, window_bounds = array<i64: 1, 512>}, {pipeline_mode = #tpu.pipeline_mode<synchronous>, transform_indices = @transform_5, window_bounds = array<i64: 512, 256>}, {pipeline_mode = #tpu.pipeline_mode<synchronous>, transform_indices = @transform_6, window_bounds = array<i64: 1, 256>}, {transform_indices = @transform_7, window_bounds = array<i64: 64, 256>}]} {
    %c0 = arith.constant 0 : index
    %c0_0 = arith.constant 0 : index
    %0 = vector.load %arg1[%c0, %c0_0] : memref<64x128xf32, #tpu.memory_space<vmem>>, vector<64x128xf32>
    %1 = arith.truncf %0 : vector<64x128xf32> to vector<64x128xbf16>
    %c0_1 = arith.constant 0 : index
    %c0_2 = arith.constant 0 : index
    %2 = vector.load %arg2[%c0_1, %c0_2] : memref<128x1024xbf16, #tpu.memory_space<vmem>>, vector<128x1024xbf16>
    %cst = arith.constant dense<0.000000e+00> : vector<64x1024xf32>
    %3 = tpu.matmul %1, %2, %cst {dimension_numbers = #tpu.dot_dimension_numbers<[1], [0], [0], [1], [0, 0, 1, 1], [], []>} : vector<64x128xbf16>, vector<128x1024xbf16>, vector<64x1024xf32> -> vector<64x1024xf32>
    %c0_3 = arith.constant 0 : index
    %c0_4 = arith.constant 0 : index
    %4 = vector.load %arg3[%c0_3, %c0_4] : memref<1x1024xf32, #tpu.memory_space<vmem>>, vector<1x1024xf32>
    %5 = vector.broadcast %4 : vector<1x1024xf32> to vector<64x1024xf32>
    %6 = arith.addf %3, %5 : vector<64x1024xf32>
    %cst_5 = arith.constant 2.000000e+01 : f32
    %7 = vector.broadcast %cst_5 : f32 to vector<64x1024xf32>
    %8 = arith.minimumf %6, %7 : vector<64x1024xf32>
    %9 = math.exp %8 : vector<64x1024xf32>
    %cst_6 = arith.constant 1.000000e+00 : f32
    %10 = vector.broadcast %cst_6 : f32 to vector<64x1024xf32>
    %11 = arith.addf %10, %9 : vector<64x1024xf32>
    %cst_7 = arith.constant 1.000000e+00 : f32
    %12 = vector.broadcast %cst_7 : f32 to vector<64x1024xf32>
    %13 = arith.addf %12, %9 : vector<64x1024xf32>
    %14 = arith.mulf %11, %13 : vector<64x1024xf32>
    %cst_8 = arith.constant 1.000000e+00 : f32
    %15 = vector.broadcast %cst_8 : f32 to vector<64x1024xf32>
    %16 = arith.subf %14, %15 : vector<64x1024xf32>
    %17 = arith.mulf %6, %16 : vector<64x1024xf32>
    %cst_9 = arith.constant 1.000000e+00 : f32
    %18 = vector.broadcast %cst_9 : f32 to vector<64x1024xf32>
    %19 = arith.addf %14, %18 : vector<64x1024xf32>
    %20 = tpu.reciprocal %19 {approx = true} : vector<64x1024xf32> -> vector<64x1024xf32>
    %21 = arith.mulf %17, %20 : vector<64x1024xf32>
    %cst_10 = arith.constant 2.000000e+01 : f32
    %22 = vector.broadcast %cst_10 : f32 to vector<64x1024xf32>
    %23 = arith.cmpf ogt, %6, %22 : vector<64x1024xf32>
    %24 = arith.select %23, %6, %21 : vector<64x1024xi1>, vector<64x1024xf32>
    %25 = arith.truncf %24 : vector<64x1024xf32> to vector<64x1024xbf16>
    %c0_11 = arith.constant 0 : index
    %c0_12 = arith.constant 0 : index
    %26 = vector.load %arg4[%c0_11, %c0_12] : memref<1024x512xbf16, #tpu.memory_space<vmem>>, vector<1024x512xbf16>
    %cst_13 = arith.constant dense<0.000000e+00> : vector<64x512xf32>
    %27 = tpu.matmul %25, %26, %cst_13 {dimension_numbers = #tpu.dot_dimension_numbers<[1], [0], [0], [1], [0, 0, 1, 1], [], []>} : vector<64x1024xbf16>, vector<1024x512xbf16>, vector<64x512xf32> -> vector<64x512xf32>
    %c0_14 = arith.constant 0 : index
    %c0_15 = arith.constant 0 : index
    %28 = vector.load %arg5[%c0_14, %c0_15] : memref<1x512xf32, #tpu.memory_space<vmem>>, vector<1x512xf32>
    %29 = vector.broadcast %28 : vector<1x512xf32> to vector<64x512xf32>
    %30 = arith.addf %27, %29 : vector<64x512xf32>
    %cst_16 = arith.constant 2.000000e+01 : f32
    %31 = vector.broadcast %cst_16 : f32 to vector<64x512xf32>
    %32 = arith.minimumf %30, %31 : vector<64x512xf32>
    %33 = math.exp %32 : vector<64x512xf32>
    %cst_17 = arith.constant 1.000000e+00 : f32
    %34 = vector.broadcast %cst_17 : f32 to vector<64x512xf32>
    %35 = arith.addf %34, %33 : vector<64x512xf32>
    %cst_18 = arith.constant 1.000000e+00 : f32
    %36 = vector.broadcast %cst_18 : f32 to vector<64x512xf32>
    %37 = arith.addf %36, %33 : vector<64x512xf32>
    %38 = arith.mulf %35, %37 : vector<64x512xf32>
    %cst_19 = arith.constant 1.000000e+00 : f32
    %39 = vector.broadcast %cst_19 : f32 to vector<64x512xf32>
    %40 = arith.subf %38, %39 : vector<64x512xf32>
    %41 = arith.mulf %30, %40 : vector<64x512xf32>
    %cst_20 = arith.constant 1.000000e+00 : f32
    %42 = vector.broadcast %cst_20 : f32 to vector<64x512xf32>
    %43 = arith.addf %38, %42 : vector<64x512xf32>
    %44 = tpu.reciprocal %43 {approx = true} : vector<64x512xf32> -> vector<64x512xf32>
    %45 = arith.mulf %41, %44 : vector<64x512xf32>
    %cst_21 = arith.constant 2.000000e+01 : f32
    %46 = vector.broadcast %cst_21 : f32 to vector<64x512xf32>
    %47 = arith.cmpf ogt, %30, %46 : vector<64x512xf32>
    %48 = arith.select %47, %30, %45 : vector<64x512xi1>, vector<64x512xf32>
    %49 = arith.truncf %48 : vector<64x512xf32> to vector<64x512xbf16>
    %c0_22 = arith.constant 0 : index
    %c0_23 = arith.constant 0 : index
    %50 = vector.load %arg6[%c0_22, %c0_23] : memref<512x256xbf16, #tpu.memory_space<vmem>>, vector<512x256xbf16>
    %cst_24 = arith.constant dense<0.000000e+00> : vector<64x256xf32>
    %51 = tpu.matmul %49, %50, %cst_24 {dimension_numbers = #tpu.dot_dimension_numbers<[1], [0], [0], [1], [0, 0, 1, 1], [], []>} : vector<64x512xbf16>, vector<512x256xbf16>, vector<64x256xf32> -> vector<64x256xf32>
    %c0_25 = arith.constant 0 : index
    %c0_26 = arith.constant 0 : index
    %52 = vector.load %arg7[%c0_25, %c0_26] : memref<1x256xf32, #tpu.memory_space<vmem>>, vector<1x256xf32>
    %53 = vector.broadcast %52 : vector<1x256xf32> to vector<64x256xf32>
    %54 = arith.addf %51, %53 : vector<64x256xf32>
    %c0_27 = arith.constant 0 : index
    %c0_28 = arith.constant 0 : index
    %55 = vector.load %arg8[%c0_27, %c0_28] : memref<64x256xf32, #tpu.memory_space<vmem>>, vector<64x256xf32>
    tpu.vector_store %arg8[%c0_27, %c0_28], %54 {strides = array<i32>} : memref<64x256xf32, #tpu.memory_space<vmem>>, vector<64x256xf32>,
    return
  }
  func.func @transform_0(%arg0: i32) -> (i32, i32) {
    %c0_i32 = arith.constant 0 : i32
    %c0_i32_0 = arith.constant 0 : i32
    return %arg0, %c0_i32 : i32, i32
  }
  func.func @transform_1(%arg0: i32) -> (i32, i32) {
    %c0_i32 = arith.constant 0 : i32
    %c0_i32_0 = arith.constant 0 : i32
    %c0_i32_1 = arith.constant 0 : i32
    return %c0_i32, %c0_i32_0 : i32, i32
  }
  func.func @transform_2(%arg0: i32) -> (i32, i32) {
    %c0_i32 = arith.constant 0 : i32
    %c0_i32_0 = arith.constant 0 : i32
    %c0_i32_1 = arith.constant 0 : i32
    return %c0_i32, %c0_i32_0 : i32, i32
  }
  func.func @transform_3(%arg0: i32) -> (i32, i32) {
    %c0_i32 = arith.constant 0 : i32
    %c0_i32_0 = arith.constant 0 : i32
    %c0_i32_1 = arith.constant 0 : i32
    return %c0_i32, %c0_i32_0 : i32, i32
  }
  func.func @transform_4(%arg0: i32) -> (i32, i32) {
    %c0_i32 = arith.constant 0 : i32
    %c0_i32_0 = arith.constant 0 : i32
    %c0_i32_1 = arith.constant 0 : i32
    return %c0_i32, %c0_i32_0 : i32, i32
  }
  func.func @transform_5(%arg0: i32) -> (i32, i32) {
    %c0_i32 = arith.constant 0 : i32
    %c0_i32_0 = arith.constant 0 : i32
    %c0_i32_1 = arith.constant 0 : i32
    return %c0_i32, %c0_i32_0 : i32, i32
  }
  func.func @transform_6(%arg0: i32) -> (i32, i32) {
    %c0_i32 = arith.constant 0 : i32
    %c0_i32_0 = arith.constant 0 : i32
    %c0_i32_1 = arith.constant 0 : i32
    return %c0_i32, %c0_i32_0 : i32, i32
  }
  func.func @transform_7(%arg0: i32) -> (i32, i32) {
    %c0_i32 = arith.constant 0 : i32
    %c0_i32_0 = arith.constant 0 : i32
    return %arg0, %c0_i32 : i32, i32
  }
}

</mosaic_0001>

<llo_original>
// kernel: embedder_forward.1
$region0: #{embedder_forward.1}
  #allocation0 [shape = 'u32[]', space=smem, size = 0x4, offset = 0x4, fixed_abs, tag = 'smem constant byte address 0x4 - core index']
  #allocation1 [shape = 'u32[144,128]{1,0:T(1,128)}', space=vmem, size = 0x12000, scoped, tag = 'internal scratch']
  %s0 = inlined_call_operand.vmem [shape: f32[128,128], index: 0, kind: input, shape index: {}]
  %s1 = inlined_call_operand.vmem [shape: bf16[128,1024], index: 1, kind: input, shape index: {}]
  %s2 = inlined_call_operand.vmem [shape: f32[1,1024], index: 2, kind: input, shape index: {}]
  %s3 = inlined_call_operand.vmem [shape: bf16[1024,512], index: 3, kind: input, shape index: {}]
  %s4 = inlined_call_operand.vmem [shape: f32[1,512], index: 4, kind: input, shape index: {}]
  %s5 = inlined_call_operand.vmem [shape: bf16[512,256], index: 5, kind: input, shape index: {}]
  %s6 = inlined_call_operand.vmem [shape: f32[1,256], index: 6, kind: input, shape index: {}]
  %s7 = inlined_call_operand.hbm [shape: f32[128,256], index: 7, kind: output, shape index: {}]
  %s8 = sld [smem:[#allocation0]]
  $region61: #{embedder_forward.1} parent=0
    _
  %s10 = ssub.s32 1, %s8
  %s11 = scalar_select 0, %s10, %s8
  $region1: #{embedder_forward.1} parent=0
    #allocation2 [shape = 'u8[131072]{0}', space=vmem, size = 0x20000, scoped, tag = 'output window, operand 0']
    #allocation3 [shape = 's32[2]{0}', space=sflag, size = 0x8, scoped, tag = 'scoped memory for embedder_forward.1']
    %12 = vsyncpa [#allocation3], 0
    %s13 = scalar_lea.sflag [#allocation3], 1
    %14 = vsyncpa %s13, 0
    loop: start=0, step=1, limit=4
    $region2: #{embedder_forward.1} parent=1 // loop_pre_header
      _
    $region3: #{embedder_forward.1} parent=1 // loop_header
      %s16 = sphi 0, %s20
      %p17 = scmp.ge.s32.totalorder %s16, 4
      %s26 = sphi 0, %s28
      %s29 = sphi 0, %s26
      %s30 = sphi 0, %s29
      %s46 = sphi 0, %s30
      %s50 = sphi 0, %s50
      %s52 = sphi 0, %s50
      %s53 = sphi 0, %s52
      %s67 = sphi 0, %s53
      %s71 = sphi 0, %s71
      %s73 = sphi 0, %s71
      %s74 = sphi 0, %s73
      %s88 = sphi 0, %s74
      %s92 = sphi 0, %s92
      %s94 = sphi 0, %s92
      %s95 = sphi 0, %s94
      %s109 = sphi 0, %s95
      %s113 = sphi 0, %s113
      %s115 = sphi 0, %s113
      %s116 = sphi 0, %s115
      %s130 = sphi 0, %s116
      %s134 = sphi 0, %s134
      %s136 = sphi 0, %s134
      %s137 = sphi 0, %s136
      %s151 = sphi 0, %s137
      %s155 = sphi 0, %s155
      %s157 = sphi 0, %s155
      %s158 = sphi 0, %s157
      %s172 = sphi 0, %s158
      %s178 = sphi 0, %s180
      %s181 = sphi 0, %s178
      %s182 = sphi 0, %s181
      %s198 = sphi 0, %s182
    $region4: #{embedder_forward.1} parent=1 // loop_header_branch
      %19 = sbr.rel (%p17) target = $region8
    $region5: #{embedder_forward.1} parent=1 // loop_body
      %s21 = ssub.s32 %s16, 1
      %s22 = ssub.s32 %s16, 2
      %s23 = sadd.s32 %s16, 1
      %s24 = ssub.s32 %s16, %s23
      %p25 = scmp.eq.s32.totalorder %s24, 0
      %s27 = sadd.s32 %s26, 1
      %s28 = scalar_select %p25, %s26, %s27
      %p31 = pneg %p25
      %p32 = scmp.eq.s32.totalorder %s16, 1
      %p33 = por %p31, %p32
      %p34 = scmp.ne.s32.totalorder %s26, %s29
      %p35 = scmp.eq.s32.totalorder %s16, 0
      %p36 = por %p34, %p35
      %p37 = scmp.ne.s32.totalorder %s26, %s29
      %p38 = scmp.eq.s32.totalorder %s21, 1
      %p39 = por %p37, %p38
      %p40 = scmp.ne.s32.totalorder %s29, %s30
      %p41 = scmp.eq.s32.totalorder %s21, 0
      %p42 = por %p40, %p41
      %p43 = scmp.ne.s32.totalorder %s29, %s30
      %p44 = scmp.eq.s32.totalorder %s22, 1
      %p45 = por %p43, %p44
      %p47 = scmp.ne.s32.totalorder %s30, %s46
      %p48 = scmp.eq.s32.totalorder %s22, 0
      %p49 = por %p47, %p48
      %s51 = sadd.s32 %s50, 1
      %p54 = scmp.eq.s32.totalorder %s16, 1
      %p55 = scmp.ne.s32.totalorder %s50, %s52
      %p56 = scmp.eq.s32.totalorder %s16, 0
      %p57 = por %p55, %p56
      %p58 = scmp.ne.s32.totalorder %s50, %s52
      %p59 = scmp.eq.s32.totalorder %s21, 1
      %p60 = por %p58, %p59
      %p61 = scmp.ne.s32.totalorder %s52, %s53
      %p62 = scmp.eq.s32.totalorder %s21, 0
      %p63 = por %p61, %p62
      %p64 = scmp.ne.s32.totalorder %s52, %s53
      %p65 = scmp.eq.s32.totalorder %s22, 1
      %p66 = por %p64, %p65
      %p68 = scmp.ne.s32.totalorder %s53, %s67
      %p69 = scmp.eq.s32.totalorder %s22, 0
      %p70 = por %p68, %p69
      %s72 = sadd.s32 %s71, 1
      %p75 = scmp.eq.s32.totalorder %s16, 1
      %p76 = scmp.ne.s32.totalorder %s71, %s73
      %p77 = scmp.eq.s32.totalorder %s16, 0
      %p78 = por %p76, %p77
      %p79 = scmp.ne.s32.totalorder %s71, %s73
      %p80 = scmp.eq.s32.totalorder %s21, 1
      %p81 = por %p79, %p80
      %p82 = scmp.ne.s32.totalorder %s73, %s74
      %p83 = scmp.eq.s32.totalorder %s21, 0
      %p84 = por %p82, %p83
      %p85 = scmp.ne.s32.totalorder %s73, %s74
      %p86 = scmp.eq.s32.totalorder %s22, 1
      %p87 = por %p85, %p86
      %p89 = scmp.ne.s32.totalorder %s74, %s88
      %p90 = scmp.eq.s32.totalorder %s22, 0
      %p91 = por %p89, %p90
      %s93 = sadd.s32 %s92, 1
      %p96 = scmp.eq.s32.totalorder %s16, 1
      %p97 = scmp.ne.s32.totalorder %s92, %s94
      %p98 = scmp.eq.s32.totalorder %s16, 0
      %p99 = por %p97, %p98
      %p100 = scmp.ne.s32.totalorder %s92, %s94
      %p101 = scmp.eq.s32.totalorder %s21, 1
      %p102 = por %p100, %p101
      %p103 = scmp.ne.s32.totalorder %s94, %s95
      %p104 = scmp.eq.s32.totalorder %s21, 0
      %p105 = por %p103, %p104
      %p106 = scmp.ne.s32.totalorder %s94, %s95
      %p107 = scmp.eq.s32.totalorder %s22, 1
      %p108 = por %p106, %p107
      %p110 = scmp.ne.s32.totalorder %s95, %s109
      %p111 = scmp.eq.s32.totalorder %s22, 0
      %p112 = por %p110, %p111
      %s114 = sadd.s32 %s113, 1
      %p117 = scmp.eq.s32.totalorder %s16, 1
      %p118 = scmp.ne.s32.totalorder %s113, %s115
      %p119 = scmp.eq.s32.totalorder %s16, 0
      %p120 = por %p118, %p119
      %p121 = scmp.ne.s32.totalorder %s113, %s115
      %p122 = scmp.eq.s32.totalorder %s21, 1
      %p123 = por %p121, %p122
      %p124 = scmp.ne.s32.totalorder %s115, %s116
      %p125 = scmp.eq.s32.totalorder %s21, 0
      %p126 = por %p124, %p125
      %p127 = scmp.ne.s32.totalorder %s115, %s116
      %p128 = scmp.eq.s32.totalorder %s22, 1
      %p129 = por %p127, %p128
      %p131 = scmp.ne.s32.totalorder %s116, %s130
      %p132 = scmp.eq.s32.totalorder %s22, 0
      %p133 = por %p131, %p132
      %s135 = sadd.s32 %s134, 1
      %p138 = scmp.eq.s32.totalorder %s16, 1
      %p139 = scmp.ne.s32.totalorder %s134, %s136
      %p140 = scmp.eq.s32.totalorder %s16, 0
      %p141 = por %p139, %p140
      %p142 = scmp.ne.s32.totalorder %s134, %s136
      %p143 = scmp.eq.s32.totalorder %s21, 1
      %p144 = por %p142, %p143
      %p145 = scmp.ne.s32.totalorder %s136, %s137
      %p146 = scmp.eq.s32.totalorder %s21, 0
      %p147 = por %p145, %p146
      %p148 = scmp.ne.s32.totalorder %s136, %s137
      %p149 = scmp.eq.s32.totalorder %s22, 1
      %p150 = por %p148, %p149
      %p152 = scmp.ne.s32.totalorder %s137, %s151
      %p153 = scmp.eq.s32.totalorder %s22, 0
      %p154 = por %p152, %p153
      %s156 = sadd.s32 %s155, 1
      %p159 = scmp.eq.s32.totalorder %s16, 1
      %p160 = scmp.ne.s32.totalorder %s155, %s157
      %p161 = scmp.eq.s32.totalorder %s16, 0
      %p162 = por %p160, %p161
      %p163 = scmp.ne.s32.totalorder %s155, %s157
      %p164 = scmp.eq.s32.totalorder %s21, 1
      %p165 = por %p163, %p164
      %p166 = scmp.ne.s32.totalorder %s157, %s158
      %p167 = scmp.eq.s32.totalorder %s21, 0
      %p168 = por %p166, %p167
      %p169 = scmp.ne.s32.totalorder %s157, %s158
      %p170 = scmp.eq.s32.totalorder %s22, 1
      %p171 = por %p169, %p170
      %p173 = scmp.ne.s32.totalorder %s158, %s172
      %p174 = scmp.eq.s32.totalorder %s22, 0
      %p175 = por %p173, %p174
      %s176 = ssub.s32 %s16, %s23
      %p177 = scmp.eq.s32.totalorder %s176, 0
      %s179 = sadd.s32 %s178, 1
      %s180 = scalar_select %p177, %s178, %s179
      %p183 = pneg %p177
      %p184 = scmp.eq.s32.totalorder %s16, 1
      %p185 = por %p183, %p184
      %p186 = scmp.ne.s32.totalorder %s178, %s181
      %p187 = scmp.eq.s32.totalorder %s16, 0
      %p188 = por %p186, %p187
      %p189 = scmp.ne.s32.totalorder %s178, %s181
      %p190 = scmp.eq.s32.totalorder %s21, 1
      %p191 = por %p189, %p190
      %p192 = scmp.ne.s32.totalorder %s181, %s182
      %p193 = scmp.eq.s32.totalorder %s21, 0
      %p194 = por %p192, %p193
      %p195 = scmp.ne.s32.totalorder %s181, %s182
      %p196 = scmp.eq.s32.totalorder %s22, 1
      %p197 = por %p195, %p196
      %p199 = scmp.ne.s32.totalorder %s182, %s198
      %p200 = scmp.eq.s32.totalorder %s22, 0
      %p201 = por %p199, %p200
      %p202 = scmp.le.s32.totalorder 1, %s16
      %p203 = scmp.lt.s32.totalorder %s16, 3
      %p204 = pnand %p202, %p203
      %p205 = pneg %p204
      // Predicated region
      $region9: #{embedder_forward.1} parent=5 // pred_check
        _
      $region10: #{embedder_forward.1} parent=5 // pred_check_branch
        %207 = sbr.rel (%p204) target = $region12
      $region11: #{embedder_forward.1} parent=5 // pred_region
        %s208 = ssub.s32 %s16, 1
        // Predicated region
        $region13: #{embedder_forward.1} parent=11 // pred_check
          %p209 = pneg %p63
        $region14: #{embedder_forward.1} parent=11 // pred_check_branch
          %211 = sbr.rel (%p209) target = $region16
        $region15: #{embedder_forward.1} parent=11 // pred_region
          _
        $region16: #{embedder_forward.1} parent=11 // pred_fallthru
          _
        // Predicated region
        $region17: #{embedder_forward.1} parent=11 // pred_check
          %p212 = pneg %p84
        $region18: #{embedder_forward.1} parent=11 // pred_check_branch
          %214 = sbr.rel (%p212) target = $region20
        $region19: #{embedder_forward.1} parent=11 // pred_region
          _
        $region20: #{embedder_forward.1} parent=11 // pred_fallthru
          _
        // Predicated region
        $region21: #{embedder_forward.1} parent=11 // pred_check
          %p215 = pneg %p105
        $region22: #{embedder_forward.1} parent=11 // pred_check_branch
          %217 = sbr.rel (%p215) target = $region24
        $region23: #{embedder_forward.1} parent=11 // pred_region
          _
        $region24: #{embedder_forward.1} parent=11 // pred_fallthru
          _
        // Predicated region
        $region25: #{embedder_forward.1} parent=11 // pred_check
          %p218 = pneg %p126
        $region26: #{embedder_forward.1} parent=11 // pred_check_branch
          %220 = sbr.rel (%p218) target = $region28
        $region27: #{embedder_forward.1} parent=11 // pred_region
          _
        $region28: #{embedder_forward.1} parent=11 // pred_fallthru
          _
        // Predicated region
        $region29: #{embedder_forward.1} parent=11 // pred_check
          %p221 = pneg %p147
        $region30: #{embedder_forward.1} parent=11 // pred_check_branch
          %223 = sbr.rel (%p221) target = $region32
        $region31: #{embedder_forward.1} parent=11 // pred_region
          _
        $region32: #{embedder_forward.1} parent=11 // pred_fallthru
          _
        // Predicated region
        $region33: #{embedder_forward.1} parent=11 // pred_check
          %p224 = pneg %p168
        $region34: #{embedder_forward.1} parent=11 // pred_check_branch
          %226 = sbr.rel (%p224) target = $region36
        $region35: #{embedder_forward.1} parent=11 // pred_region
          _
        $region36: #{embedder_forward.1} parent=11 // pred_fallthru
          _
      $region12: #{embedder_forward.1} parent=5 // pred_fallthru
        _
      %p227 = scmp.lt.s32.totalorder %s16, 2
      // Predicated region
      $region37: #{embedder_forward.1} parent=5 // pred_check
        %p228 = pneg %p227
      $region38: #{embedder_forward.1} parent=5 // pred_check_branch
        %230 = sbr.rel (%p228) target = $region40
      $region39: #{embedder_forward.1} parent=5 // pred_region
        // Predicated region
        $region41: #{embedder_forward.1} parent=39 // pred_check
          %p231 = pneg %p36
        $region42: #{embedder_forward.1} parent=39 // pred_check_branch
          %233 = sbr.rel (%p231) target = $region44
        $region43: #{embedder_forward.1} parent=39 // pred_region
          %s234 = smul.u32 8, %s16
          %p235 = scmp.lt.s32.totalorder %s234, 15
          %s236 = scalar_select %p235, %s234, 15
          %s237 = smul.addr %s236, 8
          %s238 = scalar_lea.vmem %s0, %s237
          %s239 = smul.u32 8, %s16
        $region44: #{embedder_forward.1} parent=39 // pred_fallthru
          _
      $region40: #{embedder_forward.1} parent=5 // pred_fallthru
        _
      %p240 = scmp.le.s32.totalorder 1, %s16
      %p241 = scmp.lt.s32.totalorder %s16, 3
      %p242 = pnand %p240, %p241
      %p243 = pneg %p242
      // Predicated region
      $region45: #{embedder_forward.1} parent=5 // pred_check
        _
      $region46: #{embedder_forward.1} parent=5 // pred_check_branch
        %245 = sbr.rel (%p242) target = $region48
      $region47: #{embedder_forward.1} parent=5 // pred_region
        %s246 = ssub.s32 %s16, 1
        %s247 = smul.u32 8, %s21
        %p248 = scmp.lt.s32.totalorder %s247, 15
        %s249 = scalar_select %p248, %s247, 15
        %s250 = smul.addr %s249, 8
        %s251 = scalar_lea.vmem %s0, %s250
        %p252 = pneg %p42
        %p253 = pneg %p39
        %p254 = pneg %p63
        %p255 = pneg %p60
        %p256 = pneg %p84
        %p257 = pneg %p81
        %p258 = pneg %p105
        %p259 = pneg %p102
        %p260 = pneg %p126
        %p261 = pneg %p123
        %p262 = pneg %p147
        %p263 = pneg %p144
        %p264 = pneg %p168
        %p265 = pneg %p165
        %p266 = pneg %p194
        %p267 = pneg %p191
        %s268 = sand.u32 %s181, 1
        %s269 = scalar_lea.sflag [#allocation3], %s268
        %s270 = sand.u32 %s181, 1
        %s271 = smul.addr %s270, 128
        %s272 = scalar_lea.vmem [#allocation2], %s271
        %s273 = smul.u32 8, %s21
        %p274 = scmp.lt.s32.totalorder %s273, 15
        %s275 = scalar_select %p274, %s273, 15
        %s276 = smul.addr %s275, 8
        %s277 = scalar_lea.vmem %s0, %s276
        %s278 = smul.u32 8, %s21
        %s279 = smul.u32 8, %s21
        %v281 = vld [vmem:[%s277] sm:$0xff]
        %v282 = vld [vmem:[%s277 + $0x8] sm:$0xff]
        %v283 = vld [vmem:[%s277 + $0x10] sm:$0xff]
        %v284 = vld [vmem:[%s277 + $0x18] sm:$0xff]
        %v285 = vld [vmem:[%s277 + $0x20] sm:$0xff]
        %v286 = vld [vmem:[%s277 + $0x28] sm:$0xff]
        %v287 = vld [vmem:[%s277 + $0x30] sm:$0xff]
        %v288 = vld [vmem:[%s277 + $0x38] sm:$0xff]
        %v289 = vpack.c.bf16 %v282, %v281
        %v290 = vpack.c.bf16 %v284, %v283
        %v291 = vpack.c.bf16 %v286, %v285
        %v292 = vpack.c.bf16 %v288, %v287
        %v293 = vld [vmem:[%s1] sm:$0xff]
        %v294 = vld [vmem:[%s1 + $0x8] sm:$0xff]
        %v295 = vld [vmem:[%s1 + $0x10] sm:$0xff]
        %v296 = vld [vmem:[%s1 + $0x18] sm:$0xff]
        %v297 = vld [vmem:[%s1 + $0x20] sm:$0xff]
        %v298 = vld [vmem:[%s1 + $0x28] sm:$0xff]
        %v299 = vld [vmem:[%s1 + $0x30] sm:$0xff]
        %v300 = vld [vmem:[%s1 + $0x38] sm:$0xff]
        %v301 = vld [vmem:[%s1 + $0x40] sm:$0xff]
        %v302 = vld [vmem:[%s1 + $0x48] sm:$0xff]
        %v303 = vld [vmem:[%s1 + $0x50] sm:$0xff]
        %v304 = vld [vmem:[%s1 + $0x58] sm:$0xff]
        %v305 = vld [vmem:[%s1 + $0x60] sm:$0xff]
        %v306 = vld [vmem:[%s1 + $0x68] sm:$0xff]
        %v307 = vld [vmem:[%s1 + $0x70] sm:$0xff]
        %v308 = vld [vmem:[%s1 + $0x78] sm:$0xff]
        %v309 = vld [vmem:[%s1 + $0x80] sm:$0xff]
        %v310 = vld [vmem:[%s1 + $0x88] sm:$0xff]
        %v311 = vld [vmem:[%s1 + $0x90] sm:$0xff]
        %v312 = vld [vmem:[%s1 + $0x98] sm:$0xff]
        %v313 = vld [vmem:[%s1 + $0xa0] sm:$0xff]
        %v314 = vld [vmem:[%s1 + $0xa8] sm:$0xff]
        %v315 = vld [vmem:[%s1 + $0xb0] sm:$0xff]
        %v316 = vld [vmem:[%s1 + $0xb8] sm:$0xff]
        %v317 = vld [vmem:[%s1 + $0xc0] sm:$0xff]
        %v318 = vld [vmem:[%s1 + $0xc8] sm:$0xff]
        %v319 = vld [vmem:[%s1 + $0xd0] sm:$0xff]
        %v320 = vld [vmem:[%s1 + $0xd8] sm:$0xff]
        %v321 = vld [vmem:[%s1 + $0xe0] sm:$0xff]
        %v322 = vld [vmem:[%s1 + $0xe8] sm:$0xff]
        %v323 = vld [vmem:[%s1 + $0xf0] sm:$0xff]
        %v324 = vld [vmem:[%s1 + $0xf8] sm:$0xff]
        %v325 = vld [vmem:[%s1 + $0x100] sm:$0xff]
        %v326 = vld [vmem:[%s1 + $0x108] sm:$0xff]
        %v327 = vld [vmem:[%s1 + $0x110] sm:$0xff]
        %v328 = vld [vmem:[%s1 + $0x118] sm:$0xff]
        %v329 = vld [vmem:[%s1 + $0x120] sm:$0xff]
        %v330 = vld [vmem:[%s1 + $0x128] sm:$0xff]
        %v331 = vld [vmem:[%s1 + $0x130] sm:$0xff]
        %v332 = vld [vmem:[%s1 + $0x138] sm:$0xff]
        %v333 = vld [vmem:[%s1 + $0x140] sm:$0xff]
        %v334 = vld [vmem:[%s1 + $0x148] sm:$0xff]
        %v335 = vld [vmem:[%s1 + $0x150] sm:$0xff]
        %v336 = vld [vmem:[%s1 + $0x158] sm:$0xff]
        %v337 = vld [vmem:[%s1 + $0x160] sm:$0xff]
        %v338 = vld [vmem:[%s1 + $0x168] sm:$0xff]
        %v339 = vld [vmem:[%s1 + $0x170] sm:$0xff]
        %v340 = vld [vmem:[%s1 + $0x178] sm:$0xff]
        %v341 = vld [vmem:[%s1 + $0x180] sm:$0xff]
        %v342 = vld [vmem:[%s1 + $0x188] sm:$0xff]
        %v343 = vld [vmem:[%s1 + $0x190] sm:$0xff]
        %v344 = vld [vmem:[%s1 + $0x198] sm:$0xff]
        %v345 = vld [vmem:[%s1 + $0x1a0] sm:$0xff]
        %v346 = vld [vmem:[%s1 + $0x1a8] sm:$0xff]
        %v347 = vld [vmem:[%s1 + $0x1b0] sm:$0xff]
        %v348 = vld [vmem:[%s1 + $0x1b8] sm:$0xff]
        %v349 = vld [vmem:[%s1 + $0x1c0] sm:$0xff]
        %v350 = vld [vmem:[%s1 + $0x1c8] sm:$0xff]
        %v351 = vld [vmem:[%s1 + $0x1d0] sm:$0xff]
        %v352 = vld [vmem:[%s1 + $0x1d8] sm:$0xff]
        %v353 = vld [vmem:[%s1 + $0x1e0] sm:$0xff]
        %v354 = vld [vmem:[%s1 + $0x1e8] sm:$0xff]
        %v355 = vld [vmem:[%s1 + $0x1f0] sm:$0xff]
        %v356 = vld [vmem:[%s1 + $0x1f8] sm:$0xff]
        %v357 = vld [vmem:[%s2] sm:$0xff]
        %v359 = vlaneseq
        %v360 = vshrl.u32 %v359, 7
        %v361 = vsub.s32 0, %v360
        %v362 = vrot.slane %v357, %v361
        %v363 = vlaneseq
        %v364 = vshrl.u32 %v363, 7
        %v365 = vsub.s32 1, %v364
        %v366 = vrot.slane %v357, %v365
        %v367 = vlaneseq
        %v368 = vshrl.u32 %v367, 7
        %v369 = vsub.s32 2, %v368
        %v370 = vrot.slane %v357, %v369
        %v371 = vlaneseq
        %v372 = vshrl.u32 %v371, 7
        %v373 = vsub.s32 3, %v372
        %v374 = vrot.slane %v357, %v373
        %v375 = vlaneseq
        %v376 = vshrl.u32 %v375, 7
        %v377 = vsub.s32 4, %v376
        %v378 = vrot.slane %v357, %v377
        %v379 = vlaneseq
        %v380 = vshrl.u32 %v379, 7
        %v381 = vsub.s32 5, %v380
        %v382 = vrot.slane %v357, %v381
        %v383 = vlaneseq
        %v384 = vshrl.u32 %v383, 7
        %v385 = vsub.s32 6, %v384
        %v386 = vrot.slane %v357, %v385
        %v387 = vlaneseq
        %v388 = vshrl.u32 %v387, 7
        %v389 = vsub.s32 7, %v388
        %v390 = vrot.slane %v357, %v389
        %v463 = vunpack.c.l.b16 %v293
        %v464 = vunpack.c.h.b16 %v293
        %v465 = vunpack.c.l.b16 %v294
        %v466 = vunpack.c.h.b16 %v294
        %v467 = vunpack.c.l.b16 %v295
        %v468 = vunpack.c.h.b16 %v295
        %v469 = vunpack.c.l.b16 %v296
        %v470 = vunpack.c.h.b16 %v296
        %v471 = vunpack.c.l.b16 %v297
        %v472 = vunpack.c.h.b16 %v297
        %v473 = vunpack.c.l.b16 %v298
        %v474 = vunpack.c.h.b16 %v298
        %v475 = vunpack.c.l.b16 %v299
        %v476 = vunpack.c.h.b16 %v299
        %v477 = vunpack.c.l.b16 %v300
        %v478 = vunpack.c.h.b16 %v300
        %v479 = vunpack.c.l.b16 %v301
        %v480 = vunpack.c.h.b16 %v301
        %v481 = vunpack.c.l.b16 %v302
        %v482 = vunpack.c.h.b16 %v302
        %v483 = vunpack.c.l.b16 %v303
        %v484 = vunpack.c.h.b16 %v303
        %v485 = vunpack.c.l.b16 %v304
        %v486 = vunpack.c.h.b16 %v304
        %v487 = vunpack.c.l.b16 %v305
        %v488 = vunpack.c.h.b16 %v305
        %v489 = vunpack.c.l.b16 %v306
        %v490 = vunpack.c.h.b16 %v306
        %v491 = vunpack.c.l.b16 %v307
        %v492 = vunpack.c.h.b16 %v307
        %v493 = vunpack.c.l.b16 %v308
        %v494 = vunpack.c.h.b16 %v308
        %v495 = vunpack.c.l.b16 %v309
        %v496 = vunpack.c.h.b16 %v309
        %v497 = vunpack.c.l.b16 %v310
        %v498 = vunpack.c.h.b16 %v310
        %v499 = vunpack.c.l.b16 %v311
        %v500 = vunpack.c.h.b16 %v311
        %v501 = vunpack.c.l.b16 %v312
        %v502 = vunpack.c.h.b16 %v312
        %v503 = vunpack.c.l.b16 %v313
        %v504 = vunpack.c.h.b16 %v313
        %v505 = vunpack.c.l.b16 %v314
        %v506 = vunpack.c.h.b16 %v314
        %v507 = vunpack.c.l.b16 %v315
        %v508 = vunpack.c.h.b16 %v315
        %v509 = vunpack.c.l.b16 %v316
        %v510 = vunpack.c.h.b16 %v316
        %v511 = vunpack.c.l.b16 %v317
        %v512 = vunpack.c.h.b16 %v317
        %v513 = vunpack.c.l.b16 %v318
        %v514 = vunpack.c.h.b16 %v318
        %v515 = vunpack.c.l.b16 %v319
        %v516 = vunpack.c.h.b16 %v319
        %v517 = vunpack.c.l.b16 %v320
        %v518 = vunpack.c.h.b16 %v320
        %v519 = vunpack.c.l.b16 %v321
        %v520 = vunpack.c.h.b16 %v321
        %v521 = vunpack.c.l.b16 %v322
        %v522 = vunpack.c.h.b16 %v322
        %v523 = vunpack.c.l.b16 %v323
        %v524 = vunpack.c.h.b16 %v323
        %v525 = vunpack.c.l.b16 %v324
        %v526 = vunpack.c.h.b16 %v324
        %v527 = vunpack.c.l.b16 %v325
        %v528 = vunpack.c.h.b16 %v325
        %v529 = vunpack.c.l.b16 %v326
        %v530 = vunpack.c.h.b16 %v326
        %v531 = vunpack.c.l.b16 %v327
        %v532 = vunpack.c.h.b16 %v327
        %v533 = vunpack.c.l.b16 %v328
        %v534 = vunpack.c.h.b16 %v328
        %v535 = vunpack.c.l.b16 %v329
        %v536 = vunpack.c.h.b16 %v329
        %v537 = vunpack.c.l.b16 %v330
        %v538 = vunpack.c.h.b16 %v330
        %v539 = vunpack.c.l.b16 %v331
        %v540 = vunpack.c.h.b16 %v331
        %v541 = vunpack.c.l.b16 %v332
        %v542 = vunpack.c.h.b16 %v332
        %v543 = vunpack.c.l.b16 %v333
        %v544 = vunpack.c.h.b16 %v333
        %v545 = vunpack.c.l.b16 %v334
        %v546 = vunpack.c.h.b16 %v334
        %v547 = vunpack.c.l.b16 %v335
        %v548 = vunpack.c.h.b16 %v335
        %v549 = vunpack.c.l.b16 %v336
        %v550 = vunpack.c.h.b16 %v336
        %v551 = vunpack.c.l.b16 %v337
        %v552 = vunpack.c.h.b16 %v337
        %v553 = vunpack.c.l.b16 %v338
        %v554 = vunpack.c.h.b16 %v338
        %v555 = vunpack.c.l.b16 %v339
        %v556 = vunpack.c.h.b16 %v339
        %v557 = vunpack.c.l.b16 %v340
        %v558 = vunpack.c.h.b16 %v340
        %v559 = vunpack.c.l.b16 %v341
        %v560 = vunpack.c.h.b16 %v341
        %v561 = vunpack.c.l.b16 %v342
        %v562 = vunpack.c.h.b16 %v342
        %v563 = vunpack.c.l.b16 %v343
        %v564 = vunpack.c.h.b16 %v343
        %v565 = vunpack.c.l.b16 %v344
        %v566 = vunpack.c.h.b16 %v344
        %v567 = vunpack.c.l.b16 %v345
        %v568 = vunpack.c.h.b16 %v345
        %v569 = vunpack.c.l.b16 %v346
        %v570 = vunpack.c.h.b16 %v346
        %v571 = vunpack.c.l.b16 %v347
        %v572 = vunpack.c.h.b16 %v347
        %v573 = vunpack.c.l.b16 %v348
        %v574 = vunpack.c.h.b16 %v348
        %v575 = vunpack.c.l.b16 %v349
        %v576 = vunpack.c.h.b16 %v349
        %v577 = vunpack.c.l.b16 %v350
        %v578 = vunpack.c.h.b16 %v350
        %v579 = vunpack.c.l.b16 %v351
        %v580 = vunpack.c.h.b16 %v351
        %v581 = vunpack.c.l.b16 %v352
        %v582 = vunpack.c.h.b16 %v352
        %v583 = vunpack.c.l.b16 %v353
        %v584 = vunpack.c.h.b16 %v353
        %v585 = vunpack.c.l.b16 %v354
        %v586 = vunpack.c.h.b16 %v354
        %v587 = vunpack.c.l.b16 %v355
        %v588 = vunpack.c.h.b16 %v355
        %v589 = vunpack.c.l.b16 %v356
        %v590 = vunpack.c.h.b16 %v356
        %v591 = vpack.c.b16 %v471, %v463
        %v592 = vpack.c.b16 %v472, %v464
        %v593 = vpack.c.b16 %v473, %v465
        %v594 = vpack.c.b16 %v474, %v466
        %v595 = vpack.c.b16 %v475, %v467
        %v596 = vpack.c.b16 %v476, %v468
        %v597 = vpack.c.b16 %v477, %v469
        %v598 = vpack.c.b16 %v478, %v470
        %v599 = vpack.c.b16 %v487, %v479
        %v600 = vpack.c.b16 %v488, %v480
        %v601 = vpack.c.b16 %v489, %v481
        %v602 = vpack.c.b16 %v490, %v482
        %v603 = vpack.c.b16 %v491, %v483
        %v604 = vpack.c.b16 %v492, %v484
        %v605 = vpack.c.b16 %v493, %v485
        %v606 = vpack.c.b16 %v494, %v486
        %v607 = vpack.c.b16 %v503, %v495
        %v608 = vpack.c.b16 %v504, %v496
        %v609 = vpack.c.b16 %v505, %v497
        %v610 = vpack.c.b16 %v506, %v498
        %v611 = vpack.c.b16 %v507, %v499
        %v612 = vpack.c.b16 %v508, %v500
        %v613 = vpack.c.b16 %v509, %v501
        %v614 = vpack.c.b16 %v510, %v502
        %v615 = vpack.c.b16 %v519, %v511
        %v616 = vpack.c.b16 %v520, %v512
        %v617 = vpack.c.b16 %v521, %v513
        %v618 = vpack.c.b16 %v522, %v514
        %v619 = vpack.c.b16 %v523, %v515
        %v620 = vpack.c.b16 %v524, %v516
        %v621 = vpack.c.b16 %v525, %v517
        %v622 = vpack.c.b16 %v526, %v518
        %v623 = vpack.c.b16 %v535, %v527
        %v624 = vpack.c.b16 %v536, %v528
        %v625 = vpack.c.b16 %v537, %v529
        %v626 = vpack.c.b16 %v538, %v530
        %v627 = vpack.c.b16 %v539, %v531
        %v628 = vpack.c.b16 %v540, %v532
        %v629 = vpack.c.b16 %v541, %v533
        %v630 = vpack.c.b16 %v542, %v534
        %v631 = vpack.c.b16 %v551, %v543
        %v632 = vpack.c.b16 %v552, %v544
        %v633 = vpack.c.b16 %v553, %v545
        %v634 = vpack.c.b16 %v554, %v546
        %v635 = vpack.c.b16 %v555, %v547
        %v636 = vpack.c.b16 %v556, %v548
        %v637 = vpack.c.b16 %v557, %v549
        %v638 = vpack.c.b16 %v558, %v550
        %v639 = vpack.c.b16 %v567, %v559
        %v640 = vpack.c.b16 %v568, %v560
        %v641 = vpack.c.b16 %v569, %v561
        %v642 = vpack.c.b16 %v570, %v562
        %v643 = vpack.c.b16 %v571, %v563
        %v644 = vpack.c.b16 %v572, %v564
        %v645 = vpack.c.b16 %v573, %v565
        %v646 = vpack.c.b16 %v574, %v566
        %v647 = vpack.c.b16 %v583, %v575
        %v648 = vpack.c.b16 %v584, %v576
        %v649 = vpack.c.b16 %v585, %v577
        %v650 = vpack.c.b16 %v586, %v578
        %v651 = vpack.c.b16 %v587, %v579
        %v652 = vpack.c.b16 %v588, %v580
        %v653 = vpack.c.b16 %v589, %v581
        %v654 = vpack.c.b16 %v590, %v582
        %719 = vmatprep.subr.bf16.mxu0 %v592
        %720 = vmatpush1.bf16.msra.mxu0 %v591
        %721 = vmatprep.subr.bf16.mxu0 %v600
        %722 = vmatpush1.bf16.msra.mxu0 %v599
        %723 = vmatprep.subr.bf16.mxu0 %v608
        %724 = vmatpush1.bf16.msra.mxu0 %v607
        %725 = vmatprep.subr.bf16.mxu0 %v616
        %726 = vmatpush1.bf16.msra.mxu0 %v615
        %727 = vmatprep.subr.bf16.mxu0 %v624
        %728 = vmatpush1.bf16.msra.mxu0 %v623
        %729 = vmatprep.subr.bf16.mxu0 %v632
        %730 = vmatpush1.bf16.msra.mxu0 %v631
        %731 = vmatprep.subr.bf16.mxu0 %v640
        %732 = vmatpush1.bf16.msra.mxu0 %v639
        %733 = vmatprep.subr.bf16.mxu0 %v648
        %734 = vmatpush1.bf16.msra.mxu0 %v647
        %735 = vmatprep.subr.bf16.mxu0 0
        %736 = vmatpush1.bf16.msra.mxu0 0
        %737 = vmatprep.subr.bf16.mxu0 0
        %738 = vmatpush1.bf16.msra.mxu0 0
        %739 = vmatprep.subr.bf16.mxu0 0
        %740 = vmatpush1.bf16.msra.mxu0 0
        %741 = vmatprep.subr.bf16.mxu0 0
        %742 = vmatpush1.bf16.msra.mxu0 0
        %743 = vmatprep.subr.bf16.mxu0 0
        %744 = vmatpush1.bf16.msra.mxu0 0
        %745 = vmatprep.subr.bf16.mxu0 0
        %746 = vmatpush1.bf16.msra.mxu0 0
        %747 = vmatprep.subr.bf16.mxu0 0
        %748 = vmatpush1.bf16.msra.mxu0 0
        %749 = vmatprep.subr.bf16.mxu0 0
        %750 = vmatpush1.bf16.msra.mxu0 0
        %751 = vmatprep.mubr.bf16.mxu0 0
        %752 = vmatmul.mubr.bf16.gmra.mrb[0].mxu0 %v289
        %v753 = vpop.f32.mrb[0].mxu0
        %v754 = vadd.f32 %v362, %v753
        %v755 = vpop.f32.mrb[0].mxu0
        %v756 = vadd.f32 %v366, %v755
        %v757 = vpop.f32.mrb[0].mxu0
        %v758 = vadd.f32 %v362, %v757
        %v759 = vpop.f32.mrb[0].mxu0
        %v760 = vadd.f32 %v366, %v759
        %761 = vmatprep.mubr.bf16.mxu0 0
        %762 = vmatmul.mubr.bf16.gmra.mrb[0].mxu0 %v290
        %v763 = vpop.f32.mrb[0].mxu0
        %v764 = vadd.f32 %v362, %v763
        %v765 = vpop.f32.mrb[0].mxu0
        %v766 = vadd.f32 %v366, %v765
        %v767 = vpop.f32.mrb[0].mxu0
        %v768 = vadd.f32 %v362, %v767
        %v769 = vpop.f32.mrb[0].mxu0
        %v770 = vadd.f32 %v366, %v769
        %771 = vmatprep.mubr.bf16.mxu0 0
        %772 = vmatmul.mubr.bf16.gmra.mrb[0].mxu0 %v291
        %v773 = vpop.f32.mrb[0].mxu0
        %v774 = vadd.f32 %v362, %v773
        %v775 = vpop.f32.mrb[0].mxu0
        %v776 = vadd.f32 %v366, %v775
        %v777 = vpop.f32.mrb[0].mxu0
        %v778 = vadd.f32 %v362, %v777
        %v779 = vpop.f32.mrb[0].mxu0
        %v780 = vadd.f32 %v366, %v779
        %781 = vmatprep.mubr.bf16.mxu0 0
        %782 = vmatmul.mubr.bf16.gmra.mrb[0].mxu0 %v292
        %v783 = vpop.f32.mrb[0].mxu0
        %v784 = vadd.f32 %v362, %v783
        %v785 = vpop.f32.mrb[0].mxu0
        %v786 = vadd.f32 %v366, %v785
        %v787 = vpop.f32.mrb[0].mxu0
        %v788 = vadd.f32 %v362, %v787
        %v789 = vpop.f32.mrb[0].mxu0
        %v790 = vadd.f32 %v366, %v789
        %791 = vdwg.mxu0
        %792 = vmatprep.subr.bf16.mxu0 %v594
        %793 = vmatpush1.bf16.msra.mxu0 %v593
        %794 = vmatprep.subr.bf16.mxu0 %v602
        %795 = vmatpush1.bf16.msra.mxu0 %v601
        %796 = vmatprep.subr.bf16.mxu0 %v610
        %797 = vmatpush1.bf16.msra.mxu0 %v609
        %798 = vmatprep.subr.bf16.mxu0 %v618
        %799 = vmatpush1.bf16.msra.mxu0 %v617
        %800 = vmatprep.subr.bf16.mxu0 %v626
        %801 = vmatpush1.bf16.msra.mxu0 %v625
        %802 = vmatprep.subr.bf16.mxu0 %v634
        %803 = vmatpush1.bf16.msra.mxu0 %v633
        %804 = vmatprep.subr.bf16.mxu0 %v642
        %805 = vmatpush1.bf16.msra.mxu0 %v641
        %806 = vmatprep.subr.bf16.mxu0 %v650
        %807 = vmatpush1.bf16.msra.mxu0 %v649
        %808 = vmatprep.subr.bf16.mxu0 0
        %809 = vmatpush1.bf16.msra.mxu0 0
        %810 = vmatprep.subr.bf16.mxu0 0
        %811 = vmatpush1.bf16.msra.mxu0 0
        %812 = vmatprep.subr.bf16.mxu0 0
        %813 = vmatpush1.bf16.msra.mxu0 0
        %814 = vmatprep.subr.bf16.mxu0 0
        %815 = vmatpush1.bf16.msra.mxu0 0
        %816 = vmatprep.subr.bf16.mxu0 0
        %817 = vmatpush1.bf16.msra.mxu0 0
        %818 = vmatprep.subr.bf16.mxu0 0
        %819 = vmatpush1.bf16.msra.mxu0 0
        %820 = vmatprep.subr.bf16.mxu0 0
        %821 = vmatpush1.bf16.msra.mxu0 0
        %822 = vmatprep.subr.bf16.mxu0 0
        %823 = vmatpush1.bf16.msra.mxu0 0
        %824 = vmatprep.mubr.bf16.mxu0 0
        %825 = vmatmul.mubr.bf16.gmra.mrb[0].mxu0 %v289
        %v826 = vpop.f32.mrb[0].mxu0
        %v827 = vadd.f32 %v370, %v826
        %v828 = vpop.f32.mrb[0].mxu0
        %v829 = vadd.f32 %v374, %v828
        %v830 = vpop.f32.mrb[0].mxu0
        %v831 = vadd.f32 %v370, %v830
        %v832 = vpop.f32.mrb[0].mxu0
        %v833 = vadd.f32 %v374, %v832
        %834 = vmatprep.mubr.bf16.mxu0 0
        %835 = vmatmul.mubr.bf16.gmra.mrb[0].mxu0 %v290
        %v836 = vpop.f32.mrb[0].mxu0
        %v837 = vadd.f32 %v370, %v836
        %v838 = vpop.f32.mrb[0].mxu0
        %v839 = vadd.f32 %v374, %v838
        %v840 = vpop.f32.mrb[0].mxu0
        %v841 = vadd.f32 %v370, %v840
        %v842 = vpop.f32.mrb[0].mxu0
        %v843 = vadd.f32 %v374, %v842
        %844 = vmatprep.mubr.bf16.mxu0 0
        %845 = vmatmul.mubr.bf16.gmra.mrb[0].mxu0 %v291
        %v846 = vpop.f32.mrb[0].mxu0
        %v847 = vadd.f32 %v370, %v846
        %v848 = vpop.f32.mrb[0].mxu0
        %v849 = vadd.f32 %v374, %v848
        %v850 = vpop.f32.mrb[0].mxu0
        %v851 = vadd.f32 %v370, %v850
        %v852 = vpop.f32.mrb[0].mxu0
        %v853 = vadd.f32 %v374, %v852
        %854 = vmatprep.mubr.bf16.mxu0 0
        %855 = vmatmul.mubr.bf16.gmra.mrb[0].mxu0 %v292
        %v856 = vpop.f32.mrb[0].mxu0
        %v857 = vadd.f32 %v370, %v856
        %v858 = vpop.f32.mrb[0].mxu0
        %v859 = vadd.f32 %v374, %v858
        %v860 = vpop.f32.mrb[0].mxu0
        %v861 = vadd.f32 %v370, %v860
        %v862 = vpop.f32.mrb[0].mxu0
        %v863 = vadd.f32 %v374, %v862
        %864 = vdwg.mxu0
        %865 = vmatprep.subr.bf16.mxu0 %v596
        %866 = vmatpush1.bf16.msra.mxu0 %v595
        %867 = vmatprep.subr.bf16.mxu0 %v604
        %868 = vmatpush1.bf16.msra.mxu0 %v603
        %869 = vmatprep.subr.bf16.mxu0 %v612
        %870 = vmatpush1.bf16.msra.mxu0 %v611
        %871 = vmatprep.subr.bf16.mxu0 %v620
        %872 = vmatpush1.bf16.msra.mxu0 %v619
        %873 = vmatprep.subr.bf16.mxu0 %v628
        %874 = vmatpush1.bf16.msra.mxu0 %v627
        %875 = vmatprep.subr.bf16.mxu0 %v636
        %876 = vmatpush1.bf16.msra.mxu0 %v635
        %877 = vmatprep.subr.bf16.mxu0 %v644
        %878 = vmatpush1.bf16.msra.mxu0 %v643
        %879 = vmatprep.subr.bf16.mxu0 %v652
        %880 = vmatpush1.bf16.msra.mxu0 %v651
        %881 = vmatprep.subr.bf16.mxu0 0
        %882 = vmatpush1.bf16.msra.mxu0 0
        %883 = vmatprep.subr.bf16.mxu0 0
        %884 = vmatpush1.bf16.msra.mxu0 0
        %885 = vmatprep.subr.bf16.mxu0 0
        %886 = vmatpush1.bf16.msra.mxu0 0
        %887 = vmatprep.subr.bf16.mxu0 0
        %888 = vmatpush1.bf16.msra.mxu0 0
        %889 = vmatprep.subr.bf16.mxu0 0
        %890 = vmatpush1.bf16.msra.mxu0 0
        %891 = vmatprep.subr.bf16.mxu0 0
        %892 = vmatpush1.bf16.msra.mxu0 0
        %893 = vmatprep.subr.bf16.mxu0 0
        %894 = vmatpush1.bf16.msra.mxu0 0
        %895 = vmatprep.subr.bf16.mxu0 0
        %896 = vmatpush1.bf16.msra.mxu0 0
        %897 = vmatprep.mubr.bf16.mxu0 0
        %898 = vmatmul.mubr.bf16.gmra.mrb[0].mxu0 %v289
        %v899 = vpop.f32.mrb[0].mxu0
        %v900 = vadd.f32 %v378, %v899
        %v901 = vpop.f32.mrb[0].mxu0
        %v902 = vadd.f32 %v382, %v901
        %v903 = vpop.f32.mrb[0].mxu0
        %v904 = vadd.f32 %v378, %v903
        %v905 = vpop.f32.mrb[0].mxu0
        %v906 = vadd.f32 %v382, %v905
        %907 = vmatprep.mubr.bf16.mxu0 0
        %908 = vmatmul.mubr.bf16.gmra.mrb[0].mxu0 %v290
        %v909 = vpop.f32.mrb[0].mxu0
        %v910 = vadd.f32 %v378, %v909
        %v911 = vpop.f32.mrb[0].mxu0
        %v912 = vadd.f32 %v382, %v911
        %v913 = vpop.f32.mrb[0].mxu0
        %v914 = vadd.f32 %v378, %v913
        %v915 = vpop.f32.mrb[0].mxu0
        %v916 = vadd.f32 %v382, %v915
        %917 = vmatprep.mubr.bf16.mxu0 0
        %918 = vmatmul.mubr.bf16.gmra.mrb[0].mxu0 %v291
        %v919 = vpop.f32.mrb[0].mxu0
        %v920 = vadd.f32 %v378, %v919
        %v921 = vpop.f32.mrb[0].mxu0
        %v922 = vadd.f32 %v382, %v921
        %v923 = vpop.f32.mrb[0].mxu0
        %v924 = vadd.f32 %v378, %v923
        %v925 = vpop.f32.mrb[0].mxu0
        %v926 = vadd.f32 %v382, %v925
        %927 = vmatprep.mubr.bf16.mxu0 0
        %928 = vmatmul.mubr.bf16.gmra.mrb[0].mxu0 %v292
        %v929 = vpop.f32.mrb[0].mxu0
        %v930 = vadd.f32 %v378, %v929
        %v931 = vpop.f32.mrb[0].mxu0
        %v932 = vadd.f32 %v382, %v931
        %v933 = vpop.f32.mrb[0].mxu0
        %v934 = vadd.f32 %v378, %v933
        %v935 = vpop.f32.mrb[0].mxu0
        %v936 = vadd.f32 %v382, %v935
        %937 = vdwg.mxu0
        %938 = vmatprep.subr.bf16.mxu0 %v598
        %939 = vmatpush1.bf16.msra.mxu0 %v597
        %940 = vmatprep.subr.bf16.mxu0 %v606
        %941 = vmatpush1.bf16.msra.mxu0 %v605
        %942 = vmatprep.subr.bf16.mxu0 %v614
        %943 = vmatpush1.bf16.msra.mxu0 %v613
        %944 = vmatprep.subr.bf16.mxu0 %v622
        %945 = vmatpush1.bf16.msra.mxu0 %v621
        %946 = vmatprep.subr.bf16.mxu0 %v630
        %947 = vmatpush1.bf16.msra.mxu0 %v629
        %948 = vmatprep.subr.bf16.mxu0 %v638
        %949 = vmatpush1.bf16.msra.mxu0 %v637
        %950 = vmatprep.subr.bf16.mxu0 %v646
        %951 = vmatpush1.bf16.msra.mxu0 %v645
        %952 = vmatprep.subr.bf16.mxu0 %v654
        %953 = vmatpush1.bf16.msra.mxu0 %v653
        %954 = vmatprep.subr.bf16.mxu0 0
        %955 = vmatpush1.bf16.msra.mxu0 0
        %956 = vmatprep.subr.bf16.mxu0 0
        %957 = vmatpush1.bf16.msra.mxu0 0
        %958 = vmatprep.subr.bf16.mxu0 0
        %959 = vmatpush1.bf16.msra.mxu0 0
        %960 = vmatprep.subr.bf16.mxu0 0
        %961 = vmatpush1.bf16.msra.mxu0 0
        %962 = vmatprep.subr.bf16.mxu0 0
        %963 = vmatpush1.bf16.msra.mxu0 0
        %964 = vmatprep.subr.bf16.mxu0 0
        %965 = vmatpush1.bf16.msra.mxu0 0
        %966 = vmatprep.subr.bf16.mxu0 0
        %967 = vmatpush1.bf16.msra.mxu0 0
        %968 = vmatprep.subr.bf16.mxu0 0
        %969 = vmatpush1.bf16.msra.mxu0 0
        %970 = vmatprep.mubr.bf16.mxu0 0
        %971 = vmatmul.mubr.bf16.gmra.mrb[0].mxu0 %v289
        %v972 = vpop.f32.mrb[0].mxu0
        %v973 = vadd.f32 %v386, %v972
        %v974 = vpop.f32.mrb[0].mxu0
        %v975 = vadd.f32 %v390, %v974
        %v976 = vpop.f32.mrb[0].mxu0
        %v977 = vadd.f32 %v386, %v976
        %v978 = vpop.f32.mrb[0].mxu0
        %v979 = vadd.f32 %v390, %v978
        %980 = vmatprep.mubr.bf16.mxu0 0
        %981 = vmatmul.mubr.bf16.gmra.mrb[0].mxu0 %v290
        %v982 = vpop.f32.mrb[0].mxu0
        %v983 = vadd.f32 %v386, %v982
        %v984 = vpop.f32.mrb[0].mxu0
        %v985 = vadd.f32 %v390, %v984
        %v986 = vpop.f32.mrb[0].mxu0
        %v987 = vadd.f32 %v386, %v986
        %v988 = vpop.f32.mrb[0].mxu0
        %v989 = vadd.f32 %v390, %v988
        %990 = vmatprep.mubr.bf16.mxu0 0
        %991 = vmatmul.mubr.bf16.gmra.mrb[0].mxu0 %v291
        %v992 = vpop.f32.mrb[0].mxu0
        %v993 = vadd.f32 %v386, %v992
        %v994 = vpop.f32.mrb[0].mxu0
        %v995 = vadd.f32 %v390, %v994
        %v996 = vpop.f32.mrb[0].mxu0
        %v997 = vadd.f32 %v386, %v996
        %v998 = vpop.f32.mrb[0].mxu0
        %v999 = vadd.f32 %v390, %v998
        %1000 = vmatprep.mubr.bf16.mxu0 0
        %1001 = vmatmul.mubr.bf16.gmra.mrb[0].mxu0 %v292
        %v1002 = vpop.f32.mrb[0].mxu0
        %v1003 = vadd.f32 %v386, %v1002
        %v1004 = vpop.f32.mrb[0].mxu0
        %v1005 = vadd.f32 %v390, %v1004
        %v1006 = vpop.f32.mrb[0].mxu0
        %v1007 = vadd.f32 %v386, %v1006
        %v1008 = vpop.f32.mrb[0].mxu0
        %v1009 = vadd.f32 %v390, %v1008
        %1010 = vdwg.mxu0
        %v1011 = vmin.f32 %v754, 20.0
        %v1012 = vmin.f32 %v756, 20.0
        %v1013 = vmin.f32 %v827, 20.0
        %v1014 = vmin.f32 %v829, 20.0
        %v1015 = vmin.f32 %v900, 20.0
        %v1016 = vmin.f32 %v902, 20.0
        %v1017 = vmin.f32 %v973, 20.0
        %v1018 = vmin.f32 %v975, 20.0
        %v1019 = vmin.f32 %v758, 20.0
        %v1020 = vmin.f32 %v760, 20.0
        %v1021 = vmin.f32 %v831, 20.0
        %v1022 = vmin.f32 %v833, 20.0
        %v1023 = vmin.f32 %v904, 20.0
        %v1024 = vmin.f32 %v906, 20.0
        %v1025 = vmin.f32 %v977, 20.0
        %v1026 = vmin.f32 %v979, 20.0
        %v1027 = vmin.f32 %v764, 20.0
        %v1028 = vmin.f32 %v766, 20.0
        %v1029 = vmin.f32 %v837, 20.0
        %v1030 = vmin.f32 %v839, 20.0
        %v1031 = vmin.f32 %v910, 20.0
        %v1032 = vmin.f32 %v912, 20.0
        %v1033 = vmin.f32 %v983, 20.0
        %v1034 = vmin.f32 %v985, 20.0
        %v1035 = vmin.f32 %v768, 20.0
        %v1036 = vmin.f32 %v770, 20.0
        %v1037 = vmin.f32 %v841, 20.0
        %v1038 = vmin.f32 %v843, 20.0
        %v1039 = vmin.f32 %v914, 20.0
        %v1040 = vmin.f32 %v916, 20.0
        %v1041 = vmin.f32 %v987, 20.0
        %v1042 = vmin.f32 %v989, 20.0
        %v1043 = vmin.f32 %v774, 20.0
        %v1044 = vmin.f32 %v776, 20.0
        %v1045 = vmin.f32 %v847, 20.0
        %v1046 = vmin.f32 %v849, 20.0
        %v1047 = vmin.f32 %v920, 20.0
        %v1048 = vmin.f32 %v922, 20.0
        %v1049 = vmin.f32 %v993, 20.0
        %v1050 = vmin.f32 %v995, 20.0
        %v1051 = vmin.f32 %v778, 20.0
        %v1052 = vmin.f32 %v780, 20.0
        %v1053 = vmin.f32 %v851, 20.0
        %v1054 = vmin.f32 %v853, 20.0
        %v1055 = vmin.f32 %v924, 20.0
        %v1056 = vmin.f32 %v926, 20.0
        %v1057 = vmin.f32 %v997, 20.0
        %v1058 = vmin.f32 %v999, 20.0
        %v1059 = vmin.f32 %v784, 20.0
        %v1060 = vmin.f32 %v786, 20.0
        %v1061 = vmin.f32 %v857, 20.0
        %v1062 = vmin.f32 %v859, 20.0
        %v1063 = vmin.f32 %v930, 20.0
        %v1064 = vmin.f32 %v932, 20.0
        %v1065 = vmin.f32 %v1003, 20.0
        %v1066 = vmin.f32 %v1005, 20.0
        %v1067 = vmin.f32 %v788, 20.0
        %v1068 = vmin.f32 %v790, 20.0
        %v1069 = vmin.f32 %v861, 20.0
        %v1070 = vmin.f32 %v863, 20.0
        %v1071 = vmin.f32 %v934, 20.0
        %v1072 = vmin.f32 %v936, 20.0
        %v1073 = vmin.f32 %v1007, 20.0
        %v1074 = vmin.f32 %v1009, 20.0
        %v1075 = vmul.f32 %v1011, 1.442695
        %v1076 = vpow.pop %v1075
        %v1077 = vmul.f32 %v1012, 1.442695
        %v1078 = vpow.pop %v1077
        %v1079 = vmul.f32 %v1013, 1.442695
        %v1080 = vpow.pop %v1079
        %v1081 = vmul.f32 %v1014, 1.442695
        %v1082 = vpow.pop %v1081
        %v1083 = vmul.f32 %v1015, 1.442695
        %v1084 = vpow.pop %v1083
        %v1085 = vmul.f32 %v1016, 1.442695
        %v1086 = vpow.pop %v1085
        %v1087 = vmul.f32 %v1017, 1.442695
        %v1088 = vpow.pop %v1087
        %v1089 = vmul.f32 %v1018, 1.442695
        %v1090 = vpow.pop %v1089
        %v1091 = vmul.f32 %v1019, 1.442695
        %v1092 = vpow.pop %v1091
        %v1093 = vmul.f32 %v1020, 1.442695
        %v1094 = vpow.pop %v1093
        %v1095 = vmul.f32 %v1021, 1.442695
        %v1096 = vpow.pop %v1095
        %v1097 = vmul.f32 %v1022, 1.442695
        %v1098 = vpow.pop %v1097
        %v1099 = vmul.f32 %v1023, 1.442695
        %v1100 = vpow.pop %v1099
        %v1101 = vmul.f32 %v1024, 1.442695
        %v1102 = vpow.pop %v1101
        %v1103 = vmul.f32 %v1025, 1.442695
        %v1104 = vpow.pop %v1103
        %v1105 = vmul.f32 %v1026, 1.442695
        %v1106 = vpow.pop %v1105
        %v1107 = vmul.f32 %v1027, 1.442695
        %v1108 = vpow.pop %v1107
        %v1109 = vmul.f32 %v1028, 1.442695
        %v1110 = vpow.pop %v1109
        %v1111 = vmul.f32 %v1029, 1.442695
        %v1112 = vpow.pop %v1111
        %v1113 = vmul.f32 %v1030, 1.442695
        %v1114 = vpow.pop %v1113
        %v1115 = vmul.f32 %v1031, 1.442695
        %v1116 = vpow.pop %v1115
        %v1117 = vmul.f32 %v1032, 1.442695
        %v1118 = vpow.pop %v1117
        %v1119 = vmul.f32 %v1033, 1.442695
        %v1120 = vpow.pop %v1119
        %v1121 = vmul.f32 %v1034, 1.442695
        %v1122 = vpow.pop %v1121
        %v1123 = vmul.f32 %v1035, 1.442695
        %v1124 = vpow.pop %v1123
        %v1125 = vmul.f32 %v1036, 1.442695
        %v1126 = vpow.pop %v1125
        %v1127 = vmul.f32 %v1037, 1.442695
        %v1128 = vpow.pop %v1127
        %v1129 = vmul.f32 %v1038, 1.442695
        %v1130 = vpow.pop %v1129
        %v1131 = vmul.f32 %v1039, 1.442695
        %v1132 = vpow.pop %v1131
        %v1133 = vmul.f32 %v1040, 1.442695
        %v1134 = vpow.pop %v1133
        %v1135 = vmul.f32 %v1041, 1.442695
        %v1136 = vpow.pop %v1135
        %v1137 = vmul.f32 %v1042, 1.442695
        %v1138 = vpow.pop %v1137
        %v1139 = vmul.f32 %v1043, 1.442695
        %v1140 = vpow.pop %v1139
        %v1141 = vmul.f32 %v1044, 1.442695
        %v1142 = vpow.pop %v1141
        %v1143 = vmul.f32 %v1045, 1.442695
        %v1144 = vpow.pop %v1143
        %v1145 = vmul.f32 %v1046, 1.442695
        %v1146 = vpow.pop %v1145
        %v1147 = vmul.f32 %v1047, 1.442695
        %v1148 = vpow.pop %v1147
        %v1149 = vmul.f32 %v1048, 1.442695
        %v1150 = vpow.pop %v1149
        %v1151 = vmul.f32 %v1049, 1.442695
        %v1152 = vpow.pop %v1151
        %v1153 = vmul.f32 %v1050, 1.442695
        %v1154 = vpow.pop %v1153
        %v1155 = vmul.f32 %v1051, 1.442695
        %v1156 = vpow.pop %v1155
        %v1157 = vmul.f32 %v1052, 1.442695
        %v1158 = vpow.pop %v1157
        %v1159 = vmul.f32 %v1053, 1.442695
        %v1160 = vpow.pop %v1159
        %v1161 = vmul.f32 %v1054, 1.442695
        %v1162 = vpow.pop %v1161
        %v1163 = vmul.f32 %v1055, 1.442695
        %v1164 = vpow.pop %v1163
        %v1165 = vmul.f32 %v1056, 1.442695
        %v1166 = vpow.pop %v1165
        %v1167 = vmul.f32 %v1057, 1.442695
        %v1168 = vpow.pop %v1167
        %v1169 = vmul.f32 %v1058, 1.442695
        %v1170 = vpow.pop %v1169
        %v1171 = vmul.f32 %v1059, 1.442695
        %v1172 = vpow.pop %v1171
        %v1173 = vmul.f32 %v1060, 1.442695
        %v1174 = vpow.pop %v1173
        %v1175 = vmul.f32 %v1061, 1.442695
        %v1176 = vpow.pop %v1175
        %v1177 = vmul.f32 %v1062, 1.442695
        %v1178 = vpow.pop %v1177
        %v1179 = vmul.f32 %v1063, 1.442695
        %v1180 = vpow.pop %v1179
        %v1181 = vmul.f32 %v1064, 1.442695
        %v1182 = vpow.pop %v1181
        %v1183 = vmul.f32 %v1065, 1.442695
        %v1184 = vpow.pop %v1183
        %v1185 = vmul.f32 %v1066, 1.442695
        %v1186 = vpow.pop %v1185
        %v1187 = vmul.f32 %v1067, 1.442695
        %v1188 = vpow.pop %v1187
        %v1189 = vmul.f32 %v1068, 1.442695
        %v1190 = vpow.pop %v1189
        %v1191 = vmul.f32 %v1069, 1.442695
        %v1192 = vpow.pop %v1191
        %v1193 = vmul.f32 %v1070, 1.442695
        %v1194 = vpow.pop %v1193
        %v1195 = vmul.f32 %v1071, 1.442695
        %v1196 = vpow.pop %v1195
        %v1197 = vmul.f32 %v1072, 1.442695
        %v1198 = vpow.pop %v1197
        %v1199 = vmul.f32 %v1073, 1.442695
        %v1200 = vpow.pop %v1199
        %v1201 = vmul.f32 %v1074, 1.442695
        %v1202 = vpow.pop %v1201
        %v1203 = vadd.f32 %v1076, 1.0
        %v1204 = vadd.f32 %v1078, 1.0
        %v1205 = vadd.f32 %v1080, 1.0
        %v1206 = vadd.f32 %v1082, 1.0
        %v1207 = vadd.f32 %v1084, 1.0
        %v1208 = vadd.f32 %v1086, 1.0
        %v1209 = vadd.f32 %v1088, 1.0
        %v1210 = vadd.f32 %v1090, 1.0
        %v1211 = vadd.f32 %v1092, 1.0
        %v1212 = vadd.f32 %v1094, 1.0
        %v1213 = vadd.f32 %v1096, 1.0
        %v1214 = vadd.f32 %v1098, 1.0
        %v1215 = vadd.f32 %v1100, 1.0
        %v1216 = vadd.f32 %v1102, 1.0
        %v1217 = vadd.f32 %v1104, 1.0
        %v1218 = vadd.f32 %v1106, 1.0
        %v1219 = vadd.f32 %v1108, 1.0
        %v1220 = vadd.f32 %v1110, 1.0
        %v1221 = vadd.f32 %v1112, 1.0
        %v1222 = vadd.f32 %v1114, 1.0
        %v1223 = vadd.f32 %v1116, 1.0
        %v1224 = vadd.f32 %v1118, 1.0
        %v1225 = vadd.f32 %v1120, 1.0
        %v1226 = vadd.f32 %v1122, 1.0
        %v1227 = vadd.f32 %v1124, 1.0
        %v1228 = vadd.f32 %v1126, 1.0
        %v1229 = vadd.f32 %v1128, 1.0
        %v1230 = vadd.f32 %v1130, 1.0
        %v1231 = vadd.f32 %v1132, 1.0
        %v1232 = vadd.f32 %v1134, 1.0
        %v1233 = vadd.f32 %v1136, 1.0
        %v1234 = vadd.f32 %v1138, 1.0
        %v1235 = vadd.f32 %v1140, 1.0
        %v1236 = vadd.f32 %v1142, 1.0
        %v1237 = vadd.f32 %v1144, 1.0
        %v1238 = vadd.f32 %v1146, 1.0
        %v1239 = vadd.f32 %v1148, 1.0
        %v1240 = vadd.f32 %v1150, 1.0
        %v1241 = vadd.f32 %v1152, 1.0
        %v1242 = vadd.f32 %v1154, 1.0
        %v1243 = vadd.f32 %v1156, 1.0
        %v1244 = vadd.f32 %v1158, 1.0
        %v1245 = vadd.f32 %v1160, 1.0
        %v1246 = vadd.f32 %v1162, 1.0
        %v1247 = vadd.f32 %v1164, 1.0
        %v1248 = vadd.f32 %v1166, 1.0
        %v1249 = vadd.f32 %v1168, 1.0
        %v1250 = vadd.f32 %v1170, 1.0
        %v1251 = vadd.f32 %v1172, 1.0
        %v1252 = vadd.f32 %v1174, 1.0
        %v1253 = vadd.f32 %v1176, 1.0
        %v1254 = vadd.f32 %v1178, 1.0
        %v1255 = vadd.f32 %v1180, 1.0
        %v1256 = vadd.f32 %v1182, 1.0
        %v1257 = vadd.f32 %v1184, 1.0
        %v1258 = vadd.f32 %v1186, 1.0
        %v1259 = vadd.f32 %v1188, 1.0
        %v1260 = vadd.f32 %v1190, 1.0
        %v1261 = vadd.f32 %v1192, 1.0
        %v1262 = vadd.f32 %v1194, 1.0
        %v1263 = vadd.f32 %v1196, 1.0
        %v1264 = vadd.f32 %v1198, 1.0
        %v1265 = vadd.f32 %v1200, 1.0
        %v1266 = vadd.f32 %v1202, 1.0
        %v1267 = vmul.f32 %v1203, %v1203
        %v1268 = vmul.f32 %v1204, %v1204
        %v1269 = vmul.f32 %v1205, %v1205
        %v1270 = vmul.f32 %v1206, %v1206
        %v1271 = vmul.f32 %v1207, %v1207
        %v1272 = vmul.f32 %v1208, %v1208
        %v1273 = vmul.f32 %v1209, %v1209
        %v1274 = vmul.f32 %v1210, %v1210
        %v1275 = vmul.f32 %v1211, %v1211
        %v1276 = vmul.f32 %v1212, %v1212
        %v1277 = vmul.f32 %v1213, %v1213
        %v1278 = vmul.f32 %v1214, %v1214
        %v1279 = vmul.f32 %v1215, %v1215
        %v1280 = vmul.f32 %v1216, %v1216
        %v1281 = vmul.f32 %v1217, %v1217
        %v1282 = vmul.f32 %v1218, %v1218
        %v1283 = vmul.f32 %v1219, %v1219
        %v1284 = vmul.f32 %v1220, %v1220
        %v1285 = vmul.f32 %v1221, %v1221
        %v1286 = vmul.f32 %v1222, %v1222
        %v1287 = vmul.f32 %v1223, %v1223
        %v1288 = vmul.f32 %v1224, %v1224
        %v1289 = vmul.f32 %v1225, %v1225
        %v1290 = vmul.f32 %v1226, %v1226
        %v1291 = vmul.f32 %v1227, %v1227
        %v1292 = vmul.f32 %v1228, %v1228
        %v1293 = vmul.f32 %v1229, %v1229
        %v1294 = vmul.f32 %v1230, %v1230
        %v1295 = vmul.f32 %v1231, %v1231
        %v1296 = vmul.f32 %v1232, %v1232
        %v1297 = vmul.f32 %v1233, %v1233
        %v1298 = vmul.f32 %v1234, %v1234
        %v1299 = vmul.f32 %v1235, %v1235
        %v1300 = vmul.f32 %v1236, %v1236
        %v1301 = vmul.f32 %v1237, %v1237
        %v1302 = vmul.f32 %v1238, %v1238
        %v1303 = vmul.f32 %v1239, %v1239
        %v1304 = vmul.f32 %v1240, %v1240
        %v1305 = vmul.f32 %v1241, %v1241
        %v1306 = vmul.f32 %v1242, %v1242
        %v1307 = vmul.f32 %v1243, %v1243
        %v1308 = vmul.f32 %v1244, %v1244
        %v1309 = vmul.f32 %v1245, %v1245
        %v1310 = vmul.f32 %v1246, %v1246
        %v1311 = vmul.f32 %v1247, %v1247
        %v1312 = vmul.f32 %v1248, %v1248
        %v1313 = vmul.f32 %v1249, %v1249
        %v1314 = vmul.f32 %v1250, %v1250
        %v1315 = vmul.f32 %v1251, %v1251
        %v1316 = vmul.f32 %v1252, %v1252
        %v1317 = vmul.f32 %v1253, %v1253
        %v1318 = vmul.f32 %v1254, %v1254
        %v1319 = vmul.f32 %v1255, %v1255
        %v1320 = vmul.f32 %v1256, %v1256
        %v1321 = vmul.f32 %v1257, %v1257
        %v1322 = vmul.f32 %v1258, %v1258
        %v1323 = vmul.f32 %v1259, %v1259
        %v1324 = vmul.f32 %v1260, %v1260
        %v1325 = vmul.f32 %v1261, %v1261
        %v1326 = vmul.f32 %v1262, %v1262
        %v1327 = vmul.f32 %v1263, %v1263
        %v1328 = vmul.f32 %v1264, %v1264
        %v1329 = vmul.f32 %v1265, %v1265
        %v1330 = vmul.f32 %v1266, %v1266
        %v1331 = vsub.f32 %v1267, 1.0
        %v1332 = vsub.f32 %v1268, 1.0
        %v1333 = vsub.f32 %v1269, 1.0
        %v1334 = vsub.f32 %v1270, 1.0
        %v1335 = vsub.f32 %v1271, 1.0
        %v1336 = vsub.f32 %v1272, 1.0
        %v1337 = vsub.f32 %v1273, 1.0
        %v1338 = vsub.f32 %v1274, 1.0
        %v1339 = vsub.f32 %v1275, 1.0
        %v1340 = vsub.f32 %v1276, 1.0
        %v1341 = vsub.f32 %v1277, 1.0
        %v1342 = vsub.f32 %v1278, 1.0
        %v1343 = vsub.f32 %v1279, 1.0
        %v1344 = vsub.f32 %v1280, 1.0
        %v1345 = vsub.f32 %v1281, 1.0
        %v1346 = vsub.f32 %v1282, 1.0
        %v1347 = vsub.f32 %v1283, 1.0
        %v1348 = vsub.f32 %v1284, 1.0
        %v1349 = vsub.f32 %v1285, 1.0
        %v1350 = vsub.f32 %v1286, 1.0
        %v1351 = vsub.f32 %v1287, 1.0
        %v1352 = vsub.f32 %v1288, 1.0
        %v1353 = vsub.f32 %v1289, 1.0
        %v1354 = vsub.f32 %v1290, 1.0
        %v1355 = vsub.f32 %v1291, 1.0
        %v1356 = vsub.f32 %v1292, 1.0
        %v1357 = vsub.f32 %v1293, 1.0
        %v1358 = vsub.f32 %v1294, 1.0
        %v1359 = vsub.f32 %v1295, 1.0
        %v1360 = vsub.f32 %v1296, 1.0
        %v1361 = vsub.f32 %v1297, 1.0
        %v1362 = vsub.f32 %v1298, 1.0
        %v1363 = vsub.f32 %v1299, 1.0
        %v1364 = vsub.f32 %v1300, 1.0
        %v1365 = vsub.f32 %v1301, 1.0
        %v1366 = vsub.f32 %v1302, 1.0
        %v1367 = vsub.f32 %v1303, 1.0
        %v1368 = vsub.f32 %v1304, 1.0
        %v1369 = vsub.f32 %v1305, 1.0
        %v1370 = vsub.f32 %v1306, 1.0
        %v1371 = vsub.f32 %v1307, 1.0
        %v1372 = vsub.f32 %v1308, 1.0
        %v1373 = vsub.f32 %v1309, 1.0
        %v1374 = vsub.f32 %v1310, 1.0
        %v1375 = vsub.f32 %v1311, 1.0
        %v1376 = vsub.f32 %v1312, 1.0
        %v1377 = vsub.f32 %v1313, 1.0
        %v1378 = vsub.f32 %v1314, 1.0
        %v1379 = vsub.f32 %v1315, 1.0
        %v1380 = vsub.f32 %v1316, 1.0
        %v1381 = vsub.f32 %v1317, 1.0
        %v1382 = vsub.f32 %v1318, 1.0
        %v1383 = vsub.f32 %v1319, 1.0
        %v1384 = vsub.f32 %v1320, 1.0
        %v1385 = vsub.f32 %v1321, 1.0
        %v1386 = vsub.f32 %v1322, 1.0
        %v1387 = vsub.f32 %v1323, 1.0
        %v1388 = vsub.f32 %v1324, 1.0
        %v1389 = vsub.f32 %v1325, 1.0
        %v1390 = vsub.f32 %v1326, 1.0
        %v1391 = vsub.f32 %v1327, 1.0
        %v1392 = vsub.f32 %v1328, 1.0
        %v1393 = vsub.f32 %v1329, 1.0
        %v1394 = vsub.f32 %v1330, 1.0
        %v1395 = vmul.f32 %v754, %v1331
        %v1396 = vmul.f32 %v756, %v1332
        %v1397 = vmul.f32 %v827, %v1333
        %v1398 = vmul.f32 %v829, %v1334
        %v1399 = vmul.f32 %v900, %v1335
        %v1400 = vmul.f32 %v902, %v1336
        %v1401 = vmul.f32 %v973, %v1337
        %v1402 = vmul.f32 %v975, %v1338
        %v1403 = vmul.f32 %v758, %v1339
        %v1404 = vmul.f32 %v760, %v1340
        %v1405 = vmul.f32 %v831, %v1341
        %v1406 = vmul.f32 %v833, %v1342
        %v1407 = vmul.f32 %v904, %v1343
        %v1408 = vmul.f32 %v906, %v1344
        %v1409 = vmul.f32 %v977, %v1345
        %v1410 = vmul.f32 %v979, %v1346
        %v1411 = vmul.f32 %v764, %v1347
        %v1412 = vmul.f32 %v766, %v1348
        %v1413 = vmul.f32 %v837, %v1349
        %v1414 = vmul.f32 %v839, %v1350
        %v1415 = vmul.f32 %v910, %v1351
        %v1416 = vmul.f32 %v912, %v1352
        %v1417 = vmul.f32 %v983, %v1353
        %v1418 = vmul.f32 %v985, %v1354
        %v1419 = vmul.f32 %v768, %v1355
        %v1420 = vmul.f32 %v770, %v1356
        %v1421 = vmul.f32 %v841, %v1357
        %v1422 = vmul.f32 %v843, %v1358
        %v1423 = vmul.f32 %v914, %v1359
        %v1424 = vmul.f32 %v916, %v1360
        %v1425 = vmul.f32 %v987, %v1361
        %v1426 = vmul.f32 %v989, %v1362
        %v1427 = vmul.f32 %v774, %v1363
        %v1428 = vmul.f32 %v776, %v1364
        %v1429 = vmul.f32 %v847, %v1365
        %v1430 = vmul.f32 %v849, %v1366
        %v1431 = vmul.f32 %v920, %v1367
        %v1432 = vmul.f32 %v922, %v1368
        %v1433 = vmul.f32 %v993, %v1369
        %v1434 = vmul.f32 %v995, %v1370
        %v1435 = vmul.f32 %v778, %v1371
        %v1436 = vmul.f32 %v780, %v1372
        %v1437 = vmul.f32 %v851, %v1373
        %v1438 = vmul.f32 %v853, %v1374
        %v1439 = vmul.f32 %v924, %v1375
        %v1440 = vmul.f32 %v926, %v1376
        %v1441 = vmul.f32 %v997, %v1377
        %v1442 = vmul.f32 %v999, %v1378
        %v1443 = vmul.f32 %v784, %v1379
        %v1444 = vmul.f32 %v786, %v1380
        %v1445 = vmul.f32 %v857, %v1381
        %v1446 = vmul.f32 %v859, %v1382
        %v1447 = vmul.f32 %v930, %v1383
        %v1448 = vmul.f32 %v932, %v1384
        %v1449 = vmul.f32 %v1003, %v1385
        %v1450 = vmul.f32 %v1005, %v1386
        %v1451 = vmul.f32 %v788, %v1387
        %v1452 = vmul.f32 %v790, %v1388
        %v1453 = vmul.f32 %v861, %v1389
        %v1454 = vmul.f32 %v863, %v1390
        %v1455 = vmul.f32 %v934, %v1391
        %v1456 = vmul.f32 %v936, %v1392
        %v1457 = vmul.f32 %v1007, %v1393
        %v1458 = vmul.f32 %v1009, %v1394
        %v1459 = vadd.f32 %v1267, 1.0
        %v1460 = vadd.f32 %v1268, 1.0
        %v1461 = vadd.f32 %v1269, 1.0
        %v1462 = vadd.f32 %v1270, 1.0
        %v1463 = vadd.f32 %v1271, 1.0
        %v1464 = vadd.f32 %v1272, 1.0
        %v1465 = vadd.f32 %v1273, 1.0
        %v1466 = vadd.f32 %v1274, 1.0
        %v1467 = vadd.f32 %v1275, 1.0
        %v1468 = vadd.f32 %v1276, 1.0
        %v1469 = vadd.f32 %v1277, 1.0
        %v1470 = vadd.f32 %v1278, 1.0
        %v1471 = vadd.f32 %v1279, 1.0
        %v1472 = vadd.f32 %v1280, 1.0
        %v1473 = vadd.f32 %v1281, 1.0
        %v1474 = vadd.f32 %v1282, 1.0
        %v1475 = vadd.f32 %v1283, 1.0
        %v1476 = vadd.f32 %v1284, 1.0
        %v1477 = vadd.f32 %v1285, 1.0
        %v1478 = vadd.f32 %v1286, 1.0
        %v1479 = vadd.f32 %v1287, 1.0
        %v1480 = vadd.f32 %v1288, 1.0
        %v1481 = vadd.f32 %v1289, 1.0
        %v1482 = vadd.f32 %v1290, 1.0
        %v1483 = vadd.f32 %v1291, 1.0
        %v1484 = vadd.f32 %v1292, 1.0
        %v1485 = vadd.f32 %v1293, 1.0
        %v1486 = vadd.f32 %v1294, 1.0
        %v1487 = vadd.f32 %v1295, 1.0
        %v1488 = vadd.f32 %v1296, 1.0
        %v1489 = vadd.f32 %v1297, 1.0
        %v1490 = vadd.f32 %v1298, 1.0
        %v1491 = vadd.f32 %v1299, 1.0
        %v1492 = vadd.f32 %v1300, 1.0
        %v1493 = vadd.f32 %v1301, 1.0
        %v1494 = vadd.f32 %v1302, 1.0
        %v1495 = vadd.f32 %v1303, 1.0
        %v1496 = vadd.f32 %v1304, 1.0
        %v1497 = vadd.f32 %v1305, 1.0
        %v1498 = vadd.f32 %v1306, 1.0
        %v1499 = vadd.f32 %v1307, 1.0
        %v1500 = vadd.f32 %v1308, 1.0
        %v1501 = vadd.f32 %v1309, 1.0
        %v1502 = vadd.f32 %v1310, 1.0
        %v1503 = vadd.f32 %v1311, 1.0
        %v1504 = vadd.f32 %v1312, 1.0
        %v1505 = vadd.f32 %v1313, 1.0
        %v1506 = vadd.f32 %v1314, 1.0
        %v1507 = vadd.f32 %v1315, 1.0
        %v1508 = vadd.f32 %v1316, 1.0
        %v1509 = vadd.f32 %v1317, 1.0
        %v1510 = vadd.f32 %v1318, 1.0
        %v1511 = vadd.f32 %v1319, 1.0
        %v1512 = vadd.f32 %v1320, 1.0
        %v1513 = vadd.f32 %v1321, 1.0
        %v1514 = vadd.f32 %v1322, 1.0
        %v1515 = vadd.f32 %v1323, 1.0
        %v1516 = vadd.f32 %v1324, 1.0
        %v1517 = vadd.f32 %v1325, 1.0
        %v1518 = vadd.f32 %v1326, 1.0
        %v1519 = vadd.f32 %v1327, 1.0
        %v1520 = vadd.f32 %v1328, 1.0
        %v1521 = vadd.f32 %v1329, 1.0
        %v1522 = vadd.f32 %v1330, 1.0
        %v1523 = vrcp.pop %v1459
        %v1524 = vrcp.pop %v1460
        %v1525 = vrcp.pop %v1461
        %v1526 = vrcp.pop %v1462
        %v1527 = vrcp.pop %v1463
        %v1528 = vrcp.pop %v1464
        %v1529 = vrcp.pop %v1465
        %v1530 = vrcp.pop %v1466
        %v1531 = vrcp.pop %v1467
        %v1532 = vrcp.pop %v1468
        %v1533 = vrcp.pop %v1469
        %v1534 = vrcp.pop %v1470
        %v1535 = vrcp.pop %v1471
        %v1536 = vrcp.pop %v1472
        %v1537 = vrcp.pop %v1473
        %v1538 = vrcp.pop %v1474
        %v1539 = vrcp.pop %v1475
        %v1540 = vrcp.pop %v1476
        %v1541 = vrcp.pop %v1477
        %v1542 = vrcp.pop %v1478
        %v1543 = vrcp.pop %v1479
        %v1544 = vrcp.pop %v1480
        %v1545 = vrcp.pop %v1481
        %v1546 = vrcp.pop %v1482
        %v1547 = vrcp.pop %v1483
        %v1548 = vrcp.pop %v1484
        %v1549 = vrcp.pop %v1485
        %v1550 = vrcp.pop %v1486
        %v1551 = vrcp.pop %v1487
        %v1552 = vrcp.pop %v1488
        %v1553 = vrcp.pop %v1489
        %v1554 = vrcp.pop %v1490
        %v1555 = vrcp.pop %v1491
        %v1556 = vrcp.pop %v1492
        %v1557 = vrcp.pop %v1493
        %v1558 = vrcp.pop %v1494
        %v1559 = vrcp.pop %v1495
        %v1560 = vrcp.pop %v1496
        %v1561 = vrcp.pop %v1497
        %v1562 = vrcp.pop %v1498
        %v1563 = vrcp.pop %v1499
        %v1564 = vrcp.pop %v1500
        %v1565 = vrcp.pop %v1501
        %v1566 = vrcp.pop %v1502
        %v1567 = vrcp.pop %v1503
        %v1568 = vrcp.pop %v1504
        %v1569 = vrcp.pop %v1505
        %v1570 = vrcp.pop %v1506
        %v1571 = vrcp.pop %v1507
        %v1572 = vrcp.pop %v1508
        %v1573 = vrcp.pop %v1509
        %v1574 = vrcp.pop %v1510
        %v1575 = vrcp.pop %v1511
        %v1576 = vrcp.pop %v1512
        %v1577 = vrcp.pop %v1513
        %v1578 = vrcp.pop %v1514
        %v1579 = vrcp.pop %v1515
        %v1580 = vrcp.pop %v1516
        %v1581 = vrcp.pop %v1517
        %v1582 = vrcp.pop %v1518
        %v1583 = vrcp.pop %v1519
        %v1584 = vrcp.pop %v1520
        %v1585 = vrcp.pop %v1521
        %v1586 = vrcp.pop %v1522
        %v1587 = vmul.f32 %v1395, %v1523
        %v1588 = vmul.f32 %v1396, %v1524
        %v1589 = vmul.f32 %v1397, %v1525
        %v1590 = vmul.f32 %v1398, %v1526
        %v1591 = vmul.f32 %v1399, %v1527
        %v1592 = vmul.f32 %v1400, %v1528
        %v1593 = vmul.f32 %v1401, %v1529
        %v1594 = vmul.f32 %v1402, %v1530
        %v1595 = vmul.f32 %v1403, %v1531
        %v1596 = vmul.f32 %v1404, %v1532
        %v1597 = vmul.f32 %v1405, %v1533
        %v1598 = vmul.f32 %v1406, %v1534
        %v1599 = vmul.f32 %v1407, %v1535
        %v1600 = vmul.f32 %v1408, %v1536
        %v1601 = vmul.f32 %v1409, %v1537
        %v1602 = vmul.f32 %v1410, %v1538
        %v1603 = vmul.f32 %v1411, %v1539
        %v1604 = vmul.f32 %v1412, %v1540
        %v1605 = vmul.f32 %v1413, %v1541
        %v1606 = vmul.f32 %v1414, %v1542
        %v1607 = vmul.f32 %v1415, %v1543
        %v1608 = vmul.f32 %v1416, %v1544
        %v1609 = vmul.f32 %v1417, %v1545
        %v1610 = vmul.f32 %v1418, %v1546
        %v1611 = vmul.f32 %v1419, %v1547
        %v1612 = vmul.f32 %v1420, %v1548
        %v1613 = vmul.f32 %v1421, %v1549
        %v1614 = vmul.f32 %v1422, %v1550
        %v1615 = vmul.f32 %v1423, %v1551
        %v1616 = vmul.f32 %v1424, %v1552
        %v1617 = vmul.f32 %v1425, %v1553
        %v1618 = vmul.f32 %v1426, %v1554
        %v1619 = vmul.f32 %v1427, %v1555
        %v1620 = vmul.f32 %v1428, %v1556
        %v1621 = vmul.f32 %v1429, %v1557
        %v1622 = vmul.f32 %v1430, %v1558
        %v1623 = vmul.f32 %v1431, %v1559
        %v1624 = vmul.f32 %v1432, %v1560
        %v1625 = vmul.f32 %v1433, %v1561
        %v1626 = vmul.f32 %v1434, %v1562
        %v1627 = vmul.f32 %v1435, %v1563
        %v1628 = vmul.f32 %v1436, %v1564
        %v1629 = vmul.f32 %v1437, %v1565
        %v1630 = vmul.f32 %v1438, %v1566
        %v1631 = vmul.f32 %v1439, %v1567
        %v1632 = vmul.f32 %v1440, %v1568
        %v1633 = vmul.f32 %v1441, %v1569
        %v1634 = vmul.f32 %v1442, %v1570
        %v1635 = vmul.f32 %v1443, %v1571
        %v1636 = vmul.f32 %v1444, %v1572
        %v1637 = vmul.f32 %v1445, %v1573
        %v1638 = vmul.f32 %v1446, %v1574
        %v1639 = vmul.f32 %v1447, %v1575
        %v1640 = vmul.f32 %v1448, %v1576
        %v1641 = vmul.f32 %v1449, %v1577
        %v1642 = vmul.f32 %v1450, %v1578
        %v1643 = vmul.f32 %v1451, %v1579
        %v1644 = vmul.f32 %v1452, %v1580
        %v1645 = vmul.f32 %v1453, %v1581
        %v1646 = vmul.f32 %v1454, %v1582
        %v1647 = vmul.f32 %v1455, %v1583
        %v1648 = vmul.f32 %v1456, %v1584
        %v1649 = vmul.f32 %v1457, %v1585
        %v1650 = vmul.f32 %v1458, %v1586
        %vm1651 = vcmp.gt.f32.partialorder %v754, 20.0
        %vm1652 = vcmp.gt.f32.partialorder %v756, 20.0
        %vm1653 = vcmp.gt.f32.partialorder %v827, 20.0
        %vm1654 = vcmp.gt.f32.partialorder %v829, 20.0
        %vm1655 = vcmp.gt.f32.partialorder %v900, 20.0
        %vm1656 = vcmp.gt.f32.partialorder %v902, 20.0
        %vm1657 = vcmp.gt.f32.partialorder %v973, 20.0
        %vm1658 = vcmp.gt.f32.partialorder %v975, 20.0
        %vm1659 = vcmp.gt.f32.partialorder %v758, 20.0
        %vm1660 = vcmp.gt.f32.partialorder %v760, 20.0
        %vm1661 = vcmp.gt.f32.partialorder %v831, 20.0
        %vm1662 = vcmp.gt.f32.partialorder %v833, 20.0
        %vm1663 = vcmp.gt.f32.partialorder %v904, 20.0
        %vm1664 = vcmp.gt.f32.partialorder %v906, 20.0
        %vm1665 = vcmp.gt.f32.partialorder %v977, 20.0
        %vm1666 = vcmp.gt.f32.partialorder %v979, 20.0
        %vm1667 = vcmp.gt.f32.partialorder %v764, 20.0
        %vm1668 = vcmp.gt.f32.partialorder %v766, 20.0
        %vm1669 = vcmp.gt.f32.partialorder %v837, 20.0
        %vm1670 = vcmp.gt.f32.partialorder %v839, 20.0
        %vm1671 = vcmp.gt.f32.partialorder %v910, 20.0
        %vm1672 = vcmp.gt.f32.partialorder %v912, 20.0
        %vm1673 = vcmp.gt.f32.partialorder %v983, 20.0
        %vm1674 = vcmp.gt.f32.partialorder %v985, 20.0
        %vm1675 = vcmp.gt.f32.partialorder %v768, 20.0
        %vm1676 = vcmp.gt.f32.partialorder %v770, 20.0
        %vm1677 = vcmp.gt.f32.partialorder %v841, 20.0
        %vm1678 = vcmp.gt.f32.partialorder %v843, 20.0
        %vm1679 = vcmp.gt.f32.partialorder %v914, 20.0
        %vm1680 = vcmp.gt.f32.partialorder %v916, 20.0
        %vm1681 = vcmp.gt.f32.partialorder %v987, 20.0
        %vm1682 = vcmp.gt.f32.partialorder %v989, 20.0
        %vm1683 = vcmp.gt.f32.partialorder %v774, 20.0
        %vm1684 = vcmp.gt.f32.partialorder %v776, 20.0
        %vm1685 = vcmp.gt.f32.partialorder %v847, 20.0
        %vm1686 = vcmp.gt.f32.partialorder %v849, 20.0
        %vm1687 = vcmp.gt.f32.partialorder %v920, 20.0
        %vm1688 = vcmp.gt.f32.partialorder %v922, 20.0
        %vm1689 = vcmp.gt.f32.partialorder %v993, 20.0
        %vm1690 = vcmp.gt.f32.partialorder %v995, 20.0
        %vm1691 = vcmp.gt.f32.partialorder %v778, 20.0
        %vm1692 = vcmp.gt.f32.partialorder %v780, 20.0
        %vm1693 = vcmp.gt.f32.partialorder %v851, 20.0
        %vm1694 = vcmp.gt.f32.partialorder %v853, 20.0
        %vm1695 = vcmp.gt.f32.partialorder %v924, 20.0
        %vm1696 = vcmp.gt.f32.partialorder %v926, 20.0
        %vm1697 = vcmp.gt.f32.partialorder %v997, 20.0
        %vm1698 = vcmp.gt.f32.partialorder %v999, 20.0
        %vm1699 = vcmp.gt.f32.partialorder %v784, 20.0
        %vm1700 = vcmp.gt.f32.partialorder %v786, 20.0
        %vm1701 = vcmp.gt.f32.partialorder %v857, 20.0
        %vm1702 = vcmp.gt.f32.partialorder %v859, 20.0
        %vm1703 = vcmp.gt.f32.partialorder %v930, 20.0
        %vm1704 = vcmp.gt.f32.partialorder %v932, 20.0
        %vm1705 = vcmp.gt.f32.partialorder %v1003, 20.0
        %vm1706 = vcmp.gt.f32.partialorder %v1005, 20.0
        %vm1707 = vcmp.gt.f32.partialorder %v788, 20.0
        %vm1708 = vcmp.gt.f32.partialorder %v790, 20.0
        %vm1709 = vcmp.gt.f32.partialorder %v861, 20.0
        %vm1710 = vcmp.gt.f32.partialorder %v863, 20.0
        %vm1711 = vcmp.gt.f32.partialorder %v934, 20.0
        %vm1712 = vcmp.gt.f32.partialorder %v936, 20.0
        %vm1713 = vcmp.gt.f32.partialorder %v1007, 20.0
        %vm1714 = vcmp.gt.f32.partialorder %v1009, 20.0
        %v1715 = vsel %vm1651, %v754, %v1587
        %v1716 = vsel %vm1652, %v756, %v1588
        %v1717 = vsel %vm1653, %v827, %v1589
        %v1718 = vsel %vm1654, %v829, %v1590
        %v1719 = vsel %vm1655, %v900, %v1591
        %v1720 = vsel %vm1656, %v902, %v1592
        %v1721 = vsel %vm1657, %v973, %v1593
        %v1722 = vsel %vm1658, %v975, %v1594
        %v1723 = vsel %vm1659, %v758, %v1595
        %v1724 = vsel %vm1660, %v760, %v1596
        %v1725 = vsel %vm1661, %v831, %v1597
        %v1726 = vsel %vm1662, %v833, %v1598
        %v1727 = vsel %vm1663, %v904, %v1599
        %v1728 = vsel %vm1664, %v906, %v1600
        %v1729 = vsel %vm1665, %v977, %v1601
        %v1730 = vsel %vm1666, %v979, %v1602
        %v1731 = vsel %vm1667, %v764, %v1603
        %v1732 = vsel %vm1668, %v766, %v1604
        %v1733 = vsel %vm1669, %v837, %v1605
        %v1734 = vsel %vm1670, %v839, %v1606
        %v1735 = vsel %vm1671, %v910, %v1607
        %v1736 = vsel %vm1672, %v912, %v1608
        %v1737 = vsel %vm1673, %v983, %v1609
        %v1738 = vsel %vm1674, %v985, %v1610
        %v1739 = vsel %vm1675, %v768, %v1611
        %v1740 = vsel %vm1676, %v770, %v1612
        %v1741 = vsel %vm1677, %v841, %v1613
        %v1742 = vsel %vm1678, %v843, %v1614
        %v1743 = vsel %vm1679, %v914, %v1615
        %v1744 = vsel %vm1680, %v916, %v1616
        %v1745 = vsel %vm1681, %v987, %v1617
        %v1746 = vsel %vm1682, %v989, %v1618
        %v1747 = vsel %vm1683, %v774, %v1619
        %v1748 = vsel %vm1684, %v776, %v1620
        %v1749 = vsel %vm1685, %v847, %v1621
        %v1750 = vsel %vm1686, %v849, %v1622
        %v1751 = vsel %vm1687, %v920, %v1623
        %v1752 = vsel %vm1688, %v922, %v1624
        %v1753 = vsel %vm1689, %v993, %v1625
        %v1754 = vsel %vm1690, %v995, %v1626
        %v1755 = vsel %vm1691, %v778, %v1627
        %v1756 = vsel %vm1692, %v780, %v1628
        %v1757 = vsel %vm1693, %v851, %v1629
        %v1758 = vsel %vm1694, %v853, %v1630
        %v1759 = vsel %vm1695, %v924, %v1631
        %v1760 = vsel %vm1696, %v926, %v1632
        %v1761 = vsel %vm1697, %v997, %v1633
        %v1762 = vsel %vm1698, %v999, %v1634
        %v1763 = vsel %vm1699, %v784, %v1635
        %v1764 = vsel %vm1700, %v786, %v1636
        %v1765 = vsel %vm1701, %v857, %v1637
        %v1766 = vsel %vm1702, %v859, %v1638
        %v1767 = vsel %vm1703, %v930, %v1639
        %v1768 = vsel %vm1704, %v932, %v1640
        %v1769 = vsel %vm1705, %v1003, %v1641
        %v1770 = vsel %vm1706, %v1005, %v1642
        %v1771 = vsel %vm1707, %v788, %v1643
        %v1772 = vsel %vm1708, %v790, %v1644
        %v1773 = vsel %vm1709, %v861, %v1645
        %v1774 = vsel %vm1710, %v863, %v1646
        %v1775 = vsel %vm1711, %v934, %v1647
        %v1776 = vsel %vm1712, %v936, %v1648
        %v1777 = vsel %vm1713, %v1007, %v1649
        %v1778 = vsel %vm1714, %v1009, %v1650
        %v1779 = vpack.c.bf16 %v1723, %v1715
        %v1780 = vpack.c.bf16 %v1724, %v1716
        %v1781 = vpack.c.bf16 %v1725, %v1717
        %v1782 = vpack.c.bf16 %v1726, %v1718
        %v1783 = vpack.c.bf16 %v1727, %v1719
        %v1784 = vpack.c.bf16 %v1728, %v1720
        %v1785 = vpack.c.bf16 %v1729, %v1721
        %v1786 = vpack.c.bf16 %v1730, %v1722
        %v1787 = vpack.c.bf16 %v1739, %v1731
        %v1788 = vpack.c.bf16 %v1740, %v1732
        %v1789 = vpack.c.bf16 %v1741, %v1733
        %v1790 = vpack.c.bf16 %v1742, %v1734
        %v1791 = vpack.c.bf16 %v1743, %v1735
        %v1792 = vpack.c.bf16 %v1744, %v1736
        %v1793 = vpack.c.bf16 %v1745, %v1737
        %v1794 = vpack.c.bf16 %v1746, %v1738
        %v1795 = vpack.c.bf16 %v1755, %v1747
        %v1796 = vpack.c.bf16 %v1756, %v1748
        %v1797 = vpack.c.bf16 %v1757, %v1749
        %v1798 = vpack.c.bf16 %v1758, %v1750
        %v1799 = vpack.c.bf16 %v1759, %v1751
        %v1800 = vpack.c.bf16 %v1760, %v1752
        %v1801 = vpack.c.bf16 %v1761, %v1753
        %v1802 = vpack.c.bf16 %v1762, %v1754
        %v1803 = vpack.c.bf16 %v1771, %v1763
        %v1804 = vpack.c.bf16 %v1772, %v1764
        %v1805 = vpack.c.bf16 %v1773, %v1765
        %v1806 = vpack.c.bf16 %v1774, %v1766
        %v1807 = vpack.c.bf16 %v1775, %v1767
        %v1808 = vpack.c.bf16 %v1776, %v1768
        %v1809 = vpack.c.bf16 %v1777, %v1769
        %v1810 = vpack.c.bf16 %v1778, %v1770
        %v1811 = vld [vmem:[%s3] sm:$0xff]
        %v1812 = vld [vmem:[%s3 + $0x8] sm:$0xff]
        %v1813 = vld [vmem:[%s3 + $0x10] sm:$0xff]
        %v1814 = vld [vmem:[%s3 + $0x18] sm:$0xff]
        %v1815 = vld [vmem:[%s3 + $0x20] sm:$0xff]
        %v1816 = vld [vmem:[%s3 + $0x28] sm:$0xff]
        %v1817 = vld [vmem:[%s3 + $0x30] sm:$0xff]
        %v1818 = vld [vmem:[%s3 + $0x38] sm:$0xff]
        %v1819 = vld [vmem:[%s3 + $0x40] sm:$0xff]
        %v1820 = vld [vmem:[%s3 + $0x48] sm:$0xff]
        %v1821 = vld [vmem:[%s3 + $0x50] sm:$0xff]
        %v1822 = vld [vmem:[%s3 + $0x58] sm:$0xff]
        %v1823 = vld [vmem:[%s3 + $0x60] sm:$0xff]
        %v1824 = vld [vmem:[%s3 + $0x68] sm:$0xff]
        %v1825 = vld [vmem:[%s3 + $0x70] sm:$0xff]
        %v1826 = vld [vmem:[%s3 + $0x78] sm:$0xff]
        %v1827 = vld [vmem:[%s3 + $0x80] sm:$0xff]
        %v1828 = vld [vmem:[%s3 + $0x88] sm:$0xff]
        %v1829 = vld [vmem:[%s3 + $0x90] sm:$0xff]
        %v1830 = vld [vmem:[%s3 + $0x98] sm:$0xff]
        %v1831 = vld [vmem:[%s3 + $0xa0] sm:$0xff]
        %v1832 = vld [vmem:[%s3 + $0xa8] sm:$0xff]
        %v1833 = vld [vmem:[%s3 + $0xb0] sm:$0xff]
        %v1834 = vld [vmem:[%s3 + $0xb8] sm:$0xff]
        %v1835 = vld [vmem:[%s3 + $0xc0] sm:$0xff]
        %v1836 = vld [vmem:[%s3 + $0xc8] sm:$0xff]
        %v1837 = vld [vmem:[%s3 + $0xd0] sm:$0xff]
        %v1838 = vld [vmem:[%s3 + $0xd8] sm:$0xff]
        %v1839 = vld [vmem:[%s3 + $0xe0] sm:$0xff]
        %v1840 = vld [vmem:[%s3 + $0xe8] sm:$0xff]
        %v1841 = vld [vmem:[%s3 + $0xf0] sm:$0xff]
        %v1842 = vld [vmem:[%s3 + $0xf8] sm:$0xff]
        %v1843 = vld [vmem:[%s3 + $0x100] sm:$0xff]
        %v1844 = vld [vmem:[%s3 + $0x108] sm:$0xff]
        %v1845 = vld [vmem:[%s3 + $0x110] sm:$0xff]
        %v1846 = vld [vmem:[%s3 + $0x118] sm:$0xff]
        %v1847 = vld [vmem:[%s3 + $0x120] sm:$0xff]
        %v1848 = vld [vmem:[%s3 + $0x128] sm:$0xff]
        %v1849 = vld [vmem:[%s3 + $0x130] sm:$0xff]
        %v1850 = vld [vmem:[%s3 + $0x138] sm:$0xff]
        %v1851 = vld [vmem:[%s3 + $0x140] sm:$0xff]
        %v1852 = vld [vmem:[%s3 + $0x148] sm:$0xff]
        %v1853 = vld [vmem:[%s3 + $0x150] sm:$0xff]
        %v1854 = vld [vmem:[%s3 + $0x158] sm:$0xff]
        %v1855 = vld [vmem:[%s3 + $0x160] sm:$0xff]
        %v1856 = vld [vmem:[%s3 + $0x168] sm:$0xff]
        %v1857 = vld [vmem:[%s3 + $0x170] sm:$0xff]
        %v1858 = vld [vmem:[%s3 + $0x178] sm:$0xff]
        %v1859 = vld [vmem:[%s3 + $0x180] sm:$0xff]
        %v1860 = vld [vmem:[%s3 + $0x188] sm:$0xff]
        %v1861 = vld [vmem:[%s3 + $0x190] sm:$0xff]
        %v1862 = vld [vmem:[%s3 + $0x198] sm:$0xff]
        %v1863 = vld [vmem:[%s3 + $0x1a0] sm:$0xff]
        %v1864 = vld [vmem:[%s3 + $0x1a8] sm:$0xff]
        %v1865 = vld [vmem:[%s3 + $0x1b0] sm:$0xff]
        %v1866 = vld [vmem:[%s3 + $0x1b8] sm:$0xff]
        %v1867 = vld [vmem:[%s3 + $0x1c0] sm:$0xff]
        %v1868 = vld [vmem:[%s3 + $0x1c8] sm:$0xff]
        %v1869 = vld [vmem:[%s3 + $0x1d0] sm:$0xff]
        %v1870 = vld [vmem:[%s3 + $0x1d8] sm:$0xff]
        %v1871 = vld [vmem:[%s3 + $0x1e0] sm:$0xff]
        %v1872 = vld [vmem:[%s3 + $0x1e8] sm:$0xff]
        %v1873 = vld [vmem:[%s3 + $0x1f0] sm:$0xff]
        %v1874 = vld [vmem:[%s3 + $0x1f8] sm:$0xff]
        %v1875 = vld [vmem:[%s3 + $0x200] sm:$0xff]
        %v1876 = vld [vmem:[%s3 + $0x208] sm:$0xff]
        %v1877 = vld [vmem:[%s3 + $0x210] sm:$0xff]
        %v1878 = vld [vmem:[%s3 + $0x218] sm:$0xff]
        %v1879 = vld [vmem:[%s3 + $0x220] sm:$0xff]
        %v1880 = vld [vmem:[%s3 + $0x228] sm:$0xff]
        %v1881 = vld [vmem:[%s3 + $0x230] sm:$0xff]
        %v1882 = vld [vmem:[%s3 + $0x238] sm:$0xff]
        %v1883 = vld [vmem:[%s3 + $0x240] sm:$0xff]
        %v1884 = vld [vmem:[%s3 + $0x248] sm:$0xff]
        %v1885 = vld [vmem:[%s3 + $0x250] sm:$0xff]
        %v1886 = vld [vmem:[%s3 + $0x258] sm:$0xff]
        %v1887 = vld [vmem:[%s3 + $0x260] sm:$0xff]
        %v1888 = vld [vmem:[%s3 + $0x268] sm:$0xff]
        %v1889 = vld [vmem:[%s3 + $0x270] sm:$0xff]
        %v1890 = vld [vmem:[%s3 + $0x278] sm:$0xff]
        %v1891 = vld [vmem:[%s3 + $0x280] sm:$0xff]
        %v1892 = vld [vmem:[%s3 + $0x288] sm:$0xff]
        %v1893 = vld [vmem:[%s3 + $0x290] sm:$0xff]
        %v1894 = vld [vmem:[%s3 + $0x298] sm:$0xff]
        %v1895 = vld [vmem:[%s3 + $0x2a0] sm:$0xff]
        %v1896 = vld [vmem:[%s3 + $0x2a8] sm:$0xff]
        %v1897 = vld [vmem:[%s3 + $0x2b0] sm:$0xff]
        %v1898 = vld [vmem:[%s3 + $0x2b8] sm:$0xff]
        %v1899 = vld [vmem:[%s3 + $0x2c0] sm:$0xff]
        %v1900 = vld [vmem:[%s3 + $0x2c8] sm:$0xff]
        %v1901 = vld [vmem:[%s3 + $0x2d0] sm:$0xff]
        %v1902 = vld [vmem:[%s3 + $0x2d8] sm:$0xff]
        %v1903 = vld [vmem:[%s3 + $0x2e0] sm:$0xff]
        %v1904 = vld [vmem:[%s3 + $0x2e8] sm:$0xff]
        %v1905 = vld [vmem:[%s3 + $0x2f0] sm:$0xff]
        %v1906 = vld [vmem:[%s3 + $0x2f8] sm:$0xff]
        %v1907 = vld [vmem:[%s3 + $0x300] sm:$0xff]
        %v1908 = vld [vmem:[%s3 + $0x308] sm:$0xff]
        %v1909 = vld [vmem:[%s3 + $0x310] sm:$0xff]
        %v1910 = vld [vmem:[%s3 + $0x318] sm:$0xff]
        %v1911 = vld [vmem:[%s3 + $0x320] sm:$0xff]
        %v1912 = vld [vmem:[%s3 + $0x328] sm:$0xff]
        %v1913 = vld [vmem:[%s3 + $0x330] sm:$0xff]
        %v1914 = vld [vmem:[%s3 + $0x338] sm:$0xff]
        %v1915 = vld [vmem:[%s3 + $0x340] sm:$0xff]
        %v1916 = vld [vmem:[%s3 + $0x348] sm:$0xff]
        %v1917 = vld [vmem:[%s3 + $0x350] sm:$0xff]
        %v1918 = vld [vmem:[%s3 + $0x358] sm:$0xff]
        %v1919 = vld [vmem:[%s3 + $0x360] sm:$0xff]
        %v1920 = vld [vmem:[%s3 + $0x368] sm:$0xff]
        %v1921 = vld [vmem:[%s3 + $0x370] sm:$0xff]
        %v1922 = vld [vmem:[%s3 + $0x378] sm:$0xff]
        %v1923 = vld [vmem:[%s3 + $0x380] sm:$0xff]
        %v1924 = vld [vmem:[%s3 + $0x388] sm:$0xff]
        %v1925 = vld [vmem:[%s3 + $0x390] sm:$0xff]
        %v1926 = vld [vmem:[%s3 + $0x398] sm:$0xff]
        %v1927 = vld [vmem:[%s3 + $0x3a0] sm:$0xff]
        %v1928 = vld [vmem:[%s3 + $0x3a8] sm:$0xff]
        %v1929 = vld [vmem:[%s3 + $0x3b0] sm:$0xff]
        %v1930 = vld [vmem:[%s3 + $0x3b8] sm:$0xff]
        %v1931 = vld [vmem:[%s3 + $0x3c0] sm:$0xff]
        %v1932 = vld [vmem:[%s3 + $0x3c8] sm:$0xff]
        %v1933 = vld [vmem:[%s3 + $0x3d0] sm:$0xff]
        %v1934 = vld [vmem:[%s3 + $0x3d8] sm:$0xff]
        %v1935 = vld [vmem:[%s3 + $0x3e0] sm:$0xff]
        %v1936 = vld [vmem:[%s3 + $0x3e8] sm:$0xff]
        %v1937 = vld [vmem:[%s3 + $0x3f0] sm:$0xff]
        %v1938 = vld [vmem:[%s3 + $0x3f8] sm:$0xff]
        %v1939 = vld [vmem:[%s3 + $0x400] sm:$0xff]
        %v1940 = vld [vmem:[%s3 + $0x408] sm:$0xff]
        %v1941 = vld [vmem:[%s3 + $0x410] sm:$0xff]
        %v1942 = vld [vmem:[%s3 + $0x418] sm:$0xff]
        %v1943 = vld [vmem:[%s3 + $0x420] sm:$0xff]
        %v1944 = vld [vmem:[%s3 + $0x428] sm:$0xff]
        %v1945 = vld [vmem:[%s3 + $0x430] sm:$0xff]
        %v1946 = vld [vmem:[%s3 + $0x438] sm:$0xff]
        %v1947 = vld [vmem:[%s3 + $0x440] sm:$0xff]
        %v1948 = vld [vmem:[%s3 + $0x448] sm:$0xff]
        %v1949 = vld [vmem:[%s3 + $0x450] sm:$0xff]
        %v1950 = vld [vmem:[%s3 + $0x458] sm:$0xff]
        %v1951 = vld [vmem:[%s3 + $0x460] sm:$0xff]
        %v1952 = vld [vmem:[%s3 + $0x468] sm:$0xff]
        %v1953 = vld [vmem:[%s3 + $0x470] sm:$0xff]
        %v1954 = vld [vmem:[%s3 + $0x478] sm:$0xff]
        %v1955 = vld [vmem:[%s3 + $0x480] sm:$0xff]
        %v1956 = vld [vmem:[%s3 + $0x488] sm:$0xff]
        %v1957 = vld [vmem:[%s3 + $0x490] sm:$0xff]
        %v1958 = vld [vmem:[%s3 + $0x498] sm:$0xff]
        %v1959 = vld [vmem:[%s3 + $0x4a0] sm:$0xff]
        %v1960 = vld [vmem:[%s3 + $0x4a8] sm:$0xff]
        %v1961 = vld [vmem:[%s3 + $0x4b0] sm:$0xff]
        %v1962 = vld [vmem:[%s3 + $0x4b8] sm:$0xff]
        %v1963 = vld [vmem:[%s3 + $0x4c0] sm:$0xff]
        %v1964 = vld [vmem:[%s3 + $0x4c8] sm:$0xff]
        %v1965 = vld [vmem:[%s3 + $0x4d0] sm:$0xff]
        %v1966 = vld [vmem:[%s3 + $0x4d8] sm:$0xff]
        %v1967 = vld [vmem:[%s3 + $0x4e0] sm:$0xff]
        %v1968 = vld [vmem:[%s3 + $0x4e8] sm:$0xff]
        %v1969 = vld [vmem:[%s3 + $0x4f0] sm:$0xff]
        %v1970 = vld [vmem:[%s3 + $0x4f8] sm:$0xff]
        %v1971 = vld [vmem:[%s3 + $0x500] sm:$0xff]
        %v1972 = vld [vmem:[%s3 + $0x508] sm:$0xff]
        %v1973 = vld [vmem:[%s3 + $0x510] sm:$0xff]
        %v1974 = vld [vmem:[%s3 + $0x518] sm:$0xff]
        %v1975 = vld [vmem:[%s3 + $0x520] sm:$0xff]
        %v1976 = vld [vmem:[%s3 + $0x528] sm:$0xff]
        %v1977 = vld [vmem:[%s3 + $0x530] sm:$0xff]
        %v1978 = vld [vmem:[%s3 + $0x538] sm:$0xff]
        %v1979 = vld [vmem:[%s3 + $0x540] sm:$0xff]
        %v1980 = vld [vmem:[%s3 + $0x548] sm:$0xff]
        %v1981 = vld [vmem:[%s3 + $0x550] sm:$0xff]
        %v1982 = vld [vmem:[%s3 + $0x558] sm:$0xff]
        %v1983 = vld [vmem:[%s3 + $0x560] sm:$0xff]
        %v1984 = vld [vmem:[%s3 + $0x568] sm:$0xff]
        %v1985 = vld [vmem:[%s3 + $0x570] sm:$0xff]
        %v1986 = vld [vmem:[%s3 + $0x578] sm:$0xff]
        %v1987 = vld [vmem:[%s3 + $0x580] sm:$0xff]
        %v1988 = vld [vmem:[%s3 + $0x588] sm:$0xff]
        %v1989 = vld [vmem:[%s3 + $0x590] sm:$0xff]
        %v1990 = vld [vmem:[%s3 + $0x598] sm:$0xff]
        %v1991 = vld [vmem:[%s3 + $0x5a0] sm:$0xff]
        %v1992 = vld [vmem:[%s3 + $0x5a8] sm:$0xff]
        %v1993 = vld [vmem:[%s3 + $0x5b0] sm:$0xff]
        %v1994 = vld [vmem:[%s3 + $0x5b8] sm:$0xff]
        %v1995 = vld [vmem:[%s3 + $0x5c0] sm:$0xff]
        %v1996 = vld [vmem:[%s3 + $0x5c8] sm:$0xff]
        %v1997 = vld [vmem:[%s3 + $0x5d0] sm:$0xff]
        %v1998 = vld [vmem:[%s3 + $0x5d8] sm:$0xff]
        %v1999 = vld [vmem:[%s3 + $0x5e0] sm:$0xff]
        %v2000 = vld [vmem:[%s3 + $0x5e8] sm:$0xff]
        %v2001 = vld [vmem:[%s3 + $0x5f0] sm:$0xff]
        %v2002 = vld [vmem:[%s3 + $0x5f8] sm:$0xff]
        %v2003 = vld [vmem:[%s3 + $0x600] sm:$0xff]
        %v2004 = vld [vmem:[%s3 + $0x608] sm:$0xff]
        %v2005 = vld [vmem:[%s3 + $0x610] sm:$0xff]
        %v2006 = vld [vmem:[%s3 + $0x618] sm:$0xff]
        %v2007 = vld [vmem:[%s3 + $0x620] sm:$0xff]
        %v2008 = vld [vmem:[%s3 + $0x628] sm:$0xff]
        %v2009 = vld [vmem:[%s3 + $0x630] sm:$0xff]
        %v2010 = vld [vmem:[%s3 + $0x638] sm:$0xff]
        %v2011 = vld [vmem:[%s3 + $0x640] sm:$0xff]
        %v2012 = vld [vmem:[%s3 + $0x648] sm:$0xff]
        %v2013 = vld [vmem:[%s3 + $0x650] sm:$0xff]
        %v2014 = vld [vmem:[%s3 + $0x658] sm:$0xff]
        %v2015 = vld [vmem:[%s3 + $0x660] sm:$0xff]
        %v2016 = vld [vmem:[%s3 + $0x668] sm:$0xff]
        %v2017 = vld [vmem:[%s3 + $0x670] sm:$0xff]
        %v2018 = vld [vmem:[%s3 + $0x678] sm:$0xff]
        %v2019 = vld [vmem:[%s3 + $0x680] sm:$0xff]
        %v2020 = vld [vmem:[%s3 + $0x688] sm:$0xff]
        %v2021 = vld [vmem:[%s3 + $0x690] sm:$0xff]
        %v2022 = vld [vmem:[%s3 + $0x698] sm:$0xff]
        %v2023 = vld [vmem:[%s3 + $0x6a0] sm:$0xff]
        %v2024 = vld [vmem:[%s3 + $0x6a8] sm:$0xff]
        %v2025 = vld [vmem:[%s3 + $0x6b0] sm:$0xff]
        %v2026 = vld [vmem:[%s3 + $0x6b8] sm:$0xff]
        %v2027 = vld [vmem:[%s3 + $0x6c0] sm:$0xff]
        %v2028 = vld [vmem:[%s3 + $0x6c8] sm:$0xff]
        %v2029 = vld [vmem:[%s3 + $0x6d0] sm:$0xff]
        %v2030 = vld [vmem:[%s3 + $0x6d8] sm:$0xff]
        %v2031 = vld [vmem:[%s3 + $0x6e0] sm:$0xff]
        %v2032 = vld [vmem:[%s3 + $0x6e8] sm:$0xff]
        %v2033 = vld [vmem:[%s3 + $0x6f0] sm:$0xff]
        %v2034 = vld [vmem:[%s3 + $0x6f8] sm:$0xff]
        %v2035 = vld [vmem:[%s3 + $0x700] sm:$0xff]
        %v2036 = vld [vmem:[%s3 + $0x708] sm:$0xff]
        %v2037 = vld [vmem:[%s3 + $0x710] sm:$0xff]
        %v2038 = vld [vmem:[%s3 + $0x718] sm:$0xff]
        %v2039 = vld [vmem:[%s3 + $0x720] sm:$0xff]
        %v2040 = vld [vmem:[%s3 + $0x728] sm:$0xff]
        %v2041 = vld [vmem:[%s3 + $0x730] sm:$0xff]
        %v2042 = vld [vmem:[%s3 + $0x738] sm:$0xff]
        %v2043 = vld [vmem:[%s3 + $0x740] sm:$0xff]
        %v2044 = vld [vmem:[%s3 + $0x748] sm:$0xff]
        %v2045 = vld [vmem:[%s3 + $0x750] sm:$0xff]
        %v2046 = vld [vmem:[%s3 + $0x758] sm:$0xff]
        %v2047 = vld [vmem:[%s3 + $0x760] sm:$0xff]
        %v2048 = vld [vmem:[%s3 + $0x768] sm:$0xff]
        %v2049 = vld [vmem:[%s3 + $0x770] sm:$0xff]
        %v2050 = vld [vmem:[%s3 + $0x778] sm:$0xff]
        %v2051 = vld [vmem:[%s3 + $0x780] sm:$0xff]
        %v2052 = vld [vmem:[%s3 + $0x788] sm:$0xff]
        %v2053 = vld [vmem:[%s3 + $0x790] sm:$0xff]
        %v2054 = vld [vmem:[%s3 + $0x798] sm:$0xff]
        %v2055 = vld [vmem:[%s3 + $0x7a0] sm:$0xff]
        %v2056 = vld [vmem:[%s3 + $0x7a8] sm:$0xff]
        %v2057 = vld [vmem:[%s3 + $0x7b0] sm:$0xff]
        %v2058 = vld [vmem:[%s3 + $0x7b8] sm:$0xff]
        %v2059 = vld [vmem:[%s3 + $0x7c0] sm:$0xff]
        %v2060 = vld [vmem:[%s3 + $0x7c8] sm:$0xff]
        %v2061 = vld [vmem:[%s3 + $0x7d0] sm:$0xff]
        %v2062 = vld [vmem:[%s3 + $0x7d8] sm:$0xff]
        %v2063 = vld [vmem:[%s3 + $0x7e0] sm:$0xff]
        %v2064 = vld [vmem:[%s3 + $0x7e8] sm:$0xff]
        %v2065 = vld [vmem:[%s3 + $0x7f0] sm:$0xff]
        %v2066 = vld [vmem:[%s3 + $0x7f8] sm:$0xff]
        %v2067 = vld [vmem:[%s4] sm:$0xf]
        %v2069 = vlaneseq
        %v2070 = vshrl.u32 %v2069, 7
        %v2071 = vsub.s32 0, %v2070
        %v2072 = vrot.slane %v2067, %v2071
        %v2073 = vlaneseq
        %v2074 = vshrl.u32 %v2073, 7
        %v2075 = vsub.s32 1, %v2074
        %v2076 = vrot.slane %v2067, %v2075
        %v2077 = vlaneseq
        %v2078 = vshrl.u32 %v2077, 7
        %v2079 = vsub.s32 2, %v2078
        %v2080 = vrot.slane %v2067, %v2079
        %v2081 = vlaneseq
        %v2082 = vshrl.u32 %v2081, 7
        %v2083 = vsub.s32 3, %v2082
        %v2084 = vrot.slane %v2067, %v2083
        %v2345 = vunpack.c.l.b16 %v1811
        %v2346 = vunpack.c.h.b16 %v1811
        %v2347 = vunpack.c.l.b16 %v1812
        %v2348 = vunpack.c.h.b16 %v1812
        %v2349 = vunpack.c.l.b16 %v1813
        %v2350 = vunpack.c.h.b16 %v1813
        %v2351 = vunpack.c.l.b16 %v1814
        %v2352 = vunpack.c.h.b16 %v1814
        %v2353 = vunpack.c.l.b16 %v1815
        %v2354 = vunpack.c.h.b16 %v1815
        %v2355 = vunpack.c.l.b16 %v1816
        %v2356 = vunpack.c.h.b16 %v1816
        %v2357 = vunpack.c.l.b16 %v1817
        %v2358 = vunpack.c.h.b16 %v1817
        %v2359 = vunpack.c.l.b16 %v1818
        %v2360 = vunpack.c.h.b16 %v1818
        %v2361 = vunpack.c.l.b16 %v1819
        %v2362 = vunpack.c.h.b16 %v1819
        %v2363 = vunpack.c.l.b16 %v1820
        %v2364 = vunpack.c.h.b16 %v1820
        %v2365 = vunpack.c.l.b16 %v1821
        %v2366 = vunpack.c.h.b16 %v1821
        %v2367 = vunpack.c.l.b16 %v1822
        %v2368 = vunpack.c.h.b16 %v1822
        %v2369 = vunpack.c.l.b16 %v1823
        %v2370 = vunpack.c.h.b16 %v1823
        %v2371 = vunpack.c.l.b16 %v1824
        %v2372 = vunpack.c.h.b16 %v1824
        %v2373 = vunpack.c.l.b16 %v1825
        %v2374 = vunpack.c.h.b16 %v1825
        %v2375 = vunpack.c.l.b16 %v1826
        %v2376 = vunpack.c.h.b16 %v1826
        %v2377 = vunpack.c.l.b16 %v1827
        %v2378 = vunpack.c.h.b16 %v1827
        %v2379 = vunpack.c.l.b16 %v1828
        %v2380 = vunpack.c.h.b16 %v1828
        %v2381 = vunpack.c.l.b16 %v1829
        %v2382 = vunpack.c.h.b16 %v1829
        %v2383 = vunpack.c.l.b16 %v1830
        %v2384 = vunpack.c.h.b16 %v1830
        %v2385 = vunpack.c.l.b16 %v1831
        %v2386 = vunpack.c.h.b16 %v1831
        %v2387 = vunpack.c.l.b16 %v1832
        %v2388 = vunpack.c.h.b16 %v1832
        %v2389 = vunpack.c.l.b16 %v1833
        %v2390 = vunpack.c.h.b16 %v1833
        %v2391 = vunpack.c.l.b16 %v1834
        %v2392 = vunpack.c.h.b16 %v1834
        %v2393 = vunpack.c.l.b16 %v1835
        %v2394 = vunpack.c.h.b16 %v1835
        %v2395 = vunpack.c.l.b16 %v1836
        %v2396 = vunpack.c.h.b16 %v1836
        %v2397 = vunpack.c.l.b16 %v1837
        %v2398 = vunpack.c.h.b16 %v1837
        %v2399 = vunpack.c.l.b16 %v1838
        %v2400 = vunpack.c.h.b16 %v1838
        %v2401 = vunpack.c.l.b16 %v1839
        %v2402 = vunpack.c.h.b16 %v1839
        %v2403 = vunpack.c.l.b16 %v1840
        %v2404 = vunpack.c.h.b16 %v1840
        %v2405 = vunpack.c.l.b16 %v1841
        %v2406 = vunpack.c.h.b16 %v1841
        %v2407 = vunpack.c.l.b16 %v1842
        %v2408 = vunpack.c.h.b16 %v1842
        %v2409 = vunpack.c.l.b16 %v1843
        %v2410 = vunpack.c.h.b16 %v1843
        %v2411 = vunpack.c.l.b16 %v1844
        %v2412 = vunpack.c.h.b16 %v1844
        %v2413 = vunpack.c.l.b16 %v1845
        %v2414 = vunpack.c.h.b16 %v1845
        %v2415 = vunpack.c.l.b16 %v1846
        %v2416 = vunpack.c.h.b16 %v1846
        %v2417 = vunpack.c.l.b16 %v1847
        %v2418 = vunpack.c.h.b16 %v1847
        %v2419 = vunpack.c.l.b16 %v1848
        %v2420 = vunpack.c.h.b16 %v1848
        %v2421 = vunpack.c.l.b16 %v1849
        %v2422 = vunpack.c.h.b16 %v1849
        %v2423 = vunpack.c.l.b16 %v1850
        %v2424 = vunpack.c.h.b16 %v1850
        %v2425 = vunpack.c.l.b16 %v1851
        %v2426 = vunpack.c.h.b16 %v1851
        %v2427 = vunpack.c.l.b16 %v1852
        %v2428 = vunpack.c.h.b16 %v1852
        %v2429 = vunpack.c.l.b16 %v1853
        %v2430 = vunpack.c.h.b16 %v1853
        %v2431 = vunpack.c.l.b16 %v1854
        %v2432 = vunpack.c.h.b16 %v1854
        %v2433 = vunpack.c.l.b16 %v1855
        %v2434 = vunpack.c.h.b16 %v1855
        %v2435 = vunpack.c.l.b16 %v1856
        %v2436 = vunpack.c.h.b16 %v1856
        %v2437 = vunpack.c.l.b16 %v1857
        %v2438 = vunpack.c.h.b16 %v1857
        %v2439 = vunpack.c.l.b16 %v1858
        %v2440 = vunpack.c.h.b16 %v1858
        %v2441 = vunpack.c.l.b16 %v1859
        %v2442 = vunpack.c.h.b16 %v1859
        %v2443 = vunpack.c.l.b16 %v1860
        %v2444 = vunpack.c.h.b16 %v1860
        %v2445 = vunpack.c.l.b16 %v1861
        %v2446 = vunpack.c.h.b16 %v1861
        %v2447 = vunpack.c.l.b16 %v1862
        %v2448 = vunpack.c.h.b16 %v1862
        %v2449 = vunpack.c.l.b16 %v1863
        %v2450 = vunpack.c.h.b16 %v1863
        %v2451 = vunpack.c.l.b16 %v1864
        %v2452 = vunpack.c.h.b16 %v1864
        %v2453 = vunpack.c.l.b16 %v1865
        %v2454 = vunpack.c.h.b16 %v1865
        %v2455 = vunpack.c.l.b16 %v1866
        %v2456 = vunpack.c.h.b16 %v1866
        %v2457 = vunpack.c.l.b16 %v1867
        %v2458 = vunpack.c.h.b16 %v1867
        %v2459 = vunpack.c.l.b16 %v1868
        %v2460 = vunpack.c.h.b16 %v1868
        %v2461 = vunpack.c.l.b16 %v1869
        %v2462 = vunpack.c.h.b16 %v1869
        %v2463 = vunpack.c.l.b16 %v1870
        %v2464 = vunpack.c.h.b16 %v1870
        %v2465 = vunpack.c.l.b16 %v1871
        %v2466 = vunpack.c.h.b16 %v1871
        %v2467 = vunpack.c.l.b16 %v1872
        %v2468 = vunpack.c.h.b16 %v1872
        %v2469 = vunpack.c.l.b16 %v1873
        %v2470 = vunpack.c.h.b16 %v1873
        %v2471 = vunpack.c.l.b16 %v1874
        %v2472 = vunpack.c.h.b16 %v1874
        %v2473 = vunpack.c.l.b16 %v1875
        %v2474 = vunpack.c.h.b16 %v1875
        %v2475 = vunpack.c.l.b16 %v1876
        %v2476 = vunpack.c.h.b16 %v1876
        %v2477 = vunpack.c.l.b16 %v1877
        %v2478 = vunpack.c.h.b16 %v1877
        %v2479 = vunpack.c.l.b16 %v1878
        %v2480 = vunpack.c.h.b16 %v1878
        %v2481 = vunpack.c.l.b16 %v1879
        %v2482 = vunpack.c.h.b16 %v1879
        %v2483 = vunpack.c.l.b16 %v1880
        %v2484 = vunpack.c.h.b16 %v1880
        %v2485 = vunpack.c.l.b16 %v1881
        %v2486 = vunpack.c.h.b16 %v1881
        %v2487 = vunpack.c.l.b16 %v1882
        %v2488 = vunpack.c.h.b16 %v1882
        %v2489 = vunpack.c.l.b16 %v1883
        %v2490 = vunpack.c.h.b16 %v1883
        %v2491 = vunpack.c.l.b16 %v1884
        %v2492 = vunpack.c.h.b16 %v1884
        %v2493 = vunpack.c.l.b16 %v1885
        %v2494 = vunpack.c.h.b16 %v1885
        %v2495 = vunpack.c.l.b16 %v1886
        %v2496 = vunpack.c.h.b16 %v1886
        %v2497 = vunpack.c.l.b16 %v1887
        %v2498 = vunpack.c.h.b16 %v1887
        %v2499 = vunpack.c.l.b16 %v1888
        %v2500 = vunpack.c.h.b16 %v1888
        %v2501 = vunpack.c.l.b16 %v1889
        %v2502 = vunpack.c.h.b16 %v1889
        %v2503 = vunpack.c.l.b16 %v1890
        %v2504 = vunpack.c.h.b16 %v1890
        %v2505 = vunpack.c.l.b16 %v1891
        %v2506 = vunpack.c.h.b16 %v1891
        %v2507 = vunpack.c.l.b16 %v1892
        %v2508 = vunpack.c.h.b16 %v1892
        %v2509 = vunpack.c.l.b16 %v1893
        %v2510 = vunpack.c.h.b16 %v1893
        %v2511 = vunpack.c.l.b16 %v1894
        %v2512 = vunpack.c.h.b16 %v1894
        %v2513 = vunpack.c.l.b16 %v1895
        %v2514 = vunpack.c.h.b16 %v1895
        %v2515 = vunpack.c.l.b16 %v1896
        %v2516 = vunpack.c.h.b16 %v1896
        %v2517 = vunpack.c.l.b16 %v1897
        %v2518 = vunpack.c.h.b16 %v1897
        %v2519 = vunpack.c.l.b16 %v1898
        %v2520 = vunpack.c.h.b16 %v1898
        %v2521 = vunpack.c.l.b16 %v1899
        %v2522 = vunpack.c.h.b16 %v1899
        %v2523 = vunpack.c.l.b16 %v1900
        %v2524 = vunpack.c.h.b16 %v1900
        %v2525 = vunpack.c.l.b16 %v1901
        %v2526 = vunpack.c.h.b16 %v1901
        %v2527 = vunpack.c.l.b16 %v1902
        %v2528 = vunpack.c.h.b16 %v1902
        %v2529 = vunpack.c.l.b16 %v1903
        %v2530 = vunpack.c.h.b16 %v1903
        %v2531 = vunpack.c.l.b16 %v1904
        %v2532 = vunpack.c.h.b16 %v1904
        %v2533 = vunpack.c.l.b16 %v1905
        %v2534 = vunpack.c.h.b16 %v1905
        %v2535 = vunpack.c.l.b16 %v1906
        %v2536 = vunpack.c.h.b16 %v1906
        %v2537 = vunpack.c.l.b16 %v1907
        %v2538 = vunpack.c.h.b16 %v1907
        %v2539 = vunpack.c.l.b16 %v1908
        %v2540 = vunpack.c.h.b16 %v1908
        %v2541 = vunpack.c.l.b16 %v1909
        %v2542 = vunpack.c.h.b16 %v1909
        %v2543 = vunpack.c.l.b16 %v1910
        %v2544 = vunpack.c.h.b16 %v1910
        %v2545 = vunpack.c.l.b16 %v1911
        %v2546 = vunpack.c.h.b16 %v1911
        %v2547 = vunpack.c.l.b16 %v1912
        %v2548 = vunpack.c.h.b16 %v1912
        %v2549 = vunpack.c.l.b16 %v1913
        %v2550 = vunpack.c.h.b16 %v1913
        %v2551 = vunpack.c.l.b16 %v1914
        %v2552 = vunpack.c.h.b16 %v1914
        %v2553 = vunpack.c.l.b16 %v1915
        %v2554 = vunpack.c.h.b16 %v1915
        %v2555 = vunpack.c.l.b16 %v1916
        %v2556 = vunpack.c.h.b16 %v1916
        %v2557 = vunpack.c.l.b16 %v1917
        %v2558 = vunpack.c.h.b16 %v1917
        %v2559 = vunpack.c.l.b16 %v1918
        %v2560 = vunpack.c.h.b16 %v1918
        %v2561 = vunpack.c.l.b16 %v1919
        %v2562 = vunpack.c.h.b16 %v1919
        %v2563 = vunpack.c.l.b16 %v1920
        %v2564 = vunpack.c.h.b16 %v1920
        %v2565 = vunpack.c.l.b16 %v1921
        %v2566 = vunpack.c.h.b16 %v1921
        %v2567 = vunpack.c.l.b16 %v1922
        %v2568 = vunpack.c.h.b16 %v1922
        %v2569 = vunpack.c.l.b16 %v1923
        %v2570 = vunpack.c.h.b16 %v1923
        %v2571 = vunpack.c.l.b16 %v1924
        %v2572 = vunpack.c.h.b16 %v1924
        %v2573 = vunpack.c.l.b16 %v1925
        %v2574 = vunpack.c.h.b16 %v1925
        %v2575 = vunpack.c.l.b16 %v1926
        %v2576 = vunpack.c.h.b16 %v1926
        %v2577 = vunpack.c.l.b16 %v1927
        %v2578 = vunpack.c.h.b16 %v1927
        %v2579 = vunpack.c.l.b16 %v1928
        %v2580 = vunpack.c.h.b16 %v1928
        %v2581 = vunpack.c.l.b16 %v1929
        %v2582 = vunpack.c.h.b16 %v1929
        %v2583 = vunpack.c.l.b16 %v1930
        %v2584 = vunpack.c.h.b16 %v1930
        %v2585 = vunpack.c.l.b16 %v1931
        %v2586 = vunpack.c.h.b16 %v1931
        %v2587 = vunpack.c.l.b16 %v1932
        %v2588 = vunpack.c.h.b16 %v1932
        %v2589 = vunpack.c.l.b16 %v1933
        %v2590 = vunpack.c.h.b16 %v1933
        %v2591 = vunpack.c.l.b16 %v1934
        %v2592 = vunpack.c.h.b16 %v1934
        %v2593 = vunpack.c.l.b16 %v1935
        %v2594 = vunpack.c.h.b16 %v1935
        %v2595 = vunpack.c.l.b16 %v1936
        %v2596 = vunpack.c.h.b16 %v1936
        %v2597 = vunpack.c.l.b16 %v1937
        %v2598 = vunpack.c.h.b16 %v1937
        %v2599 = vunpack.c.l.b16 %v1938
        %v2600 = vunpack.c.h.b16 %v1938
        %v2601 = vunpack.c.l.b16 %v1939
        %v2602 = vunpack.c.h.b16 %v1939
        %v2603 = vunpack.c.l.b16 %v1940
        %v2604 = vunpack.c.h.b16 %v1940
        %v2605 = vunpack.c.l.b16 %v1941
        %v2606 = vunpack.c.h.b16 %v1941
        %v2607 = vunpack.c.l.b16 %v1942
        %v2608 = vunpack.c.h.b16 %v1942
        %v2609 = vunpack.c.l.b16 %v1943
        %v2610 = vunpack.c.h.b16 %v1943
        %v2611 = vunpack.c.l.b16 %v1944
        %v2612 = vunpack.c.h.b16 %v1944
        %v2613 = vunpack.c.l.b16 %v1945
        %v2614 = vunpack.c.h.b16 %v1945
        %v2615 = vunpack.c.l.b16 %v1946
        %v2616 = vunpack.c.h.b16 %v1946
        %v2617 = vunpack.c.l.b16 %v1947
        %v2618 = vunpack.c.h.b16 %v1947
        %v2619 = vunpack.c.l.b16 %v1948
        %v2620 = vunpack.c.h.b16 %v1948
        %v2621 = vunpack.c.l.b16 %v1949
        %v2622 = vunpack.c.h.b16 %v1949
        %v2623 = vunpack.c.l.b16 %v1950
        %v2624 = vunpack.c.h.b16 %v1950
        %v2625 = vunpack.c.l.b16 %v1951
        %v2626 = vunpack.c.h.b16 %v1951
        %v2627 = vunpack.c.l.b16 %v1952
        %v2628 = vunpack.c.h.b16 %v1952
        %v2629 = vunpack.c.l.b16 %v1953
        %v2630 = vunpack.c.h.b16 %v1953
        %v2631 = vunpack.c.l.b16 %v1954
        %v2632 = vunpack.c.h.b16 %v1954
        %v2633 = vunpack.c.l.b16 %v1955
        %v2634 = vunpack.c.h.b16 %v1955
        %v2635 = vunpack.c.l.b16 %v1956
        %v2636 = vunpack.c.h.b16 %v1956
        %v2637 = vunpack.c.l.b16 %v1957
        %v2638 = vunpack.c.h.b16 %v1957
        %v2639 = vunpack.c.l.b16 %v1958
        %v2640 = vunpack.c.h.b16 %v1958
        %v2641 = vunpack.c.l.b16 %v1959
        %v2642 = vunpack.c.h.b16 %v1959
        %v2643 = vunpack.c.l.b16 %v1960
        %v2644 = vunpack.c.h.b16 %v1960
        %v2645 = vunpack.c.l.b16 %v1961
        %v2646 = vunpack.c.h.b16 %v1961
        %v2647 = vunpack.c.l.b16 %v1962
        %v2648 = vunpack.c.h.b16 %v1962
        %v2649 = vunpack.c.l.b16 %v1963
        %v2650 = vunpack.c.h.b16 %v1963
        %v2651 = vunpack.c.l.b16 %v1964
        %v2652 = vunpack.c.h.b16 %v1964
        %v2653 = vunpack.c.l.b16 %v1965
        %v2654 = vunpack.c.h.b16 %v1965
        %v2655 = vunpack.c.l.b16 %v1966
        %v2656 = vunpack.c.h.b16 %v1966
        %v2657 = vunpack.c.l.b16 %v1967
        %v2658 = vunpack.c.h.b16 %v1967
        %v2659 = vunpack.c.l.b16 %v1968
        %v2660 = vunpack.c.h.b16 %v1968
        %v2661 = vunpack.c.l.b16 %v1969
        %v2662 = vunpack.c.h.b16 %v1969
        %v2663 = vunpack.c.l.b16 %v1970
        %v2664 = vunpack.c.h.b16 %v1970
        %v2665 = vunpack.c.l.b16 %v1971
        %v2666 = vunpack.c.h.b16 %v1971
        %v2667 = vunpack.c.l.b16 %v1972
        %v2668 = vunpack.c.h.b16 %v1972
        %v2669 = vunpack.c.l.b16 %v1973
        %v2670 = vunpack.c.h.b16 %v1973
        %v2671 = vunpack.c.l.b16 %v1974
        %v2672 = vunpack.c.h.b16 %v1974
        %v2673 = vunpack.c.l.b16 %v1975
        %v2674 = vunpack.c.h.b16 %v1975
        %v2675 = vunpack.c.l.b16 %v1976
        %v2676 = vunpack.c.h.b16 %v1976
        %v2677 = vunpack.c.l.b16 %v1977
        %v2678 = vunpack.c.h.b16 %v1977
        %v2679 = vunpack.c.l.b16 %v1978
        %v2680 = vunpack.c.h.b16 %v1978
        %v2681 = vunpack.c.l.b16 %v1979
        %v2682 = vunpack.c.h.b16 %v1979
        %v2683 = vunpack.c.l.b16 %v1980
        %v2684 = vunpack.c.h.b16 %v1980
        %v2685 = vunpack.c.l.b16 %v1981
        %v2686 = vunpack.c.h.b16 %v1981
        %v2687 = vunpack.c.l.b16 %v1982
        %v2688 = vunpack.c.h.b16 %v1982
        %v2689 = vunpack.c.l.b16 %v1983
        %v2690 = vunpack.c.h.b16 %v1983
        %v2691 = vunpack.c.l.b16 %v1984
        %v2692 = vunpack.c.h.b16 %v1984
        %v2693 = vunpack.c.l.b16 %v1985
        %v2694 = vunpack.c.h.b16 %v1985
        %v2695 = vunpack.c.l.b16 %v1986
        %v2696 = vunpack.c.h.b16 %v1986
        %v2697 = vunpack.c.l.b16 %v1987
        %v2698 = vunpack.c.h.b16 %v1987
        %v2699 = vunpack.c.l.b16 %v1988
        %v2700 = vunpack.c.h.b16 %v1988
        %v2701 = vunpack.c.l.b16 %v1989
        %v2702 = vunpack.c.h.b16 %v1989
        %v2703 = vunpack.c.l.b16 %v1990
        %v2704 = vunpack.c.h.b16 %v1990
        %v2705 = vunpack.c.l.b16 %v1991
        %v2706 = vunpack.c.h.b16 %v1991
        %v2707 = vunpack.c.l.b16 %v1992
        %v2708 = vunpack.c.h.b16 %v1992
        %v2709 = vunpack.c.l.b16 %v1993
        %v2710 = vunpack.c.h.b16 %v1993
        %v2711 = vunpack.c.l.b16 %v1994
        %v2712 = vunpack.c.h.b16 %v1994
        %v2713 = vunpack.c.l.b16 %v1995
        %v2714 = vunpack.c.h.b16 %v1995
        %v2715 = vunpack.c.l.b16 %v1996
        %v2716 = vunpack.c.h.b16 %v1996
        %v2717 = vunpack.c.l.b16 %v1997
        %v2718 = vunpack.c.h.b16 %v1997
        %v2719 = vunpack.c.l.b16 %v1998
        %v2720 = vunpack.c.h.b16 %v1998
        %v2721 = vunpack.c.l.b16 %v1999
        %v2722 = vunpack.c.h.b16 %v1999
        %v2723 = vunpack.c.l.b16 %v2000
        %v2724 = vunpack.c.h.b16 %v2000
        %v2725 = vunpack.c.l.b16 %v2001
        %v2726 = vunpack.c.h.b16 %v2001
        %v2727 = vunpack.c.l.b16 %v2002
        %v2728 = vunpack.c.h.b16 %v2002
        %v2729 = vunpack.c.l.b16 %v2003
        %v2730 = vunpack.c.h.b16 %v2003
        %v2731 = vunpack.c.l.b16 %v2004
        %v2732 = vunpack.c.h.b16 %v2004
        %v2733 = vunpack.c.l.b16 %v2005
        %v2734 = vunpack.c.h.b16 %v2005
        %v2735 = vunpack.c.l.b16 %v2006
        %v2736 = vunpack.c.h.b16 %v2006
        %v2737 = vunpack.c.l.b16 %v2007
        %v2738 = vunpack.c.h.b16 %v2007
        %v2739 = vunpack.c.l.b16 %v2008
        %v2740 = vunpack.c.h.b16 %v2008
        %v2741 = vunpack.c.l.b16 %v2009
        %v2742 = vunpack.c.h.b16 %v2009
        %v2743 = vunpack.c.l.b16 %v2010
        %v2744 = vunpack.c.h.b16 %v2010
        %v2745 = vunpack.c.l.b16 %v2011
        %v2746 = vunpack.c.h.b16 %v2011
        %v2747 = vunpack.c.l.b16 %v2012
        %v2748 = vunpack.c.h.b16 %v2012
        %v2749 = vunpack.c.l.b16 %v2013
        %v2750 = vunpack.c.h.b16 %v2013
        %v2751 = vunpack.c.l.b16 %v2014
        %v2752 = vunpack.c.h.b16 %v2014
        %v2753 = vunpack.c.l.b16 %v2015
        %v2754 = vunpack.c.h.b16 %v2015
        %v2755 = vunpack.c.l.b16 %v2016
        %v2756 = vunpack.c.h.b16 %v2016
        %v2757 = vunpack.c.l.b16 %v2017
        %v2758 = vunpack.c.h.b16 %v2017
        %v2759 = vunpack.c.l.b16 %v2018
        %v2760 = vunpack.c.h.b16 %v2018
        %v2761 = vunpack.c.l.b16 %v2019
        %v2762 = vunpack.c.h.b16 %v2019
        %v2763 = vunpack.c.l.b16 %v2020
        %v2764 = vunpack.c.h.b16 %v2020
        %v2765 = vunpack.c.l.b16 %v2021
        %v2766 = vunpack.c.h.b16 %v2021
        %v2767 = vunpack.c.l.b16 %v2022
        %v2768 = vunpack.c.h.b16 %v2022
        %v2769 = vunpack.c.l.b16 %v2023
        %v2770 = vunpack.c.h.b16 %v2023
        %v2771 = vunpack.c.l.b16 %v2024
        %v2772 = vunpack.c.h.b16 %v2024
        %v2773 = vunpack.c.l.b16 %v2025
        %v2774 = vunpack.c.h.b16 %v2025
        %v2775 = vunpack.c.l.b16 %v2026
        %v2776 = vunpack.c.h.b16 %v2026
        %v2777 = vunpack.c.l.b16 %v2027
        %v2778 = vunpack.c.h.b16 %v2027
        %v2779 = vunpack.c.l.b16 %v2028
        %v2780 = vunpack.c.h.b16 %v2028
        %v2781 = vunpack.c.l.b16 %v2029
        %v2782 = vunpack.c.h.b16 %v2029
        %v2783 = vunpack.c.l.b16 %v2030
        %v2784 = vunpack.c.h.b16 %v2030
        %v2785 = vunpack.c.l.b16 %v2031
        %v2786 = vunpack.c.h.b16 %v2031
        %v2787 = vunpack.c.l.b16 %v2032
        %v2788 = vunpack.c.h.b16 %v2032
        %v2789 = vunpack.c.l.b16 %v2033
        %v2790 = vunpack.c.h.b16 %v2033
        %v2791 = vunpack.c.l.b16 %v2034
        %v2792 = vunpack.c.h.b16 %v2034
        %v2793 = vunpack.c.l.b16 %v2035
        %v2794 = vunpack.c.h.b16 %v2035
        %v2795 = vunpack.c.l.b16 %v2036
        %v2796 = vunpack.c.h.b16 %v2036
        %v2797 = vunpack.c.l.b16 %v2037
        %v2798 = vunpack.c.h.b16 %v2037
        %v2799 = vunpack.c.l.b16 %v2038
        %v2800 = vunpack.c.h.b16 %v2038
        %v2801 = vunpack.c.l.b16 %v2039
        %v2802 = vunpack.c.h.b16 %v2039
        %v2803 = vunpack.c.l.b16 %v2040
        %v2804 = vunpack.c.h.b16 %v2040
        %v2805 = vunpack.c.l.b16 %v2041
        %v2806 = vunpack.c.h.b16 %v2041
        %v2807 = vunpack.c.l.b16 %v2042
        %v2808 = vunpack.c.h.b16 %v2042
        %v2809 = vunpack.c.l.b16 %v2043
        %v2810 = vunpack.c.h.b16 %v2043
        %v2811 = vunpack.c.l.b16 %v2044
        %v2812 = vunpack.c.h.b16 %v2044
        %v2813 = vunpack.c.l.b16 %v2045
        %v2814 = vunpack.c.h.b16 %v2045
        %v2815 = vunpack.c.l.b16 %v2046
        %v2816 = vunpack.c.h.b16 %v2046
        %v2817 = vunpack.c.l.b16 %v2047
        %v2818 = vunpack.c.h.b16 %v2047
        %v2819 = vunpack.c.l.b16 %v2048
        %v2820 = vunpack.c.h.b16 %v2048
        %v2821 = vunpack.c.l.b16 %v2049
        %v2822 = vunpack.c.h.b16 %v2049
        %v2823 = vunpack.c.l.b16 %v2050
        %v2824 = vunpack.c.h.b16 %v2050
        %v2825 = vunpack.c.l.b16 %v2051
        %v2826 = vunpack.c.h.b16 %v2051
        %v2827 = vunpack.c.l.b16 %v2052
        %v2828 = vunpack.c.h.b16 %v2052
        %v2829 = vunpack.c.l.b16 %v2053
        %v2830 = vunpack.c.h.b16 %v2053
        %v2831 = vunpack.c.l.b16 %v2054
        %v2832 = vunpack.c.h.b16 %v2054
        %v2833 = vunpack.c.l.b16 %v2055
        %v2834 = vunpack.c.h.b16 %v2055
        %v2835 = vunpack.c.l.b16 %v2056
        %v2836 = vunpack.c.h.b16 %v2056
        %v2837 = vunpack.c.l.b16 %v2057
        %v2838 = vunpack.c.h.b16 %v2057
        %v2839 = vunpack.c.l.b16 %v2058
        %v2840 = vunpack.c.h.b16 %v2058
        %v2841 = vunpack.c.l.b16 %v2059
        %v2842 = vunpack.c.h.b16 %v2059
        %v2843 = vunpack.c.l.b16 %v2060
        %v2844 = vunpack.c.h.b16 %v2060
        %v2845 = vunpack.c.l.b16 %v2061
        %v2846 = vunpack.c.h.b16 %v2061
        %v2847 = vunpack.c.l.b16 %v2062
        %v2848 = vunpack.c.h.b16 %v2062
        %v2849 = vunpack.c.l.b16 %v2063
        %v2850 = vunpack.c.h.b16 %v2063
        %v2851 = vunpack.c.l.b16 %v2064
        %v2852 = vunpack.c.h.b16 %v2064
        %v2853 = vunpack.c.l.b16 %v2065
        %v2854 = vunpack.c.h.b16 %v2065
        %v2855 = vunpack.c.l.b16 %v2066
        %v2856 = vunpack.c.h.b16 %v2066
        %v2857 = vpack.c.b16 %v2349, %v2345
        %v2858 = vpack.c.b16 %v2350, %v2346
        %v2859 = vpack.c.b16 %v2351, %v2347
        %v2860 = vpack.c.b16 %v2352, %v2348
        %v2861 = vpack.c.b16 %v2357, %v2353
        %v2862 = vpack.c.b16 %v2358, %v2354
        %v2863 = vpack.c.b16 %v2359, %v2355
        %v2864 = vpack.c.b16 %v2360, %v2356
        %v2865 = vpack.c.b16 %v2365, %v2361
        %v2866 = vpack.c.b16 %v2366, %v2362
        %v2867 = vpack.c.b16 %v2367, %v2363
        %v2868 = vpack.c.b16 %v2368, %v2364
        %v2869 = vpack.c.b16 %v2373, %v2369
        %v2870 = vpack.c.b16 %v2374, %v2370
        %v2871 = vpack.c.b16 %v2375, %v2371
        %v2872 = vpack.c.b16 %v2376, %v2372
        %v2873 = vpack.c.b16 %v2381, %v2377
        %v2874 = vpack.c.b16 %v2382, %v2378
        %v2875 = vpack.c.b16 %v2383, %v2379
        %v2876 = vpack.c.b16 %v2384, %v2380
        %v2877 = vpack.c.b16 %v2389, %v2385
        %v2878 = vpack.c.b16 %v2390, %v2386
        %v2879 = vpack.c.b16 %v2391, %v2387
        %v2880 = vpack.c.b16 %v2392, %v2388
        %v2881 = vpack.c.b16 %v2397, %v2393
        %v2882 = vpack.c.b16 %v2398, %v2394
        %v2883 = vpack.c.b16 %v2399, %v2395
        %v2884 = vpack.c.b16 %v2400, %v2396
        %v2885 = vpack.c.b16 %v2405, %v2401
        %v2886 = vpack.c.b16 %v2406, %v2402
        %v2887 = vpack.c.b16 %v2407, %v2403
        %v2888 = vpack.c.b16 %v2408, %v2404
        %v2889 = vpack.c.b16 %v2413, %v2409
        %v2890 = vpack.c.b16 %v2414, %v2410
        %v2891 = vpack.c.b16 %v2415, %v2411
        %v2892 = vpack.c.b16 %v2416, %v2412
        %v2893 = vpack.c.b16 %v2421, %v2417
        %v2894 = vpack.c.b16 %v2422, %v2418
        %v2895 = vpack.c.b16 %v2423, %v2419
        %v2896 = vpack.c.b16 %v2424, %v2420
        %v2897 = vpack.c.b16 %v2429, %v2425
        %v2898 = vpack.c.b16 %v2430, %v2426
        %v2899 = vpack.c.b16 %v2431, %v2427
        %v2900 = vpack.c.b16 %v2432, %v2428
        %v2901 = vpack.c.b16 %v2437, %v2433
        %v2902 = vpack.c.b16 %v2438, %v2434
        %v2903 = vpack.c.b16 %v2439, %v2435
        %v2904 = vpack.c.b16 %v2440, %v2436
        %v2905 = vpack.c.b16 %v2445, %v2441
        %v2906 = vpack.c.b16 %v2446, %v2442
        %v2907 = vpack.c.b16 %v2447, %v2443
        %v2908 = vpack.c.b16 %v2448, %v2444
        %v2909 = vpack.c.b16 %v2453, %v2449
        %v2910 = vpack.c.b16 %v2454, %v2450
        %v2911 = vpack.c.b16 %v2455, %v2451
        %v2912 = vpack.c.b16 %v2456, %v2452
        %v2913 = vpack.c.b16 %v2461, %v2457
        %v2914 = vpack.c.b16 %v2462, %v2458
        %v2915 = vpack.c.b16 %v2463, %v2459
        %v2916 = vpack.c.b16 %v2464, %v2460
        %v2917 = vpack.c.b16 %v2469, %v2465
        %v2918 = vpack.c.b16 %v2470, %v2466
        %v2919 = vpack.c.b16 %v2471, %v2467
        %v2920 = vpack.c.b16 %v2472, %v2468
        %v2921 = vpack.c.b16 %v2477, %v2473
        %v2922 = vpack.c.b16 %v2478, %v2474
        %v2923 = vpack.c.b16 %v2479, %v2475
        %v2924 = vpack.c.b16 %v2480, %v2476
        %v2925 = vpack.c.b16 %v2485, %v2481
        %v2926 = vpack.c.b16 %v2486, %v2482
        %v2927 = vpack.c.b16 %v2487, %v2483
        %v2928 = vpack.c.b16 %v2488, %v2484
        %v2929 = vpack.c.b16 %v2493, %v2489
        %v2930 = vpack.c.b16 %v2494, %v2490
        %v2931 = vpack.c.b16 %v2495, %v2491
        %v2932 = vpack.c.b16 %v2496, %v2492
        %v2933 = vpack.c.b16 %v2501, %v2497
        %v2934 = vpack.c.b16 %v2502, %v2498
        %v2935 = vpack.c.b16 %v2503, %v2499
        %v2936 = vpack.c.b16 %v2504, %v2500
        %v2937 = vpack.c.b16 %v2509, %v2505
        %v2938 = vpack.c.b16 %v2510, %v2506
        %v2939 = vpack.c.b16 %v2511, %v2507
        %v2940 = vpack.c.b16 %v2512, %v2508
        %v2941 = vpack.c.b16 %v2517, %v2513
        %v2942 = vpack.c.b16 %v2518, %v2514
        %v2943 = vpack.c.b16 %v2519, %v2515
        %v2944 = vpack.c.b16 %v2520, %v2516
        %v2945 = vpack.c.b16 %v2525, %v2521
        %v2946 = vpack.c.b16 %v2526, %v2522
        %v2947 = vpack.c.b16 %v2527, %v2523
        %v2948 = vpack.c.b16 %v2528, %v2524
        %v2949 = vpack.c.b16 %v2533, %v2529
        %v2950 = vpack.c.b16 %v2534, %v2530
        %v2951 = vpack.c.b16 %v2535, %v2531
        %v2952 = vpack.c.b16 %v2536, %v2532
        %v2953 = vpack.c.b16 %v2541, %v2537
        %v2954 = vpack.c.b16 %v2542, %v2538
        %v2955 = vpack.c.b16 %v2543, %v2539
        %v2956 = vpack.c.b16 %v2544, %v2540
        %v2957 = vpack.c.b16 %v2549, %v2545
        %v2958 = vpack.c.b16 %v2550, %v2546
        %v2959 = vpack.c.b16 %v2551, %v2547
        %v2960 = vpack.c.b16 %v2552, %v2548
        %v2961 = vpack.c.b16 %v2557, %v2553
        %v2962 = vpack.c.b16 %v2558, %v2554
        %v2963 = vpack.c.b16 %v2559, %v2555
        %v2964 = vpack.c.b16 %v2560, %v2556
        %v2965 = vpack.c.b16 %v2565, %v2561
        %v2966 = vpack.c.b16 %v2566, %v2562
        %v2967 = vpack.c.b16 %v2567, %v2563
        %v2968 = vpack.c.b16 %v2568, %v2564
        %v2969 = vpack.c.b16 %v2573, %v2569
        %v2970 = vpack.c.b16 %v2574, %v2570
        %v2971 = vpack.c.b16 %v2575, %v2571
        %v2972 = vpack.c.b16 %v2576, %v2572
        %v2973 = vpack.c.b16 %v2581, %v2577
        %v2974 = vpack.c.b16 %v2582, %v2578
        %v2975 = vpack.c.b16 %v2583, %v2579
        %v2976 = vpack.c.b16 %v2584, %v2580
        %v2977 = vpack.c.b16 %v2589, %v2585
        %v2978 = vpack.c.b16 %v2590, %v2586
        %v2979 = vpack.c.b16 %v2591, %v2587
        %v2980 = vpack.c.b16 %v2592, %v2588
        %v2981 = vpack.c.b16 %v2597, %v2593
        %v2982 = vpack.c.b16 %v2598, %v2594
        %v2983 = vpack.c.b16 %v2599, %v2595
        %v2984 = vpack.c.b16 %v2600, %v2596
        %v2985 = vpack.c.b16 %v2605, %v2601
        %v2986 = vpack.c.b16 %v2606, %v2602
        %v2987 = vpack.c.b16 %v2607, %v2603
        %v2988 = vpack.c.b16 %v2608, %v2604
        %v2989 = vpack.c.b16 %v2613, %v2609
        %v2990 = vpack.c.b16 %v2614, %v2610
        %v2991 = vpack.c.b16 %v2615, %v2611
        %v2992 = vpack.c.b16 %v2616, %v2612
        %v2993 = vpack.c.b16 %v2621, %v2617
        %v2994 = vpack.c.b16 %v2622, %v2618
        %v2995 = vpack.c.b16 %v2623, %v2619
        %v2996 = vpack.c.b16 %v2624, %v2620
        %v2997 = vpack.c.b16 %v2629, %v2625
        %v2998 = vpack.c.b16 %v2630, %v2626
        %v2999 = vpack.c.b16 %v2631, %v2627
        %v3000 = vpack.c.b16 %v2632, %v2628
        %v3001 = vpack.c.b16 %v2637, %v2633
        %v3002 = vpack.c.b16 %v2638, %v2634
        %v3003 = vpack.c.b16 %v2639, %v2635
        %v3004 = vpack.c.b16 %v2640, %v2636
        %v3005 = vpack.c.b16 %v2645, %v2641
        %v3006 = vpack.c.b16 %v2646, %v2642
        %v3007 = vpack.c.b16 %v2647, %v2643
        %v3008 = vpack.c.b16 %v2648, %v2644
        %v3009 = vpack.c.b16 %v2653, %v2649
        %v3010 = vpack.c.b16 %v2654, %v2650
        %v3011 = vpack.c.b16 %v2655, %v2651
        %v3012 = vpack.c.b16 %v2656, %v2652
        %v3013 = vpack.c.b16 %v2661, %v2657
        %v3014 = vpack.c.b16 %v2662, %v2658
        %v3015 = vpack.c.b16 %v2663, %v2659
        %v3016 = vpack.c.b16 %v2664, %v2660
        %v3017 = vpack.c.b16 %v2669, %v2665
        %v3018 = vpack.c.b16 %v2670, %v2666
        %v3019 = vpack.c.b16 %v2671, %v2667
        %v3020 = vpack.c.b16 %v2672, %v2668
        %v3021 = vpack.c.b16 %v2677, %v2673
        %v3022 = vpack.c.b16 %v2678, %v2674
        %v3023 = vpack.c.b16 %v2679, %v2675
        %v3024 = vpack.c.b16 %v2680, %v2676
        %v3025 = vpack.c.b16 %v2685, %v2681
        %v3026 = vpack.c.b16 %v2686, %v2682
        %v3027 = vpack.c.b16 %v2687, %v2683
        %v3028 = vpack.c.b16 %v2688, %v2684
        %v3029 = vpack.c.b16 %v2693, %v2689
        %v3030 = vpack.c.b16 %v2694, %v2690
        %v3031 = vpack.c.b16 %v2695, %v2691
        %v3032 = vpack.c.b16 %v2696, %v2692
        %v3033 = vpack.c.b16 %v2701, %v2697
        %v3034 = vpack.c.b16 %v2702, %v2698
        %v3035 = vpack.c.b16 %v2703, %v2699
        %v3036 = vpack.c.b16 %v2704, %v2700
        %v3037 = vpack.c.b16 %v2709, %v2705
        %v3038 = vpack.c.b16 %v2710, %v2706
        %v3039 = vpack.c.b16 %v2711, %v2707
        %v3040 = vpack.c.b16 %v2712, %v2708
        %v3041 = vpack.c.b16 %v2717, %v2713
        %v3042 = vpack.c.b16 %v2718, %v2714
        %v3043 = vpack.c.b16 %v2719, %v2715
        %v3044 = vpack.c.b16 %v2720, %v2716
        %v3045 = vpack.c.b16 %v2725, %v2721
        %v3046 = vpack.c.b16 %v2726, %v2722
        %v3047 = vpack.c.b16 %v2727, %v2723
        %v3048 = vpack.c.b16 %v2728, %v2724
        %v3049 = vpack.c.b16 %v2733, %v2729
        %v3050 = vpack.c.b16 %v2734, %v2730
        %v3051 = vpack.c.b16 %v2735, %v2731
        %v3052 = vpack.c.b16 %v2736, %v2732
        %v3053 = vpack.c.b16 %v2741, %v2737
        %v3054 = vpack.c.b16 %v2742, %v2738
        %v3055 = vpack.c.b16 %v2743, %v2739
        %v3056 = vpack.c.b16 %v2744, %v2740
        %v3057 = vpack.c.b16 %v2749, %v2745
        %v3058 = vpack.c.b16 %v2750, %v2746
        %v3059 = vpack.c.b16 %v2751, %v2747
        %v3060 = vpack.c.b16 %v2752, %v2748
        %v3061 = vpack.c.b16 %v2757, %v2753
        %v3062 = vpack.c.b16 %v2758, %v2754
        %v3063 = vpack.c.b16 %v2759, %v2755
        %v3064 = vpack.c.b16 %v2760, %v2756
        %v3065 = vpack.c.b16 %v2765, %v2761
        %v3066 = vpack.c.b16 %v2766, %v2762
        %v3067 = vpack.c.b16 %v2767, %v2763
        %v3068 = vpack.c.b16 %v2768, %v2764
        %v3069 = vpack.c.b16 %v2773, %v2769
        %v3070 = vpack.c.b16 %v2774, %v2770
        %v3071 = vpack.c.b16 %v2775, %v2771
        %v3072 = vpack.c.b16 %v2776, %v2772
        %v3073 = vpack.c.b16 %v2781, %v2777
        %v3074 = vpack.c.b16 %v2782, %v2778
        %v3075 = vpack.c.b16 %v2783, %v2779
        %v3076 = vpack.c.b16 %v2784, %v2780
        %v3077 = vpack.c.b16 %v2789, %v2785
        %v3078 = vpack.c.b16 %v2790, %v2786
        %v3079 = vpack.c.b16 %v2791, %v2787
        %v3080 = vpack.c.b16 %v2792, %v2788
        %v3081 = vpack.c.b16 %v2797, %v2793
        %v3082 = vpack.c.b16 %v2798, %v2794
        %v3083 = vpack.c.b16 %v2799, %v2795
        %v3084 = vpack.c.b16 %v2800, %v2796
        %v3085 = vpack.c.b16 %v2805, %v2801
        %v3086 = vpack.c.b16 %v2806, %v2802
        %v3087 = vpack.c.b16 %v2807, %v2803
        %v3088 = vpack.c.b16 %v2808, %v2804
        %v3089 = vpack.c.b16 %v2813, %v2809
        %v3090 = vpack.c.b16 %v2814, %v2810
        %v3091 = vpack.c.b16 %v2815, %v2811
        %v3092 = vpack.c.b16 %v2816, %v2812
        %v3093 = vpack.c.b16 %v2821, %v2817
        %v3094 = vpack.c.b16 %v2822, %v2818
        %v3095 = vpack.c.b16 %v2823, %v2819
        %v3096 = vpack.c.b16 %v2824, %v2820
        %v3097 = vpack.c.b16 %v2829, %v2825
        %v3098 = vpack.c.b16 %v2830, %v2826
        %v3099 = vpack.c.b16 %v2831, %v2827
        %v3100 = vpack.c.b16 %v2832, %v2828
        %v3101 = vpack.c.b16 %v2837, %v2833
        %v3102 = vpack.c.b16 %v2838, %v2834
        %v3103 = vpack.c.b16 %v2839, %v2835
        %v3104 = vpack.c.b16 %v2840, %v2836
        %v3105 = vpack.c.b16 %v2845, %v2841
        %v3106 = vpack.c.b16 %v2846, %v2842
        %v3107 = vpack.c.b16 %v2847, %v2843
        %v3108 = vpack.c.b16 %v2848, %v2844
        %v3109 = vpack.c.b16 %v2853, %v2849
        %v3110 = vpack.c.b16 %v2854, %v2850
        %v3111 = vpack.c.b16 %v2855, %v2851
        %v3112 = vpack.c.b16 %v2856, %v2852
        %3369 = vmatprep.subr.bf16.mxu0 %v2858
        %3370 = vmatpush1.bf16.msra.mxu0 %v2857
        %3371 = vmatprep.subr.bf16.mxu0 %v2862
        %3372 = vmatpush1.bf16.msra.mxu0 %v2861
        %3373 = vmatprep.subr.bf16.mxu0 %v2866
        %3374 = vmatpush1.bf16.msra.mxu0 %v2865
        %3375 = vmatprep.subr.bf16.mxu0 %v2870
        %3376 = vmatpush1.bf16.msra.mxu0 %v2869
        %3377 = vmatprep.subr.bf16.mxu0 %v2874
        %3378 = vmatpush1.bf16.msra.mxu0 %v2873
        %3379 = vmatprep.subr.bf16.mxu0 %v2878
        %3380 = vmatpush1.bf16.msra.mxu0 %v2877
        %3381 = vmatprep.subr.bf16.mxu0 %v2882
        %3382 = vmatpush1.bf16.msra.mxu0 %v2881
        %3383 = vmatprep.subr.bf16.mxu0 %v2886
        %3384 = vmatpush1.bf16.msra.mxu0 %v2885
        %3385 = vmatprep.subr.bf16.mxu0 %v2890
        %3386 = vmatpush1.bf16.msra.mxu0 %v2889
        %3387 = vmatprep.subr.bf16.mxu0 %v2894
        %3388 = vmatpush1.bf16.msra.mxu0 %v2893
        %3389 = vmatprep.subr.bf16.mxu0 %v2898
        %3390 = vmatpush1.bf16.msra.mxu0 %v2897
        %3391 = vmatprep.subr.bf16.mxu0 %v2902
        %3392 = vmatpush1.bf16.msra.mxu0 %v2901
        %3393 = vmatprep.subr.bf16.mxu0 %v2906
        %3394 = vmatpush1.bf16.msra.mxu0 %v2905
        %3395 = vmatprep.subr.bf16.mxu0 %v2910
        %3396 = vmatpush1.bf16.msra.mxu0 %v2909
        %3397 = vmatprep.subr.bf16.mxu0 %v2914
        %3398 = vmatpush1.bf16.msra.mxu0 %v2913
        %3399 = vmatprep.subr.bf16.mxu0 %v2918
        %3400 = vmatpush1.bf16.msra.mxu0 %v2917
        %3401 = vmatprep.mubr.bf16.mxu0 %v1780
        %3402 = vmatmul.mubr.bf16.gmra.mrb[0].mxu0 %v1779
        %v3403 = vpop.f32.mrb[0].mxu0
        %v3404 = vadd.f32 %v2072, %v3403
        %v3405 = vpop.f32.mrb[0].mxu0
        %v3406 = vadd.f32 %v2076, %v3405
        %v3407 = vpop.f32.mrb[0].mxu0
        %v3408 = vadd.f32 %v2072, %v3407
        %v3409 = vpop.f32.mrb[0].mxu0
        %v3410 = vadd.f32 %v2076, %v3409
        %3411 = vmatprep.mubr.bf16.mxu0 %v1788
        %3412 = vmatmul.mubr.bf16.gmra.mrb[0].mxu0 %v1787
        %v3413 = vpop.f32.mrb[0].mxu0
        %v3414 = vadd.f32 %v2072, %v3413
        %v3415 = vpop.f32.mrb[0].mxu0
        %v3416 = vadd.f32 %v2076, %v3415
        %v3417 = vpop.f32.mrb[0].mxu0
        %v3418 = vadd.f32 %v2072, %v3417
        %v3419 = vpop.f32.mrb[0].mxu0
        %v3420 = vadd.f32 %v2076, %v3419
        %3421 = vmatprep.mubr.bf16.mxu0 %v1796
        %3422 = vmatmul.mubr.bf16.gmra.mrb[0].mxu0 %v1795
        %v3423 = vpop.f32.mrb[0].mxu0
        %v3424 = vadd.f32 %v2072, %v3423
        %v3425 = vpop.f32.mrb[0].mxu0
        %v3426 = vadd.f32 %v2076, %v3425
        %v3427 = vpop.f32.mrb[0].mxu0
        %v3428 = vadd.f32 %v2072, %v3427
        %v3429 = vpop.f32.mrb[0].mxu0
        %v3430 = vadd.f32 %v2076, %v3429
        %3431 = vmatprep.mubr.bf16.mxu0 %v1804
        %3432 = vmatmul.mubr.bf16.gmra.mrb[0].mxu0 %v1803
        %v3433 = vpop.f32.mrb[0].mxu0
        %v3434 = vadd.f32 %v2072, %v3433
        %v3435 = vpop.f32.mrb[0].mxu0
        %v3436 = vadd.f32 %v2076, %v3435
        %v3437 = vpop.f32.mrb[0].mxu0
        %v3438 = vadd.f32 %v2072, %v3437
        %v3439 = vpop.f32.mrb[0].mxu0
        %v3440 = vadd.f32 %v2076, %v3439
        %3441 = vdwg.mxu0
        %3442 = vmatprep.subr.bf16.mxu0 %v2922
        %3443 = vmatpush1.bf16.msra.mxu0 %v2921
        %3444 = vmatprep.subr.bf16.mxu0 %v2926
        %3445 = vmatpush1.bf16.msra.mxu0 %v2925
        %3446 = vmatprep.subr.bf16.mxu0 %v2930
        %3447 = vmatpush1.bf16.msra.mxu0 %v2929
        %3448 = vmatprep.subr.bf16.mxu0 %v2934
        %3449 = vmatpush1.bf16.msra.mxu0 %v2933
        %3450 = vmatprep.subr.bf16.mxu0 %v2938
        %3451 = vmatpush1.bf16.msra.mxu0 %v2937
        %3452 = vmatprep.subr.bf16.mxu0 %v2942
        %3453 = vmatpush1.bf16.msra.mxu0 %v2941
        %3454 = vmatprep.subr.bf16.mxu0 %v2946
        %3455 = vmatpush1.bf16.msra.mxu0 %v2945
        %3456 = vmatprep.subr.bf16.mxu0 %v2950
        %3457 = vmatpush1.bf16.msra.mxu0 %v2949
        %3458 = vmatprep.subr.bf16.mxu0 %v2954
        %3459 = vmatpush1.bf16.msra.mxu0 %v2953
        %3460 = vmatprep.subr.bf16.mxu0 %v2958
        %3461 = vmatpush1.bf16.msra.mxu0 %v2957
        %3462 = vmatprep.subr.bf16.mxu0 %v2962
        %3463 = vmatpush1.bf16.msra.mxu0 %v2961
        %3464 = vmatprep.subr.bf16.mxu0 %v2966
        %3465 = vmatpush1.bf16.msra.mxu0 %v2965
        %3466 = vmatprep.subr.bf16.mxu0 %v2970
        %3467 = vmatpush1.bf16.msra.mxu0 %v2969
        %3468 = vmatprep.subr.bf16.mxu0 %v2974
        %3469 = vmatpush1.bf16.msra.mxu0 %v2973
        %3470 = vmatprep.subr.bf16.mxu0 %v2978
        %3471 = vmatpush1.bf16.msra.mxu0 %v2977
        %3472 = vmatprep.subr.bf16.mxu0 %v2982
        %3473 = vmatpush1.bf16.msra.mxu0 %v2981
        %3474 = vmatprep.mubr.bf16.mxu0 %v1782
        %3475 = vmatmul.mubr.bf16.gmra.mrb[0].mxu0 %v1781
        %v3476 = vpop.f32.mrb[0].mxu0
        %v3477 = vadd.f32 %v3404, %v3476
        %v3478 = vpop.f32.mrb[0].mxu0
        %v3479 = vadd.f32 %v3406, %v3478
        %v3480 = vpop.f32.mrb[0].mxu0
        %v3481 = vadd.f32 %v3408, %v3480
        %v3482 = vpop.f32.mrb[0].mxu0
        %v3483 = vadd.f32 %v3410, %v3482
        %3484 = vmatprep.mubr.bf16.mxu0 %v1790
        %3485 = vmatmul.mubr.bf16.gmra.mrb[0].mxu0 %v1789
        %v3486 = vpop.f32.mrb[0].mxu0
        %v3487 = vadd.f32 %v3414, %v3486
        %v3488 = vpop.f32.mrb[0].mxu0
        %v3489 = vadd.f32 %v3416, %v3488
        %v3490 = vpop.f32.mrb[0].mxu0
        %v3491 = vadd.f32 %v3418, %v3490
        %v3492 = vpop.f32.mrb[0].mxu0
        %v3493 = vadd.f32 %v3420, %v3492
        %3494 = vmatprep.mubr.bf16.mxu0 %v1798
        %3495 = vmatmul.mubr.bf16.gmra.mrb[0].mxu0 %v1797
        %v3496 = vpop.f32.mrb[0].mxu0
        %v3497 = vadd.f32 %v3424, %v3496
        %v3498 = vpop.f32.mrb[0].mxu0
        %v3499 = vadd.f32 %v3426, %v3498
        %v3500 = vpop.f32.mrb[0].mxu0
        %v3501 = vadd.f32 %v3428, %v3500
        %v3502 = vpop.f32.mrb[0].mxu0
        %v3503 = vadd.f32 %v3430, %v3502
        %3504 = vmatprep.mubr.bf16.mxu0 %v1806
        %3505 = vmatmul.mubr.bf16.gmra.mrb[0].mxu0 %v1805
        %v3506 = vpop.f32.mrb[0].mxu0
        %v3507 = vadd.f32 %v3434, %v3506
        %v3508 = vpop.f32.mrb[0].mxu0
        %v3509 = vadd.f32 %v3436, %v3508
        %v3510 = vpop.f32.mrb[0].mxu0
        %v3511 = vadd.f32 %v3438, %v3510
        %v3512 = vpop.f32.mrb[0].mxu0
        %v3513 = vadd.f32 %v3440, %v3512
        %3514 = vdwg.mxu0
        %3515 = vmatprep.subr.bf16.mxu0 %v2986
        %3516 = vmatpush1.bf16.msra.mxu0 %v2985
        %3517 = vmatprep.subr.bf16.mxu0 %v2990
        %3518 = vmatpush1.bf16.msra.mxu0 %v2989
        %3519 = vmatprep.subr.bf16.mxu0 %v2994
        %3520 = vmatpush1.bf16.msra.mxu0 %v2993
        %3521 = vmatprep.subr.bf16.mxu0 %v2998
        %3522 = vmatpush1.bf16.msra.mxu0 %v2997
        %3523 = vmatprep.subr.bf16.mxu0 %v3002
        %3524 = vmatpush1.bf16.msra.mxu0 %v3001
        %3525 = vmatprep.subr.bf16.mxu0 %v3006
        %3526 = vmatpush1.bf16.msra.mxu0 %v3005
        %3527 = vmatprep.subr.bf16.mxu0 %v3010
        %3528 = vmatpush1.bf16.msra.mxu0 %v3009
        %3529 = vmatprep.subr.bf16.mxu0 %v3014
        %3530 = vmatpush1.bf16.msra.mxu0 %v3013
        %3531 = vmatprep.subr.bf16.mxu0 %v3018
        %3532 = vmatpush1.bf16.msra.mxu0 %v3017
        %3533 = vmatprep.subr.bf16.mxu0 %v3022
        %3534 = vmatpush1.bf16.msra.mxu0 %v3021
        %3535 = vmatprep.subr.bf16.mxu0 %v3026
        %3536 = vmatpush1.bf16.msra.mxu0 %v3025
        %3537 = vmatprep.subr.bf16.mxu0 %v3030
        %3538 = vmatpush1.bf16.msra.mxu0 %v3029
        %3539 = vmatprep.subr.bf16.mxu0 %v3034
        %3540 = vmatpush1.bf16.msra.mxu0 %v3033
        %3541 = vmatprep.subr.bf16.mxu0 %v3038
        %3542 = vmatpush1.bf16.msra.mxu0 %v3037
        %3543 = vmatprep.subr.bf16.mxu0 %v3042
        %3544 = vmatpush1.bf16.msra.mxu0 %v3041
        %3545 = vmatprep.subr.bf16.mxu0 %v3046
        %3546 = vmatpush1.bf16.msra.mxu0 %v3045
        %3547 = vmatprep.mubr.bf16.mxu0 %v1784
        %3548 = vmatmul.mubr.bf16.gmra.mrb[0].mxu0 %v1783
        %v3549 = vpop.f32.mrb[0].mxu0
        %v3550 = vadd.f32 %v3477, %v3549
        %v3551 = vpop.f32.mrb[0].mxu0
        %v3552 = vadd.f32 %v3479, %v3551
        %v3553 = vpop.f32.mrb[0].mxu0
        %v3554 = vadd.f32 %v3481, %v3553
        %v3555 = vpop.f32.mrb[0].mxu0
        %v3556 = vadd.f32 %v3483, %v3555
        %3557 = vmatprep.mubr.bf16.mxu0 %v1792
        %3558 = vmatmul.mubr.bf16.gmra.mrb[0].mxu0 %v1791
        %v3559 = vpop.f32.mrb[0].mxu0
        %v3560 = vadd.f32 %v3487, %v3559
        %v3561 = vpop.f32.mrb[0].mxu0
        %v3562 = vadd.f32 %v3489, %v3561
        %v3563 = vpop.f32.mrb[0].mxu0
        %v3564 = vadd.f32 %v3491, %v3563
        %v3565 = vpop.f32.mrb[0].mxu0
        %v3566 = vadd.f32 %v3493, %v3565
        %3567 = vmatprep.mubr.bf16.mxu0 %v1800
        %3568 = vmatmul.mubr.bf16.gmra.mrb[0].mxu0 %v1799
        %v3569 = vpop.f32.mrb[0].mxu0
        %v3570 = vadd.f32 %v3497, %v3569
        %v3571 = vpop.f32.mrb[0].mxu0
        %v3572 = vadd.f32 %v3499, %v3571
        %v3573 = vpop.f32.mrb[0].mxu0
        %v3574 = vadd.f32 %v3501, %v3573
        %v3575 = vpop.f32.mrb[0].mxu0
        %v3576 = vadd.f32 %v3503, %v3575
        %3577 = vmatprep.mubr.bf16.mxu0 %v1808
        %3578 = vmatmul.mubr.bf16.gmra.mrb[0].mxu0 %v1807
        %v3579 = vpop.f32.mrb[0].mxu0
        %v3580 = vadd.f32 %v3507, %v3579
        %v3581 = vpop.f32.mrb[0].mxu0
        %v3582 = vadd.f32 %v3509, %v3581
        %v3583 = vpop.f32.mrb[0].mxu0
        %v3584 = vadd.f32 %v3511, %v3583
        %v3585 = vpop.f32.mrb[0].mxu0
        %v3586 = vadd.f32 %v3513, %v3585
        %3587 = vdwg.mxu0
        %3588 = vmatprep.subr.bf16.mxu0 %v3050
        %3589 = vmatpush1.bf16.msra.mxu0 %v3049
        %3590 = vmatprep.subr.bf16.mxu0 %v3054
        %3591 = vmatpush1.bf16.msra.mxu0 %v3053
        %3592 = vmatprep.subr.bf16.mxu0 %v3058
        %3593 = vmatpush1.bf16.msra.mxu0 %v3057
        %3594 = vmatprep.subr.bf16.mxu0 %v3062
        %3595 = vmatpush1.bf16.msra.mxu0 %v3061
        %3596 = vmatprep.subr.bf16.mxu0 %v3066
        %3597 = vmatpush1.bf16.msra.mxu0 %v3065
        %3598 = vmatprep.subr.bf16.mxu0 %v3070
        %3599 = vmatpush1.bf16.msra.mxu0 %v3069
        %3600 = vmatprep.subr.bf16.mxu0 %v3074
        %3601 = vmatpush1.bf16.msra.mxu0 %v3073
        %3602 = vmatprep.subr.bf16.mxu0 %v3078
        %3603 = vmatpush1.bf16.msra.mxu0 %v3077
        %3604 = vmatprep.subr.bf16.mxu0 %v3082
        %3605 = vmatpush1.bf16.msra.mxu0 %v3081
        %3606 = vmatprep.subr.bf16.mxu0 %v3086
        %3607 = vmatpush1.bf16.msra.mxu0 %v3085
        %3608 = vmatprep.subr.bf16.mxu0 %v3090
        %3609 = vmatpush1.bf16.msra.mxu0 %v3089
        %3610 = vmatprep.subr.bf16.mxu0 %v3094
        %3611 = vmatpush1.bf16.msra.mxu0 %v3093
        %3612 = vmatprep.subr.bf16.mxu0 %v3098
        %3613 = vmatpush1.bf16.msra.mxu0 %v3097
        %3614 = vmatprep.subr.bf16.mxu0 %v3102
        %3615 = vmatpush1.bf16.msra.mxu0 %v3101
        %3616 = vmatprep.subr.bf16.mxu0 %v3106
        %3617 = vmatpush1.bf16.msra.mxu0 %v3105
        %3618 = vmatprep.subr.bf16.mxu0 %v3110
        %3619 = vmatpush1.bf16.msra.mxu0 %v3109
        %3620 = vmatprep.mubr.bf16.mxu0 %v1786
        %3621 = vmatmul.mubr.bf16.gmra.mrb[0].mxu0 %v1785
        %v3622 = vpop.f32.mrb[0].mxu0
        %v3623 = vadd.f32 %v3550, %v3622
        %v3624 = vpop.f32.mrb[0].mxu0
        %v3625 = vadd.f32 %v3552, %v3624
        %v3626 = vpop.f32.mrb[0].mxu0
        %v3627 = vadd.f32 %v3554, %v3626
        %v3628 = vpop.f32.mrb[0].mxu0
        %v3629 = vadd.f32 %v3556, %v3628
        %3630 = vmatprep.mubr.bf16.mxu0 %v1794
        %3631 = vmatmul.mubr.bf16.gmra.mrb[0].mxu0 %v1793
        %v3632 = vpop.f32.mrb[0].mxu0
        %v3633 = vadd.f32 %v3560, %v3632
        %v3634 = vpop.f32.mrb[0].mxu0
        %v3635 = vadd.f32 %v3562, %v3634
        %v3636 = vpop.f32.mrb[0].mxu0
        %v3637 = vadd.f32 %v3564, %v3636
        %v3638 = vpop.f32.mrb[0].mxu0
        %v3639 = vadd.f32 %v3566, %v3638
        %3640 = vmatprep.mubr.bf16.mxu0 %v1802
        %3641 = vmatmul.mubr.bf16.gmra.mrb[0].mxu0 %v1801
        %v3642 = vpop.f32.mrb[0].mxu0
        %v3643 = vadd.f32 %v3570, %v3642
        %v3644 = vpop.f32.mrb[0].mxu0
        %v3645 = vadd.f32 %v3572, %v3644
        %v3646 = vpop.f32.mrb[0].mxu0
        %v3647 = vadd.f32 %v3574, %v3646
        %v3648 = vpop.f32.mrb[0].mxu0
        %v3649 = vadd.f32 %v3576, %v3648
        %3650 = vmatprep.mubr.bf16.mxu0 %v1810
        %3651 = vmatmul.mubr.bf16.gmra.mrb[0].mxu0 %v1809
        %v3652 = vpop.f32.mrb[0].mxu0
        %v3653 = vadd.f32 %v3580, %v3652
        %v3654 = vpop.f32.mrb[0].mxu0
        %v3655 = vadd.f32 %v3582, %v3654
        %v3656 = vpop.f32.mrb[0].mxu0
        %v3657 = vadd.f32 %v3584, %v3656
        %v3658 = vpop.f32.mrb[0].mxu0
        %v3659 = vadd.f32 %v3586, %v3658
        %3660 = vdwg.mxu0
        %3661 = vmatprep.subr.bf16.mxu0 %v2860
        %3662 = vmatpush1.bf16.msra.mxu0 %v2859
        %3663 = vmatprep.subr.bf16.mxu0 %v2864
        %3664 = vmatpush1.bf16.msra.mxu0 %v2863
        %3665 = vmatprep.subr.bf16.mxu0 %v2868
        %3666 = vmatpush1.bf16.msra.mxu0 %v2867
        %3667 = vmatprep.subr.bf16.mxu0 %v2872
        %3668 = vmatpush1.bf16.msra.mxu0 %v2871
        %3669 = vmatprep.subr.bf16.mxu0 %v2876
        %3670 = vmatpush1.bf16.msra.mxu0 %v2875
        %3671 = vmatprep.subr.bf16.mxu0 %v2880
        %3672 = vmatpush1.bf16.msra.mxu0 %v2879
        %3673 = vmatprep.subr.bf16.mxu0 %v2884
        %3674 = vmatpush1.bf16.msra.mxu0 %v2883
        %3675 = vmatprep.subr.bf16.mxu0 %v2888
        %3676 = vmatpush1.bf16.msra.mxu0 %v2887
        %3677 = vmatprep.subr.bf16.mxu0 %v2892
        %3678 = vmatpush1.bf16.msra.mxu0 %v2891
        %3679 = vmatprep.subr.bf16.mxu0 %v2896
        %3680 = vmatpush1.bf16.msra.mxu0 %v2895
        %3681 = vmatprep.subr.bf16.mxu0 %v2900
        %3682 = vmatpush1.bf16.msra.mxu0 %v2899
        %3683 = vmatprep.subr.bf16.mxu0 %v2904
        %3684 = vmatpush1.bf16.msra.mxu0 %v2903
        %3685 = vmatprep.subr.bf16.mxu0 %v2908
        %3686 = vmatpush1.bf16.msra.mxu0 %v2907
        %3687 = vmatprep.subr.bf16.mxu0 %v2912
        %3688 = vmatpush1.bf16.msra.mxu0 %v2911
        %3689 = vmatprep.subr.bf16.mxu0 %v2916
        %3690 = vmatpush1.bf16.msra.mxu0 %v2915
        %3691 = vmatprep.subr.bf16.mxu0 %v2920
        %3692 = vmatpush1.bf16.msra.mxu0 %v2919
        %3693 = vmatprep.mubr.bf16.mxu0 %v1780
        %3694 = vmatmul.mubr.bf16.gmra.mrb[0].mxu0 %v1779
        %v3695 = vpop.f32.mrb[0].mxu0
        %v3696 = vadd.f32 %v2080, %v3695
        %v3697 = vpop.f32.mrb[0].mxu0
        %v3698 = vadd.f32 %v2084, %v3697
        %v3699 = vpop.f32.mrb[0].mxu0
        %v3700 = vadd.f32 %v2080, %v3699
        %v3701 = vpop.f32.mrb[0].mxu0
        %v3702 = vadd.f32 %v2084, %v3701
        %3703 = vmatprep.mubr.bf16.mxu0 %v1788
        %3704 = vmatmul.mubr.bf16.gmra.mrb[0].mxu0 %v1787
        %v3705 = vpop.f32.mrb[0].mxu0
        %v3706 = vadd.f32 %v2080, %v3705
        %v3707 = vpop.f32.mrb[0].mxu0
        %v3708 = vadd.f32 %v2084, %v3707
        %v3709 = vpop.f32.mrb[0].mxu0
        %v3710 = vadd.f32 %v2080, %v3709
        %v3711 = vpop.f32.mrb[0].mxu0
        %v3712 = vadd.f32 %v2084, %v3711
        %3713 = vmatprep.mubr.bf16.mxu0 %v1796
        %3714 = vmatmul.mubr.bf16.gmra.mrb[0].mxu0 %v1795
        %v3715 = vpop.f32.mrb[0].mxu0
        %v3716 = vadd.f32 %v2080, %v3715
        %v3717 = vpop.f32.mrb[0].mxu0
        %v3718 = vadd.f32 %v2084, %v3717
        %v3719 = vpop.f32.mrb[0].mxu0
        %v3720 = vadd.f32 %v2080, %v3719
        %v3721 = vpop.f32.mrb[0].mxu0
        %v3722 = vadd.f32 %v2084, %v3721
        %3723 = vmatprep.mubr.bf16.mxu0 %v1804
        %3724 = vmatmul.mubr.bf16.gmra.mrb[0].mxu0 %v1803
        %v3725 = vpop.f32.mrb[0].mxu0
        %v3726 = vadd.f32 %v2080, %v3725
        %v3727 = vpop.f32.mrb[0].mxu0
        %v3728 = vadd.f32 %v2084, %v3727
        %v3729 = vpop.f32.mrb[0].mxu0
        %v3730 = vadd.f32 %v2080, %v3729
        %v3731 = vpop.f32.mrb[0].mxu0
        %v3732 = vadd.f32 %v2084, %v3731
        %3733 = vdwg.mxu0
        %3734 = vmatprep.subr.bf16.mxu0 %v2924
        %3735 = vmatpush1.bf16.msra.mxu0 %v2923
        %3736 = vmatprep.subr.bf16.mxu0 %v2928
        %3737 = vmatpush1.bf16.msra.mxu0 %v2927
        %3738 = vmatprep.subr.bf16.mxu0 %v2932
        %3739 = vmatpush1.bf16.msra.mxu0 %v2931
        %3740 = vmatprep.subr.bf16.mxu0 %v2936
        %3741 = vmatpush1.bf16.msra.mxu0 %v2935
        %3742 = vmatprep.subr.bf16.mxu0 %v2940
        %3743 = vmatpush1.bf16.msra.mxu0 %v2939
        %3744 = vmatprep.subr.bf16.mxu0 %v2944
        %3745 = vmatpush1.bf16.msra.mxu0 %v2943
        %3746 = vmatprep.subr.bf16.mxu0 %v2948
        %3747 = vmatpush1.bf16.msra.mxu0 %v2947
        %3748 = vmatprep.subr.bf16.mxu0 %v2952
        %3749 = vmatpush1.bf16.msra.mxu0 %v2951
        %3750 = vmatprep.subr.bf16.mxu0 %v2956
        %3751 = vmatpush1.bf16.msra.mxu0 %v2955
        %3752 = vmatprep.subr.bf16.mxu0 %v2960
        %3753 = vmatpush1.bf16.msra.mxu0 %v2959
        %3754 = vmatprep.subr.bf16.mxu0 %v2964
        %3755 = vmatpush1.bf16.msra.mxu0 %v2963
        %3756 = vmatprep.subr.bf16.mxu0 %v2968
        %3757 = vmatpush1.bf16.msra.mxu0 %v2967
        %3758 = vmatprep.subr.bf16.mxu0 %v2972
        %3759 = vmatpush1.bf16.msra.mxu0 %v2971
        %3760 = vmatprep.subr.bf16.mxu0 %v2976
        %3761 = vmatpush1.bf16.msra.mxu0 %v2975
        %3762 = vmatprep.subr.bf16.mxu0 %v2980
        %3763 = vmatpush1.bf16.msra.mxu0 %v2979
        %3764 = vmatprep.subr.bf16.mxu0 %v2984
        %3765 = vmatpush1.bf16.msra.mxu0 %v2983
        %3766 = vmatprep.mubr.bf16.mxu0 %v1782
        %3767 = vmatmul.mubr.bf16.gmra.mrb[0].mxu0 %v1781
        %v3768 = vpop.f32.mrb[0].mxu0
        %v3769 = vadd.f32 %v3696, %v3768
        %v3770 = vpop.f32.mrb[0].mxu0
        %v3771 = vadd.f32 %v3698, %v3770
        %v3772 = vpop.f32.mrb[0].mxu0
        %v3773 = vadd.f32 %v3700, %v3772
        %v3774 = vpop.f32.mrb[0].mxu0
        %v3775 = vadd.f32 %v3702, %v3774
        %3776 = vmatprep.mubr.bf16.mxu0 %v1790
        %3777 = vmatmul.mubr.bf16.gmra.mrb[0].mxu0 %v1789
        %v3778 = vpop.f32.mrb[0].mxu0
        %v3779 = vadd.f32 %v3706, %v3778
        %v3780 = vpop.f32.mrb[0].mxu0
        %v3781 = vadd.f32 %v3708, %v3780
        %v3782 = vpop.f32.mrb[0].mxu0
        %v3783 = vadd.f32 %v3710, %v3782
        %v3784 = vpop.f32.mrb[0].mxu0
        %v3785 = vadd.f32 %v3712, %v3784
        %3786 = vmatprep.mubr.bf16.mxu0 %v1798
        %3787 = vmatmul.mubr.bf16.gmra.mrb[0].mxu0 %v1797
        %v3788 = vpop.f32.mrb[0].mxu0
        %v3789 = vadd.f32 %v3716, %v3788
        %v3790 = vpop.f32.mrb[0].mxu0
        %v3791 = vadd.f32 %v3718, %v3790
        %v3792 = vpop.f32.mrb[0].mxu0
        %v3793 = vadd.f32 %v3720, %v3792
        %v3794 = vpop.f32.mrb[0].mxu0
        %v3795 = vadd.f32 %v3722, %v3794
        %3796 = vmatprep.mubr.bf16.mxu0 %v1806
        %3797 = vmatmul.mubr.bf16.gmra.mrb[0].mxu0 %v1805
        %v3798 = vpop.f32.mrb[0].mxu0
        %v3799 = vadd.f32 %v3726, %v3798
        %v3800 = vpop.f32.mrb[0].mxu0
        %v3801 = vadd.f32 %v3728, %v3800
        %v3802 = vpop.f32.mrb[0].mxu0
        %v3803 = vadd.f32 %v3730, %v3802
        %v3804 = vpop.f32.mrb[0].mxu0
        %v3805 = vadd.f32 %v3732, %v3804
        %3806 = vdwg.mxu0
        %3807 = vmatprep.subr.bf16.mxu0 %v2988
        %3808 = vmatpush1.bf16.msra.mxu0 %v2987
        %3809 = vmatprep.subr.bf16.mxu0 %v2992
        %3810 = vmatpush1.bf16.msra.mxu0 %v2991
        %3811 = vmatprep.subr.bf16.mxu0 %v2996
        %3812 = vmatpush1.bf16.msra.mxu0 %v2995
        %3813 = vmatprep.subr.bf16.mxu0 %v3000
        %3814 = vmatpush1.bf16.msra.mxu0 %v2999
        %3815 = vmatprep.subr.bf16.mxu0 %v3004
        %3816 = vmatpush1.bf16.msra.mxu0 %v3003
        %3817 = vmatprep.subr.bf16.mxu0 %v3008
        %3818 = vmatpush1.bf16.msra.mxu0 %v3007
        %3819 = vmatprep.subr.bf16.mxu0 %v3012
        %3820 = vmatpush1.bf16.msra.mxu0 %v3011
        %3821 = vmatprep.subr.bf16.mxu0 %v3016
        %3822 = vmatpush1.bf16.msra.mxu0 %v3015
        %3823 = vmatprep.subr.bf16.mxu0 %v3020
        %3824 = vmatpush1.bf16.msra.mxu0 %v3019
        %3825 = vmatprep.subr.bf16.mxu0 %v3024
        %3826 = vmatpush1.bf16.msra.mxu0 %v3023
        %3827 = vmatprep.subr.bf16.mxu0 %v3028
        %3828 = vmatpush1.bf16.msra.mxu0 %v3027
        %3829 = vmatprep.subr.bf16.mxu0 %v3032
        %3830 = vmatpush1.bf16.msra.mxu0 %v3031
        %3831 = vmatprep.subr.bf16.mxu0 %v3036
        %3832 = vmatpush1.bf16.msra.mxu0 %v3035
        %3833 = vmatprep.subr.bf16.mxu0 %v3040
        %3834 = vmatpush1.bf16.msra.mxu0 %v3039
        %3835 = vmatprep.subr.bf16.mxu0 %v3044
        %3836 = vmatpush1.bf16.msra.mxu0 %v3043
        %3837 = vmatprep.subr.bf16.mxu0 %v3048
        %3838 = vmatpush1.bf16.msra.mxu0 %v3047
        %3839 = vmatprep.mubr.bf16.mxu0 %v1784
        %3840 = vmatmul.mubr.bf16.gmra.mrb[0].mxu0 %v1783
        %v3841 = vpop.f32.mrb[0].mxu0
        %v3842 = vadd.f32 %v3769, %v3841
        %v3843 = vpop.f32.mrb[0].mxu0
        %v3844 = vadd.f32 %v3771, %v3843
        %v3845 = vpop.f32.mrb[0].mxu0
        %v3846 = vadd.f32 %v3773, %v3845
        %v3847 = vpop.f32.mrb[0].mxu0
        %v3848 = vadd.f32 %v3775, %v3847
        %3849 = vmatprep.mubr.bf16.mxu0 %v1792
        %3850 = vmatmul.mubr.bf16.gmra.mrb[0].mxu0 %v1791
        %v3851 = vpop.f32.mrb[0].mxu0
        %v3852 = vadd.f32 %v3779, %v3851
        %v3853 = vpop.f32.mrb[0].mxu0
        %v3854 = vadd.f32 %v3781, %v3853
        %v3855 = vpop.f32.mrb[0].mxu0
        %v3856 = vadd.f32 %v3783, %v3855
        %v3857 = vpop.f32.mrb[0].mxu0
        %v3858 = vadd.f32 %v3785, %v3857
        %3859 = vmatprep.mubr.bf16.mxu0 %v1800
        %3860 = vmatmul.mubr.bf16.gmra.mrb[0].mxu0 %v1799
        %v3861 = vpop.f32.mrb[0].mxu0
        %v3862 = vadd.f32 %v3789, %v3861
        %v3863 = vpop.f32.mrb[0].mxu0
        %v3864 = vadd.f32 %v3791, %v3863
        %v3865 = vpop.f32.mrb[0].mxu0
        %v3866 = vadd.f32 %v3793, %v3865
        %v3867 = vpop.f32.mrb[0].mxu0
        %v3868 = vadd.f32 %v3795, %v3867
        %3869 = vmatprep.mubr.bf16.mxu0 %v1808
        %3870 = vmatmul.mubr.bf16.gmra.mrb[0].mxu0 %v1807
        %v3871 = vpop.f32.mrb[0].mxu0
        %v3872 = vadd.f32 %v3799, %v3871
        %v3873 = vpop.f32.mrb[0].mxu0
        %v3874 = vadd.f32 %v3801, %v3873
        %v3875 = vpop.f32.mrb[0].mxu0
        %v3876 = vadd.f32 %v3803, %v3875
        %v3877 = vpop.f32.mrb[0].mxu0
        %v3878 = vadd.f32 %v3805, %v3877
        %3879 = vdwg.mxu0
        %3880 = vmatprep.subr.bf16.mxu0 %v3052
        %3881 = vmatpush1.bf16.msra.mxu0 %v3051
        %3882 = vmatprep.subr.bf16.mxu0 %v3056
        %3883 = vmatpush1.bf16.msra.mxu0 %v3055
        %3884 = vmatprep.subr.bf16.mxu0 %v3060
        %3885 = vmatpush1.bf16.msra.mxu0 %v3059
        %3886 = vmatprep.subr.bf16.mxu0 %v3064
        %3887 = vmatpush1.bf16.msra.mxu0 %v3063
        %3888 = vmatprep.subr.bf16.mxu0 %v3068
        %3889 = vmatpush1.bf16.msra.mxu0 %v3067
        %3890 = vmatprep.subr.bf16.mxu0 %v3072
        %3891 = vmatpush1.bf16.msra.mxu0 %v3071
        %3892 = vmatprep.subr.bf16.mxu0 %v3076
        %3893 = vmatpush1.bf16.msra.mxu0 %v3075
        %3894 = vmatprep.subr.bf16.mxu0 %v3080
        %3895 = vmatpush1.bf16.msra.mxu0 %v3079
        %3896 = vmatprep.subr.bf16.mxu0 %v3084
        %3897 = vmatpush1.bf16.msra.mxu0 %v3083
        %3898 = vmatprep.subr.bf16.mxu0 %v3088
        %3899 = vmatpush1.bf16.msra.mxu0 %v3087
        %3900 = vmatprep.subr.bf16.mxu0 %v3092
        %3901 = vmatpush1.bf16.msra.mxu0 %v3091
        %3902 = vmatprep.subr.bf16.mxu0 %v3096
        %3903 = vmatpush1.bf16.msra.mxu0 %v3095
        %3904 = vmatprep.subr.bf16.mxu0 %v3100
        %3905 = vmatpush1.bf16.msra.mxu0 %v3099
        %3906 = vmatprep.subr.bf16.mxu0 %v3104
        %3907 = vmatpush1.bf16.msra.mxu0 %v3103
        %3908 = vmatprep.subr.bf16.mxu0 %v3108
        %3909 = vmatpush1.bf16.msra.mxu0 %v3107
        %3910 = vmatprep.subr.bf16.mxu0 %v3112
        %3911 = vmatpush1.bf16.msra.mxu0 %v3111
        %3912 = vmatprep.mubr.bf16.mxu0 %v1786
        %3913 = vmatmul.mubr.bf16.gmra.mrb[0].mxu0 %v1785
        %v3914 = vpop.f32.mrb[0].mxu0
        %v3915 = vadd.f32 %v3842, %v3914
        %v3916 = vpop.f32.mrb[0].mxu0
        %v3917 = vadd.f32 %v3844, %v3916
        %v3918 = vpop.f32.mrb[0].mxu0
        %v3919 = vadd.f32 %v3846, %v3918
        %v3920 = vpop.f32.mrb[0].mxu0
        %v3921 = vadd.f32 %v3848, %v3920
        %3922 = vmatprep.mubr.bf16.mxu0 %v1794
        %3923 = vmatmul.mubr.bf16.gmra.mrb[0].mxu0 %v1793
        %v3924 = vpop.f32.mrb[0].mxu0
        %v3925 = vadd.f32 %v3852, %v3924
        %v3926 = vpop.f32.mrb[0].mxu0
        %v3927 = vadd.f32 %v3854, %v3926
        %v3928 = vpop.f32.mrb[0].mxu0
        %v3929 = vadd.f32 %v3856, %v3928
        %v3930 = vpop.f32.mrb[0].mxu0
        %v3931 = vadd.f32 %v3858, %v3930
        %3932 = vmatprep.mubr.bf16.mxu0 %v1802
        %3933 = vmatmul.mubr.bf16.gmra.mrb[0].mxu0 %v1801
        %v3934 = vpop.f32.mrb[0].mxu0
        %v3935 = vadd.f32 %v3862, %v3934
        %v3936 = vpop.f32.mrb[0].mxu0
        %v3937 = vadd.f32 %v3864, %v3936
        %v3938 = vpop.f32.mrb[0].mxu0
        %v3939 = vadd.f32 %v3866, %v3938
        %v3940 = vpop.f32.mrb[0].mxu0
        %v3941 = vadd.f32 %v3868, %v3940
        %3942 = vmatprep.mubr.bf16.mxu0 %v1810
        %3943 = vmatmul.mubr.bf16.gmra.mrb[0].mxu0 %v1809
        %v3944 = vpop.f32.mrb[0].mxu0
        %v3945 = vadd.f32 %v3872, %v3944
        %v3946 = vpop.f32.mrb[0].mxu0
        %v3947 = vadd.f32 %v3874, %v3946
        %v3948 = vpop.f32.mrb[0].mxu0
        %v3949 = vadd.f32 %v3876, %v3948
        %v3950 = vpop.f32.mrb[0].mxu0
        %v3951 = vadd.f32 %v3878, %v3950
        %3952 = vdwg.mxu0
        %v3953 = vmin.f32 %v3623, 20.0
        %v3954 = vmin.f32 %v3625, 20.0
        %v3955 = vmin.f32 %v3915, 20.0
        %v3956 = vmin.f32 %v3917, 20.0
        %v3957 = vmin.f32 %v3627, 20.0
        %v3958 = vmin.f32 %v3629, 20.0
        %v3959 = vmin.f32 %v3919, 20.0
        %v3960 = vmin.f32 %v3921, 20.0
        %v3961 = vmin.f32 %v3633, 20.0
        %v3962 = vmin.f32 %v3635, 20.0
        %v3963 = vmin.f32 %v3925, 20.0
        %v3964 = vmin.f32 %v3927, 20.0
        %v3965 = vmin.f32 %v3637, 20.0
        %v3966 = vmin.f32 %v3639, 20.0
        %v3967 = vmin.f32 %v3929, 20.0
        %v3968 = vmin.f32 %v3931, 20.0
        %v3969 = vmin.f32 %v3643, 20.0
        %v3970 = vmin.f32 %v3645, 20.0
        %v3971 = vmin.f32 %v3935, 20.0
        %v3972 = vmin.f32 %v3937, 20.0
        %v3973 = vmin.f32 %v3647, 20.0
        %v3974 = vmin.f32 %v3649, 20.0
        %v3975 = vmin.f32 %v3939, 20.0
        %v3976 = vmin.f32 %v3941, 20.0
        %v3977 = vmin.f32 %v3653, 20.0
        %v3978 = vmin.f32 %v3655, 20.0
        %v3979 = vmin.f32 %v3945, 20.0
        %v3980 = vmin.f32 %v3947, 20.0
        %v3981 = vmin.f32 %v3657, 20.0
        %v3982 = vmin.f32 %v3659, 20.0
        %v3983 = vmin.f32 %v3949, 20.0
        %v3984 = vmin.f32 %v3951, 20.0
        %v3985 = vmul.f32 %v3953, 1.442695
        %v3986 = vpow.pop %v3985
        %v3987 = vmul.f32 %v3954, 1.442695
        %v3988 = vpow.pop %v3987
        %v3989 = vmul.f32 %v3955, 1.442695
        %v3990 = vpow.pop %v3989
        %v3991 = vmul.f32 %v3956, 1.442695
        %v3992 = vpow.pop %v3991
        %v3993 = vmul.f32 %v3957, 1.442695
        %v3994 = vpow.pop %v3993
        %v3995 = vmul.f32 %v3958, 1.442695
        %v3996 = vpow.pop %v3995
        %v3997 = vmul.f32 %v3959, 1.442695
        %v3998 = vpow.pop %v3997
        %v3999 = vmul.f32 %v3960, 1.442695
        %v4000 = vpow.pop %v3999
        %v4001 = vmul.f32 %v3961, 1.442695
        %v4002 = vpow.pop %v4001
        %v4003 = vmul.f32 %v3962, 1.442695
        %v4004 = vpow.pop %v4003
        %v4005 = vmul.f32 %v3963, 1.442695
        %v4006 = vpow.pop %v4005
        %v4007 = vmul.f32 %v3964, 1.442695
        %v4008 = vpow.pop %v4007
        %v4009 = vmul.f32 %v3965, 1.442695
        %v4010 = vpow.pop %v4009
        %v4011 = vmul.f32 %v3966, 1.442695
        %v4012 = vpow.pop %v4011
        %v4013 = vmul.f32 %v3967, 1.442695
        %v4014 = vpow.pop %v4013
        %v4015 = vmul.f32 %v3968, 1.442695
        %v4016 = vpow.pop %v4015
        %v4017 = vmul.f32 %v3969, 1.442695
        %v4018 = vpow.pop %v4017
        %v4019 = vmul.f32 %v3970, 1.442695
        %v4020 = vpow.pop %v4019
        %v4021 = vmul.f32 %v3971, 1.442695
        %v4022 = vpow.pop %v4021
        %v4023 = vmul.f32 %v3972, 1.442695
        %v4024 = vpow.pop %v4023
        %v4025 = vmul.f32 %v3973, 1.442695
        %v4026 = vpow.pop %v4025
        %v4027 = vmul.f32 %v3974, 1.442695
        %v4028 = vpow.pop %v4027
        %v4029 = vmul.f32 %v3975, 1.442695
        %v4030 = vpow.pop %v4029
        %v4031 = vmul.f32 %v3976, 1.442695
        %v4032 = vpow.pop %v4031
        %v4033 = vmul.f32 %v3977, 1.442695
        %v4034 = vpow.pop %v4033
        %v4035 = vmul.f32 %v3978, 1.442695
        %v4036 = vpow.pop %v4035
        %v4037 = vmul.f32 %v3979, 1.442695
        %v4038 = vpow.pop %v4037
        %v4039 = vmul.f32 %v3980, 1.442695
        %v4040 = vpow.pop %v4039
        %v4041 = vmul.f32 %v3981, 1.442695
        %v4042 = vpow.pop %v4041
        %v4043 = vmul.f32 %v3982, 1.442695
        %v4044 = vpow.pop %v4043
        %v4045 = vmul.f32 %v3983, 1.442695
        %v4046 = vpow.pop %v4045
        %v4047 = vmul.f32 %v3984, 1.442695
        %v4048 = vpow.pop %v4047
        %v4049 = vadd.f32 %v3986, 1.0
        %v4050 = vadd.f32 %v3988, 1.0
        %v4051 = vadd.f32 %v3990, 1.0
        %v4052 = vadd.f32 %v3992, 1.0
        %v4053 = vadd.f32 %v3994, 1.0
        %v4054 = vadd.f32 %v3996, 1.0
        %v4055 = vadd.f32 %v3998, 1.0
        %v4056 = vadd.f32 %v4000, 1.0
        %v4057 = vadd.f32 %v4002, 1.0
        %v4058 = vadd.f32 %v4004, 1.0
        %v4059 = vadd.f32 %v4006, 1.0
        %v4060 = vadd.f32 %v4008, 1.0
        %v4061 = vadd.f32 %v4010, 1.0
        %v4062 = vadd.f32 %v4012, 1.0
        %v4063 = vadd.f32 %v4014, 1.0
        %v4064 = vadd.f32 %v4016, 1.0
        %v4065 = vadd.f32 %v4018, 1.0
        %v4066 = vadd.f32 %v4020, 1.0
        %v4067 = vadd.f32 %v4022, 1.0
        %v4068 = vadd.f32 %v4024, 1.0
        %v4069 = vadd.f32 %v4026, 1.0
        %v4070 = vadd.f32 %v4028, 1.0
        %v4071 = vadd.f32 %v4030, 1.0
        %v4072 = vadd.f32 %v4032, 1.0
        %v4073 = vadd.f32 %v4034, 1.0
        %v4074 = vadd.f32 %v4036, 1.0
        %v4075 = vadd.f32 %v4038, 1.0
        %v4076 = vadd.f32 %v4040, 1.0
        %v4077 = vadd.f32 %v4042, 1.0
        %v4078 = vadd.f32 %v4044, 1.0
        %v4079 = vadd.f32 %v4046, 1.0
        %v4080 = vadd.f32 %v4048, 1.0
        %v4081 = vmul.f32 %v4049, %v4049
        %v4082 = vmul.f32 %v4050, %v4050
        %v4083 = vmul.f32 %v4051, %v4051
        %v4084 = vmul.f32 %v4052, %v4052
        %v4085 = vmul.f32 %v4053, %v4053
        %v4086 = vmul.f32 %v4054, %v4054
        %v4087 = vmul.f32 %v4055, %v4055
        %v4088 = vmul.f32 %v4056, %v4056
        %v4089 = vmul.f32 %v4057, %v4057
        %v4090 = vmul.f32 %v4058, %v4058
        %v4091 = vmul.f32 %v4059, %v4059
        %v4092 = vmul.f32 %v4060, %v4060
        %v4093 = vmul.f32 %v4061, %v4061
        %v4094 = vmul.f32 %v4062, %v4062
        %v4095 = vmul.f32 %v4063, %v4063
        %v4096 = vmul.f32 %v4064, %v4064
        %v4097 = vmul.f32 %v4065, %v4065
        %v4098 = vmul.f32 %v4066, %v4066
        %v4099 = vmul.f32 %v4067, %v4067
        %v4100 = vmul.f32 %v4068, %v4068
        %v4101 = vmul.f32 %v4069, %v4069
        %v4102 = vmul.f32 %v4070, %v4070
        %v4103 = vmul.f32 %v4071, %v4071
        %v4104 = vmul.f32 %v4072, %v4072
        %v4105 = vmul.f32 %v4073, %v4073
        %v4106 = vmul.f32 %v4074, %v4074
        %v4107 = vmul.f32 %v4075, %v4075
        %v4108 = vmul.f32 %v4076, %v4076
        %v4109 = vmul.f32 %v4077, %v4077
        %v4110 = vmul.f32 %v4078, %v4078
        %v4111 = vmul.f32 %v4079, %v4079
        %v4112 = vmul.f32 %v4080, %v4080
        %v4113 = vsub.f32 %v4081, 1.0
        %v4114 = vsub.f32 %v4082, 1.0
        %v4115 = vsub.f32 %v4083, 1.0
        %v4116 = vsub.f32 %v4084, 1.0
        %v4117 = vsub.f32 %v4085, 1.0
        %v4118 = vsub.f32 %v4086, 1.0
        %v4119 = vsub.f32 %v4087, 1.0
        %v4120 = vsub.f32 %v4088, 1.0
        %v4121 = vsub.f32 %v4089, 1.0
        %v4122 = vsub.f32 %v4090, 1.0
        %v4123 = vsub.f32 %v4091, 1.0
        %v4124 = vsub.f32 %v4092, 1.0
        %v4125 = vsub.f32 %v4093, 1.0
        %v4126 = vsub.f32 %v4094, 1.0
        %v4127 = vsub.f32 %v4095, 1.0
        %v4128 = vsub.f32 %v4096, 1.0
        %v4129 = vsub.f32 %v4097, 1.0
        %v4130 = vsub.f32 %v4098, 1.0
        %v4131 = vsub.f32 %v4099, 1.0
        %v4132 = vsub.f32 %v4100, 1.0
        %v4133 = vsub.f32 %v4101, 1.0
        %v4134 = vsub.f32 %v4102, 1.0
        %v4135 = vsub.f32 %v4103, 1.0
        %v4136 = vsub.f32 %v4104, 1.0
        %v4137 = vsub.f32 %v4105, 1.0
        %v4138 = vsub.f32 %v4106, 1.0
        %v4139 = vsub.f32 %v4107, 1.0
        %v4140 = vsub.f32 %v4108, 1.0
        %v4141 = vsub.f32 %v4109, 1.0
        %v4142 = vsub.f32 %v4110, 1.0
        %v4143 = vsub.f32 %v4111, 1.0
        %v4144 = vsub.f32 %v4112, 1.0
        %v4145 = vmul.f32 %v3623, %v4113
        %v4146 = vmul.f32 %v3625, %v4114
        %v4147 = vmul.f32 %v3915, %v4115
        %v4148 = vmul.f32 %v3917, %v4116
        %v4149 = vmul.f32 %v3627, %v4117
        %v4150 = vmul.f32 %v3629, %v4118
        %v4151 = vmul.f32 %v3919, %v4119
        %v4152 = vmul.f32 %v3921, %v4120
        %v4153 = vmul.f32 %v3633, %v4121
        %v4154 = vmul.f32 %v3635, %v4122
        %v4155 = vmul.f32 %v3925, %v4123
        %v4156 = vmul.f32 %v3927, %v4124
        %v4157 = vmul.f32 %v3637, %v4125
        %v4158 = vmul.f32 %v3639, %v4126
        %v4159 = vmul.f32 %v3929, %v4127
        %v4160 = vmul.f32 %v3931, %v4128
        %v4161 = vmul.f32 %v3643, %v4129
        %v4162 = vmul.f32 %v3645, %v4130
        %v4163 = vmul.f32 %v3935, %v4131
        %v4164 = vmul.f32 %v3937, %v4132
        %v4165 = vmul.f32 %v3647, %v4133
        %v4166 = vmul.f32 %v3649, %v4134
        %v4167 = vmul.f32 %v3939, %v4135
        %v4168 = vmul.f32 %v3941, %v4136
        %v4169 = vmul.f32 %v3653, %v4137
        %v4170 = vmul.f32 %v3655, %v4138
        %v4171 = vmul.f32 %v3945, %v4139
        %v4172 = vmul.f32 %v3947, %v4140
        %v4173 = vmul.f32 %v3657, %v4141
        %v4174 = vmul.f32 %v3659, %v4142
        %v4175 = vmul.f32 %v3949, %v4143
        %v4176 = vmul.f32 %v3951, %v4144
        %v4177 = vadd.f32 %v4081, 1.0
        %v4178 = vadd.f32 %v4082, 1.0
        %v4179 = vadd.f32 %v4083, 1.0
        %v4180 = vadd.f32 %v4084, 1.0
        %v4181 = vadd.f32 %v4085, 1.0
        %v4182 = vadd.f32 %v4086, 1.0
        %v4183 = vadd.f32 %v4087, 1.0
        %v4184 = vadd.f32 %v4088, 1.0
        %v4185 = vadd.f32 %v4089, 1.0
        %v4186 = vadd.f32 %v4090, 1.0
        %v4187 = vadd.f32 %v4091, 1.0
        %v4188 = vadd.f32 %v4092, 1.0
        %v4189 = vadd.f32 %v4093, 1.0
        %v4190 = vadd.f32 %v4094, 1.0
        %v4191 = vadd.f32 %v4095, 1.0
        %v4192 = vadd.f32 %v4096, 1.0
        %v4193 = vadd.f32 %v4097, 1.0
        %v4194 = vadd.f32 %v4098, 1.0
        %v4195 = vadd.f32 %v4099, 1.0
        %v4196 = vadd.f32 %v4100, 1.0
        %v4197 = vadd.f32 %v4101, 1.0
        %v4198 = vadd.f32 %v4102, 1.0
        %v4199 = vadd.f32 %v4103, 1.0
        %v4200 = vadd.f32 %v4104, 1.0
        %v4201 = vadd.f32 %v4105, 1.0
        %v4202 = vadd.f32 %v4106, 1.0
        %v4203 = vadd.f32 %v4107, 1.0
        %v4204 = vadd.f32 %v4108, 1.0
        %v4205 = vadd.f32 %v4109, 1.0
        %v4206 = vadd.f32 %v4110, 1.0
        %v4207 = vadd.f32 %v4111, 1.0
        %v4208 = vadd.f32 %v4112, 1.0
        %v4209 = vrcp.pop %v4177
        %v4210 = vrcp.pop %v4178
        %v4211 = vrcp.pop %v4179
        %v4212 = vrcp.pop %v4180
        %v4213 = vrcp.pop %v4181
        %v4214 = vrcp.pop %v4182
        %v4215 = vrcp.pop %v4183
        %v4216 = vrcp.pop %v4184
        %v4217 = vrcp.pop %v4185
        %v4218 = vrcp.pop %v4186
        %v4219 = vrcp.pop %v4187
        %v4220 = vrcp.pop %v4188
        %v4221 = vrcp.pop %v4189
        %v4222 = vrcp.pop %v4190
        %v4223 = vrcp.pop %v4191
        %v4224 = vrcp.pop %v4192
        %v4225 = vrcp.pop %v4193
        %v4226 = vrcp.pop %v4194
        %v4227 = vrcp.pop %v4195
        %v4228 = vrcp.pop %v4196
        %v4229 = vrcp.pop %v4197
        %v4230 = vrcp.pop %v4198
        %v4231 = vrcp.pop %v4199
        %v4232 = vrcp.pop %v4200
        %v4233 = vrcp.pop %v4201
        %v4234 = vrcp.pop %v4202
        %v4235 = vrcp.pop %v4203
        %v4236 = vrcp.pop %v4204
        %v4237 = vrcp.pop %v4205
        %v4238 = vrcp.pop %v4206
        %v4239 = vrcp.pop %v4207
        %v4240 = vrcp.pop %v4208
        %v4241 = vmul.f32 %v4145, %v4209
        %v4242 = vmul.f32 %v4146, %v4210
        %v4243 = vmul.f32 %v4147, %v4211
        %v4244 = vmul.f32 %v4148, %v4212
        %v4245 = vmul.f32 %v4149, %v4213
        %v4246 = vmul.f32 %v4150, %v4214
        %v4247 = vmul.f32 %v4151, %v4215
        %v4248 = vmul.f32 %v4152, %v4216
        %v4249 = vmul.f32 %v4153, %v4217
        %v4250 = vmul.f32 %v4154, %v4218
        %v4251 = vmul.f32 %v4155, %v4219
        %v4252 = vmul.f32 %v4156, %v4220
        %v4253 = vmul.f32 %v4157, %v4221
        %v4254 = vmul.f32 %v4158, %v4222
        %v4255 = vmul.f32 %v4159, %v4223
        %v4256 = vmul.f32 %v4160, %v4224
        %v4257 = vmul.f32 %v4161, %v4225
        %v4258 = vmul.f32 %v4162, %v4226
        %v4259 = vmul.f32 %v4163, %v4227
        %v4260 = vmul.f32 %v4164, %v4228
        %v4261 = vmul.f32 %v4165, %v4229
        %v4262 = vmul.f32 %v4166, %v4230
        %v4263 = vmul.f32 %v4167, %v4231
        %v4264 = vmul.f32 %v4168, %v4232
        %v4265 = vmul.f32 %v4169, %v4233
        %v4266 = vmul.f32 %v4170, %v4234
        %v4267 = vmul.f32 %v4171, %v4235
        %v4268 = vmul.f32 %v4172, %v4236
        %v4269 = vmul.f32 %v4173, %v4237
        %v4270 = vmul.f32 %v4174, %v4238
        %v4271 = vmul.f32 %v4175, %v4239
        %v4272 = vmul.f32 %v4176, %v4240
        %vm4273 = vcmp.gt.f32.partialorder %v3623, 20.0
        %vm4274 = vcmp.gt.f32.partialorder %v3625, 20.0
        %vm4275 = vcmp.gt.f32.partialorder %v3915, 20.0
        %vm4276 = vcmp.gt.f32.partialorder %v3917, 20.0
        %vm4277 = vcmp.gt.f32.partialorder %v3627, 20.0
        %vm4278 = vcmp.gt.f32.partialorder %v3629, 20.0
        %vm4279 = vcmp.gt.f32.partialorder %v3919, 20.0
        %vm4280 = vcmp.gt.f32.partialorder %v3921, 20.0
        %vm4281 = vcmp.gt.f32.partialorder %v3633, 20.0
        %vm4282 = vcmp.gt.f32.partialorder %v3635, 20.0
        %vm4283 = vcmp.gt.f32.partialorder %v3925, 20.0
        %vm4284 = vcmp.gt.f32.partialorder %v3927, 20.0
        %vm4285 = vcmp.gt.f32.partialorder %v3637, 20.0
        %vm4286 = vcmp.gt.f32.partialorder %v3639, 20.0
        %vm4287 = vcmp.gt.f32.partialorder %v3929, 20.0
        %vm4288 = vcmp.gt.f32.partialorder %v3931, 20.0
        %vm4289 = vcmp.gt.f32.partialorder %v3643, 20.0
        %vm4290 = vcmp.gt.f32.partialorder %v3645, 20.0
        %vm4291 = vcmp.gt.f32.partialorder %v3935, 20.0
        %vm4292 = vcmp.gt.f32.partialorder %v3937, 20.0
        %vm4293 = vcmp.gt.f32.partialorder %v3647, 20.0
        %vm4294 = vcmp.gt.f32.partialorder %v3649, 20.0
        %vm4295 = vcmp.gt.f32.partialorder %v3939, 20.0
        %vm4296 = vcmp.gt.f32.partialorder %v3941, 20.0
        %vm4297 = vcmp.gt.f32.partialorder %v3653, 20.0
        %vm4298 = vcmp.gt.f32.partialorder %v3655, 20.0
        %vm4299 = vcmp.gt.f32.partialorder %v3945, 20.0
        %vm4300 = vcmp.gt.f32.partialorder %v3947, 20.0
        %vm4301 = vcmp.gt.f32.partialorder %v3657, 20.0
        %vm4302 = vcmp.gt.f32.partialorder %v3659, 20.0
        %vm4303 = vcmp.gt.f32.partialorder %v3949, 20.0
        %vm4304 = vcmp.gt.f32.partialorder %v3951, 20.0
        %v4305 = vsel %vm4273, %v3623, %v4241
        %v4306 = vsel %vm4274, %v3625, %v4242
        %v4307 = vsel %vm4275, %v3915, %v4243
        %v4308 = vsel %vm4276, %v3917, %v4244
        %v4309 = vsel %vm4277, %v3627, %v4245
        %v4310 = vsel %vm4278, %v3629, %v4246
        %v4311 = vsel %vm4279, %v3919, %v4247
        %v4312 = vsel %vm4280, %v3921, %v4248
        %v4313 = vsel %vm4281, %v3633, %v4249
        %v4314 = vsel %vm4282, %v3635, %v4250
        %v4315 = vsel %vm4283, %v3925, %v4251
        %v4316 = vsel %vm4284, %v3927, %v4252
        %v4317 = vsel %vm4285, %v3637, %v4253
        %v4318 = vsel %vm4286, %v3639, %v4254
        %v4319 = vsel %vm4287, %v3929, %v4255
        %v4320 = vsel %vm4288, %v3931, %v4256
        %v4321 = vsel %vm4289, %v3643, %v4257
        %v4322 = vsel %vm4290, %v3645, %v4258
        %v4323 = vsel %vm4291, %v3935, %v4259
        %v4324 = vsel %vm4292, %v3937, %v4260
        %v4325 = vsel %vm4293, %v3647, %v4261
        %v4326 = vsel %vm4294, %v3649, %v4262
        %v4327 = vsel %vm4295, %v3939, %v4263
        %v4328 = vsel %vm4296, %v3941, %v4264
        %v4329 = vsel %vm4297, %v3653, %v4265
        %v4330 = vsel %vm4298, %v3655, %v4266
        %v4331 = vsel %vm4299, %v3945, %v4267
        %v4332 = vsel %vm4300, %v3947, %v4268
        %v4333 = vsel %vm4301, %v3657, %v4269
        %v4334 = vsel %vm4302, %v3659, %v4270
        %v4335 = vsel %vm4303, %v3949, %v4271
        %v4336 = vsel %vm4304, %v3951, %v4272
        %v4337 = vpack.c.bf16 %v4309, %v4305
        %v4338 = vpack.c.bf16 %v4310, %v4306
        %v4339 = vpack.c.bf16 %v4311, %v4307
        %v4340 = vpack.c.bf16 %v4312, %v4308
        %v4341 = vpack.c.bf16 %v4317, %v4313
        %v4342 = vpack.c.bf16 %v4318, %v4314
        %v4343 = vpack.c.bf16 %v4319, %v4315
        %v4344 = vpack.c.bf16 %v4320, %v4316
        %v4345 = vpack.c.bf16 %v4325, %v4321
        %v4346 = vpack.c.bf16 %v4326, %v4322
        %v4347 = vpack.c.bf16 %v4327, %v4323
        %v4348 = vpack.c.bf16 %v4328, %v4324
        %v4349 = vpack.c.bf16 %v4333, %v4329
        %v4350 = vpack.c.bf16 %v4334, %v4330
        %v4351 = vpack.c.bf16 %v4335, %v4331
        %v4352 = vpack.c.bf16 %v4336, %v4332
        %v4353 = vld [vmem:[%s5] sm:$0xff]
        %v4354 = vld [vmem:[%s5 + $0x8] sm:$0xff]
        %v4355 = vld [vmem:[%s5 + $0x10] sm:$0xff]
        %v4356 = vld [vmem:[%s5 + $0x18] sm:$0xff]
        %v4357 = vld [vmem:[%s5 + $0x20] sm:$0xff]
        %v4358 = vld [vmem:[%s5 + $0x28] sm:$0xff]
        %v4359 = vld [vmem:[%s5 + $0x30] sm:$0xff]
        %v4360 = vld [vmem:[%s5 + $0x38] sm:$0xff]
        %v4361 = vld [vmem:[%s5 + $0x40] sm:$0xff]
        %v4362 = vld [vmem:[%s5 + $0x48] sm:$0xff]
        %v4363 = vld [vmem:[%s5 + $0x50] sm:$0xff]
        %v4364 = vld [vmem:[%s5 + $0x58] sm:$0xff]
        %v4365 = vld [vmem:[%s5 + $0x60] sm:$0xff]
        %v4366 = vld [vmem:[%s5 + $0x68] sm:$0xff]
        %v4367 = vld [vmem:[%s5 + $0x70] sm:$0xff]
        %v4368 = vld [vmem:[%s5 + $0x78] sm:$0xff]
        %v4369 = vld [vmem:[%s5 + $0x80] sm:$0xff]
        %v4370 = vld [vmem:[%s5 + $0x88] sm:$0xff]
        %v4371 = vld [vmem:[%s5 + $0x90] sm:$0xff]
        %v4372 = vld [vmem:[%s5 + $0x98] sm:$0xff]
        %v4373 = vld [vmem:[%s5 + $0xa0] sm:$0xff]
        %v4374 = vld [vmem:[%s5 + $0xa8] sm:$0xff]
        %v4375 = vld [vmem:[%s5 + $0xb0] sm:$0xff]
        %v4376 = vld [vmem:[%s5 + $0xb8] sm:$0xff]
        %v4377 = vld [vmem:[%s5 + $0xc0] sm:$0xff]
        %v4378 = vld [vmem:[%s5 + $0xc8] sm:$0xff]
        %v4379 = vld [vmem:[%s5 + $0xd0] sm:$0xff]
        %v4380 = vld [vmem:[%s5 + $0xd8] sm:$0xff]
        %v4381 = vld [vmem:[%s5 + $0xe0] sm:$0xff]
        %v4382 = vld [vmem:[%s5 + $0xe8] sm:$0xff]
        %v4383 = vld [vmem:[%s5 + $0xf0] sm:$0xff]
        %v4384 = vld [vmem:[%s5 + $0xf8] sm:$0xff]
        %v4385 = vld [vmem:[%s5 + $0x100] sm:$0xff]
        %v4386 = vld [vmem:[%s5 + $0x108] sm:$0xff]
        %v4387 = vld [vmem:[%s5 + $0x110] sm:$0xff]
        %v4388 = vld [vmem:[%s5 + $0x118] sm:$0xff]
        %v4389 = vld [vmem:[%s5 + $0x120] sm:$0xff]
        %v4390 = vld [vmem:[%s5 + $0x128] sm:$0xff]
        %v4391 = vld [vmem:[%s5 + $0x130] sm:$0xff]
        %v4392 = vld [vmem:[%s5 + $0x138] sm:$0xff]
        %v4393 = vld [vmem:[%s5 + $0x140] sm:$0xff]
        %v4394 = vld [vmem:[%s5 + $0x148] sm:$0xff]
        %v4395 = vld [vmem:[%s5 + $0x150] sm:$0xff]
        %v4396 = vld [vmem:[%s5 + $0x158] sm:$0xff]
        %v4397 = vld [vmem:[%s5 + $0x160] sm:$0xff]
        %v4398 = vld [vmem:[%s5 + $0x168] sm:$0xff]
        %v4399 = vld [vmem:[%s5 + $0x170] sm:$0xff]
        %v4400 = vld [vmem:[%s5 + $0x178] sm:$0xff]
        %v4401 = vld [vmem:[%s5 + $0x180] sm:$0xff]
        %v4402 = vld [vmem:[%s5 + $0x188] sm:$0xff]
        %v4403 = vld [vmem:[%s5 + $0x190] sm:$0xff]
        %v4404 = vld [vmem:[%s5 + $0x198] sm:$0xff]
        %v4405 = vld [vmem:[%s5 + $0x1a0] sm:$0xff]
        %v4406 = vld [vmem:[%s5 + $0x1a8] sm:$0xff]
        %v4407 = vld [vmem:[%s5 + $0x1b0] sm:$0xff]
        %v4408 = vld [vmem:[%s5 + $0x1b8] sm:$0xff]
        %v4409 = vld [vmem:[%s5 + $0x1c0] sm:$0xff]
        %v4410 = vld [vmem:[%s5 + $0x1c8] sm:$0xff]
        %v4411 = vld [vmem:[%s5 + $0x1d0] sm:$0xff]
        %v4412 = vld [vmem:[%s5 + $0x1d8] sm:$0xff]
        %v4413 = vld [vmem:[%s5 + $0x1e0] sm:$0xff]
        %v4414 = vld [vmem:[%s5 + $0x1e8] sm:$0xff]
        %v4415 = vld [vmem:[%s5 + $0x1f0] sm:$0xff]
        %v4416 = vld [vmem:[%s5 + $0x1f8] sm:$0xff]
        %v4417 = vld [vmem:[%s6] sm:$0x3]
        %v4419 = vlaneseq
        %v4420 = vshrl.u32 %v4419, 7
        %v4421 = vsub.s32 0, %v4420
        %v4422 = vrot.slane %v4417, %v4421
        %v4423 = vlaneseq
        %v4424 = vshrl.u32 %v4423, 7
        %v4425 = vsub.s32 1, %v4424
        %v4426 = vrot.slane %v4417, %v4425
        %v4493 = vunpack.c.l.b16 %v4353
        %v4494 = vunpack.c.h.b16 %v4353
        %v4495 = vunpack.c.l.b16 %v4354
        %v4496 = vunpack.c.h.b16 %v4354
        %v4497 = vunpack.c.l.b16 %v4355
        %v4498 = vunpack.c.h.b16 %v4355
        %v4499 = vunpack.c.l.b16 %v4356
        %v4500 = vunpack.c.h.b16 %v4356
        %v4501 = vunpack.c.l.b16 %v4357
        %v4502 = vunpack.c.h.b16 %v4357
        %v4503 = vunpack.c.l.b16 %v4358
        %v4504 = vunpack.c.h.b16 %v4358
        %v4505 = vunpack.c.l.b16 %v4359
        %v4506 = vunpack.c.h.b16 %v4359
        %v4507 = vunpack.c.l.b16 %v4360
        %v4508 = vunpack.c.h.b16 %v4360
        %v4509 = vunpack.c.l.b16 %v4361
        %v4510 = vunpack.c.h.b16 %v4361
        %v4511 = vunpack.c.l.b16 %v4362
        %v4512 = vunpack.c.h.b16 %v4362
        %v4513 = vunpack.c.l.b16 %v4363
        %v4514 = vunpack.c.h.b16 %v4363
        %v4515 = vunpack.c.l.b16 %v4364
        %v4516 = vunpack.c.h.b16 %v4364
        %v4517 = vunpack.c.l.b16 %v4365
        %v4518 = vunpack.c.h.b16 %v4365
        %v4519 = vunpack.c.l.b16 %v4366
        %v4520 = vunpack.c.h.b16 %v4366
        %v4521 = vunpack.c.l.b16 %v4367
        %v4522 = vunpack.c.h.b16 %v4367
        %v4523 = vunpack.c.l.b16 %v4368
        %v4524 = vunpack.c.h.b16 %v4368
        %v4525 = vunpack.c.l.b16 %v4369
        %v4526 = vunpack.c.h.b16 %v4369
        %v4527 = vunpack.c.l.b16 %v4370
        %v4528 = vunpack.c.h.b16 %v4370
        %v4529 = vunpack.c.l.b16 %v4371
        %v4530 = vunpack.c.h.b16 %v4371
        %v4531 = vunpack.c.l.b16 %v4372
        %v4532 = vunpack.c.h.b16 %v4372
        %v4533 = vunpack.c.l.b16 %v4373
        %v4534 = vunpack.c.h.b16 %v4373
        %v4535 = vunpack.c.l.b16 %v4374
        %v4536 = vunpack.c.h.b16 %v4374
        %v4537 = vunpack.c.l.b16 %v4375
        %v4538 = vunpack.c.h.b16 %v4375
        %v4539 = vunpack.c.l.b16 %v4376
        %v4540 = vunpack.c.h.b16 %v4376
        %v4541 = vunpack.c.l.b16 %v4377
        %v4542 = vunpack.c.h.b16 %v4377
        %v4543 = vunpack.c.l.b16 %v4378
        %v4544 = vunpack.c.h.b16 %v4378
        %v4545 = vunpack.c.l.b16 %v4379
        %v4546 = vunpack.c.h.b16 %v4379
        %v4547 = vunpack.c.l.b16 %v4380
        %v4548 = vunpack.c.h.b16 %v4380
        %v4549 = vunpack.c.l.b16 %v4381
        %v4550 = vunpack.c.h.b16 %v4381
        %v4551 = vunpack.c.l.b16 %v4382
        %v4552 = vunpack.c.h.b16 %v4382
        %v4553 = vunpack.c.l.b16 %v4383
        %v4554 = vunpack.c.h.b16 %v4383
        %v4555 = vunpack.c.l.b16 %v4384
        %v4556 = vunpack.c.h.b16 %v4384
        %v4557 = vunpack.c.l.b16 %v4385
        %v4558 = vunpack.c.h.b16 %v4385
        %v4559 = vunpack.c.l.b16 %v4386
        %v4560 = vunpack.c.h.b16 %v4386
        %v4561 = vunpack.c.l.b16 %v4387
        %v4562 = vunpack.c.h.b16 %v4387
        %v4563 = vunpack.c.l.b16 %v4388
        %v4564 = vunpack.c.h.b16 %v4388
        %v4565 = vunpack.c.l.b16 %v4389
        %v4566 = vunpack.c.h.b16 %v4389
        %v4567 = vunpack.c.l.b16 %v4390
        %v4568 = vunpack.c.h.b16 %v4390
        %v4569 = vunpack.c.l.b16 %v4391
        %v4570 = vunpack.c.h.b16 %v4391
        %v4571 = vunpack.c.l.b16 %v4392
        %v4572 = vunpack.c.h.b16 %v4392
        %v4573 = vunpack.c.l.b16 %v4393
        %v4574 = vunpack.c.h.b16 %v4393
        %v4575 = vunpack.c.l.b16 %v4394
        %v4576 = vunpack.c.h.b16 %v4394
        %v4577 = vunpack.c.l.b16 %v4395
        %v4578 = vunpack.c.h.b16 %v4395
        %v4579 = vunpack.c.l.b16 %v4396
        %v4580 = vunpack.c.h.b16 %v4396
        %v4581 = vunpack.c.l.b16 %v4397
        %v4582 = vunpack.c.h.b16 %v4397
        %v4583 = vunpack.c.l.b16 %v4398
        %v4584 = vunpack.c.h.b16 %v4398
        %v4585 = vunpack.c.l.b16 %v4399
        %v4586 = vunpack.c.h.b16 %v4399
        %v4587 = vunpack.c.l.b16 %v4400
        %v4588 = vunpack.c.h.b16 %v4400
        %v4589 = vunpack.c.l.b16 %v4401
        %v4590 = vunpack.c.h.b16 %v4401
        %v4591 = vunpack.c.l.b16 %v4402
        %v4592 = vunpack.c.h.b16 %v4402
        %v4593 = vunpack.c.l.b16 %v4403
        %v4594 = vunpack.c.h.b16 %v4403
        %v4595 = vunpack.c.l.b16 %v4404
        %v4596 = vunpack.c.h.b16 %v4404
        %v4597 = vunpack.c.l.b16 %v4405
        %v4598 = vunpack.c.h.b16 %v4405
        %v4599 = vunpack.c.l.b16 %v4406
        %v4600 = vunpack.c.h.b16 %v4406
        %v4601 = vunpack.c.l.b16 %v4407
        %v4602 = vunpack.c.h.b16 %v4407
        %v4603 = vunpack.c.l.b16 %v4408
        %v4604 = vunpack.c.h.b16 %v4408
        %v4605 = vunpack.c.l.b16 %v4409
        %v4606 = vunpack.c.h.b16 %v4409
        %v4607 = vunpack.c.l.b16 %v4410
        %v4608 = vunpack.c.h.b16 %v4410
        %v4609 = vunpack.c.l.b16 %v4411
        %v4610 = vunpack.c.h.b16 %v4411
        %v4611 = vunpack.c.l.b16 %v4412
        %v4612 = vunpack.c.h.b16 %v4412
        %v4613 = vunpack.c.l.b16 %v4413
        %v4614 = vunpack.c.h.b16 %v4413
        %v4615 = vunpack.c.l.b16 %v4414
        %v4616 = vunpack.c.h.b16 %v4414
        %v4617 = vunpack.c.l.b16 %v4415
        %v4618 = vunpack.c.h.b16 %v4415
        %v4619 = vunpack.c.l.b16 %v4416
        %v4620 = vunpack.c.h.b16 %v4416
        %v4621 = vpack.c.b16 %v4495, %v4493
        %v4622 = vpack.c.b16 %v4496, %v4494
        %v4623 = vpack.c.b16 %v4499, %v4497
        %v4624 = vpack.c.b16 %v4500, %v4498
        %v4625 = vpack.c.b16 %v4503, %v4501
        %v4626 = vpack.c.b16 %v4504, %v4502
        %v4627 = vpack.c.b16 %v4507, %v4505
        %v4628 = vpack.c.b16 %v4508, %v4506
        %v4629 = vpack.c.b16 %v4511, %v4509
        %v4630 = vpack.c.b16 %v4512, %v4510
        %v4631 = vpack.c.b16 %v4515, %v4513
        %v4632 = vpack.c.b16 %v4516, %v4514
        %v4633 = vpack.c.b16 %v4519, %v4517
        %v4634 = vpack.c.b16 %v4520, %v4518
        %v4635 = vpack.c.b16 %v4523, %v4521
        %v4636 = vpack.c.b16 %v4524, %v4522
        %v4637 = vpack.c.b16 %v4527, %v4525
        %v4638 = vpack.c.b16 %v4528, %v4526
        %v4639 = vpack.c.b16 %v4531, %v4529
        %v4640 = vpack.c.b16 %v4532, %v4530
        %v4641 = vpack.c.b16 %v4535, %v4533
        %v4642 = vpack.c.b16 %v4536, %v4534
        %v4643 = vpack.c.b16 %v4539, %v4537
        %v4644 = vpack.c.b16 %v4540, %v4538
        %v4645 = vpack.c.b16 %v4543, %v4541
        %v4646 = vpack.c.b16 %v4544, %v4542
        %v4647 = vpack.c.b16 %v4547, %v4545
        %v4648 = vpack.c.b16 %v4548, %v4546
        %v4649 = vpack.c.b16 %v4551, %v4549
        %v4650 = vpack.c.b16 %v4552, %v4550
        %v4651 = vpack.c.b16 %v4555, %v4553
        %v4652 = vpack.c.b16 %v4556, %v4554
        %v4653 = vpack.c.b16 %v4559, %v4557
        %v4654 = vpack.c.b16 %v4560, %v4558
        %v4655 = vpack.c.b16 %v4563, %v4561
        %v4656 = vpack.c.b16 %v4564, %v4562
        %v4657 = vpack.c.b16 %v4567, %v4565
        %v4658 = vpack.c.b16 %v4568, %v4566
        %v4659 = vpack.c.b16 %v4571, %v4569
        %v4660 = vpack.c.b16 %v4572, %v4570
        %v4661 = vpack.c.b16 %v4575, %v4573
        %v4662 = vpack.c.b16 %v4576, %v4574
        %v4663 = vpack.c.b16 %v4579, %v4577
        %v4664 = vpack.c.b16 %v4580, %v4578
        %v4665 = vpack.c.b16 %v4583, %v4581
        %v4666 = vpack.c.b16 %v4584, %v4582
        %v4667 = vpack.c.b16 %v4587, %v4585
        %v4668 = vpack.c.b16 %v4588, %v4586
        %v4669 = vpack.c.b16 %v4591, %v4589
        %v4670 = vpack.c.b16 %v4592, %v4590
        %v4671 = vpack.c.b16 %v4595, %v4593
        %v4672 = vpack.c.b16 %v4596, %v4594
        %v4673 = vpack.c.b16 %v4599, %v4597
        %v4674 = vpack.c.b16 %v4600, %v4598
        %v4675 = vpack.c.b16 %v4603, %v4601
        %v4676 = vpack.c.b16 %v4604, %v4602
        %v4677 = vpack.c.b16 %v4607, %v4605
        %v4678 = vpack.c.b16 %v4608, %v4606
        %v4679 = vpack.c.b16 %v4611, %v4609
        %v4680 = vpack.c.b16 %v4612, %v4610
        %v4681 = vpack.c.b16 %v4615, %v4613
        %v4682 = vpack.c.b16 %v4616, %v4614
        %v4683 = vpack.c.b16 %v4619, %v4617
        %v4684 = vpack.c.b16 %v4620, %v4618
        %4749 = vmatprep.subr.bf16.mxu0 %v4622
        %4750 = vmatpush1.bf16.msra.mxu0 %v4621
        %4751 = vmatprep.subr.bf16.mxu0 %v4624
        %4752 = vmatpush1.bf16.msra.mxu0 %v4623
        %4753 = vmatprep.subr.bf16.mxu0 %v4626
        %4754 = vmatpush1.bf16.msra.mxu0 %v4625
        %4755 = vmatprep.subr.bf16.mxu0 %v4628
        %4756 = vmatpush1.bf16.msra.mxu0 %v4627
        %4757 = vmatprep.subr.bf16.mxu0 %v4630
        %4758 = vmatpush1.bf16.msra.mxu0 %v4629
        %4759 = vmatprep.subr.bf16.mxu0 %v4632
        %4760 = vmatpush1.bf16.msra.mxu0 %v4631
        %4761 = vmatprep.subr.bf16.mxu0 %v4634
        %4762 = vmatpush1.bf16.msra.mxu0 %v4633
        %4763 = vmatprep.subr.bf16.mxu0 %v4636
        %4764 = vmatpush1.bf16.msra.mxu0 %v4635
        %4765 = vmatprep.subr.bf16.mxu0 %v4638
        %4766 = vmatpush1.bf16.msra.mxu0 %v4637
        %4767 = vmatprep.subr.bf16.mxu0 %v4640
        %4768 = vmatpush1.bf16.msra.mxu0 %v4639
        %4769 = vmatprep.subr.bf16.mxu0 %v4642
        %4770 = vmatpush1.bf16.msra.mxu0 %v4641
        %4771 = vmatprep.subr.bf16.mxu0 %v4644
        %4772 = vmatpush1.bf16.msra.mxu0 %v4643
        %4773 = vmatprep.subr.bf16.mxu0 %v4646
        %4774 = vmatpush1.bf16.msra.mxu0 %v4645
        %4775 = vmatprep.subr.bf16.mxu0 %v4648
        %4776 = vmatpush1.bf16.msra.mxu0 %v4647
        %4777 = vmatprep.subr.bf16.mxu0 %v4650
        %4778 = vmatpush1.bf16.msra.mxu0 %v4649
        %4779 = vmatprep.subr.bf16.mxu0 %v4652
        %4780 = vmatpush1.bf16.msra.mxu0 %v4651
        %4781 = vmatprep.mubr.bf16.mxu0 %v4338
        %4782 = vmatmul.mubr.bf16.gmra.mrb[0].mxu0 %v4337
        %v4783 = vpop.f32.mrb[0].mxu0
        %v4784 = vadd.f32 %v4422, %v4783
        %v4785 = vpop.f32.mrb[0].mxu0
        %v4786 = vadd.f32 %v4426, %v4785
        %v4787 = vpop.f32.mrb[0].mxu0
        %v4788 = vadd.f32 %v4422, %v4787
        %v4789 = vpop.f32.mrb[0].mxu0
        %v4790 = vadd.f32 %v4426, %v4789
        %4791 = vmatprep.mubr.bf16.mxu0 %v4342
        %4792 = vmatmul.mubr.bf16.gmra.mrb[0].mxu0 %v4341
        %v4793 = vpop.f32.mrb[0].mxu0
        %v4794 = vadd.f32 %v4422, %v4793
        %v4795 = vpop.f32.mrb[0].mxu0
        %v4796 = vadd.f32 %v4426, %v4795
        %v4797 = vpop.f32.mrb[0].mxu0
        %v4798 = vadd.f32 %v4422, %v4797
        %v4799 = vpop.f32.mrb[0].mxu0
        %v4800 = vadd.f32 %v4426, %v4799
        %4801 = vmatprep.mubr.bf16.mxu0 %v4346
        %4802 = vmatmul.mubr.bf16.gmra.mrb[0].mxu0 %v4345
        %v4803 = vpop.f32.mrb[0].mxu0
        %v4804 = vadd.f32 %v4422, %v4803
        %v4805 = vpop.f32.mrb[0].mxu0
        %v4806 = vadd.f32 %v4426, %v4805
        %v4807 = vpop.f32.mrb[0].mxu0
        %v4808 = vadd.f32 %v4422, %v4807
        %v4809 = vpop.f32.mrb[0].mxu0
        %v4810 = vadd.f32 %v4426, %v4809
        %4811 = vmatprep.mubr.bf16.mxu0 %v4350
        %4812 = vmatmul.mubr.bf16.gmra.mrb[0].mxu0 %v4349
        %v4813 = vpop.f32.mrb[0].mxu0
        %v4814 = vadd.f32 %v4422, %v4813
        %v4815 = vpop.f32.mrb[0].mxu0
        %v4816 = vadd.f32 %v4426, %v4815
        %v4817 = vpop.f32.mrb[0].mxu0
        %v4818 = vadd.f32 %v4422, %v4817
        %v4819 = vpop.f32.mrb[0].mxu0
        %v4820 = vadd.f32 %v4426, %v4819
        %4821 = vdwg.mxu0
        %4822 = vmatprep.subr.bf16.mxu0 %v4654
        %4823 = vmatpush1.bf16.msra.mxu0 %v4653
        %4824 = vmatprep.subr.bf16.mxu0 %v4656
        %4825 = vmatpush1.bf16.msra.mxu0 %v4655
        %4826 = vmatprep.subr.bf16.mxu0 %v4658
        %4827 = vmatpush1.bf16.msra.mxu0 %v4657
        %4828 = vmatprep.subr.bf16.mxu0 %v4660
        %4829 = vmatpush1.bf16.msra.mxu0 %v4659
        %4830 = vmatprep.subr.bf16.mxu0 %v4662
        %4831 = vmatpush1.bf16.msra.mxu0 %v4661
        %4832 = vmatprep.subr.bf16.mxu0 %v4664
        %4833 = vmatpush1.bf16.msra.mxu0 %v4663
        %4834 = vmatprep.subr.bf16.mxu0 %v4666
        %4835 = vmatpush1.bf16.msra.mxu0 %v4665
        %4836 = vmatprep.subr.bf16.mxu0 %v4668
        %4837 = vmatpush1.bf16.msra.mxu0 %v4667
        %4838 = vmatprep.subr.bf16.mxu0 %v4670
        %4839 = vmatpush1.bf16.msra.mxu0 %v4669
        %4840 = vmatprep.subr.bf16.mxu0 %v4672
        %4841 = vmatpush1.bf16.msra.mxu0 %v4671
        %4842 = vmatprep.subr.bf16.mxu0 %v4674
        %4843 = vmatpush1.bf16.msra.mxu0 %v4673
        %4844 = vmatprep.subr.bf16.mxu0 %v4676
        %4845 = vmatpush1.bf16.msra.mxu0 %v4675
        %4846 = vmatprep.subr.bf16.mxu0 %v4678
        %4847 = vmatpush1.bf16.msra.mxu0 %v4677
        %4848 = vmatprep.subr.bf16.mxu0 %v4680
        %4849 = vmatpush1.bf16.msra.mxu0 %v4679
        %4850 = vmatprep.subr.bf16.mxu0 %v4682
        %4851 = vmatpush1.bf16.msra.mxu0 %v4681
        %4852 = vmatprep.subr.bf16.mxu0 %v4684
        %4853 = vmatpush1.bf16.msra.mxu0 %v4683
        %4854 = vmatprep.mubr.bf16.mxu0 %v4340
        %4855 = vmatmul.mubr.bf16.gmra.mrb[0].mxu0 %v4339
        %v4856 = vpop.f32.mrb[0].mxu0
        %v4857 = vadd.f32 %v4784, %v4856
        %v4858 = vpop.f32.mrb[0].mxu0
        %v4859 = vadd.f32 %v4786, %v4858
        %v4860 = vpop.f32.mrb[0].mxu0
        %v4861 = vadd.f32 %v4788, %v4860
        %v4862 = vpop.f32.mrb[0].mxu0
        %v4863 = vadd.f32 %v4790, %v4862
        %4864 = vmatprep.mubr.bf16.mxu0 %v4344
        %4865 = vmatmul.mubr.bf16.gmra.mrb[0].mxu0 %v4343
        %v4866 = vpop.f32.mrb[0].mxu0
        %v4867 = vadd.f32 %v4794, %v4866
        %v4868 = vpop.f32.mrb[0].mxu0
        %v4869 = vadd.f32 %v4796, %v4868
        %v4870 = vpop.f32.mrb[0].mxu0
        %v4871 = vadd.f32 %v4798, %v4870
        %v4872 = vpop.f32.mrb[0].mxu0
        %v4873 = vadd.f32 %v4800, %v4872
        %4874 = vmatprep.mubr.bf16.mxu0 %v4348
        %4875 = vmatmul.mubr.bf16.gmra.mrb[0].mxu0 %v4347
        %v4876 = vpop.f32.mrb[0].mxu0
        %v4877 = vadd.f32 %v4804, %v4876
        %v4878 = vpop.f32.mrb[0].mxu0
        %v4879 = vadd.f32 %v4806, %v4878
        %v4880 = vpop.f32.mrb[0].mxu0
        %v4881 = vadd.f32 %v4808, %v4880
        %v4882 = vpop.f32.mrb[0].mxu0
        %v4883 = vadd.f32 %v4810, %v4882
        %4884 = vmatprep.mubr.bf16.mxu0 %v4352
        %4885 = vmatmul.mubr.bf16.gmra.mrb[0].mxu0 %v4351
        %v4886 = vpop.f32.mrb[0].mxu0
        %v4887 = vadd.f32 %v4814, %v4886
        %v4888 = vpop.f32.mrb[0].mxu0
        %v4889 = vadd.f32 %v4816, %v4888
        %v4890 = vpop.f32.mrb[0].mxu0
        %v4891 = vadd.f32 %v4818, %v4890
        %v4892 = vpop.f32.mrb[0].mxu0
        %v4893 = vadd.f32 %v4820, %v4892
        %4894 = vdwg.mxu0
        %4895 = vst [vmem:[%s272] sm:$0xff] %v4857
        %4896 = vst [vmem:[%s272 + $0x8] sm:$0xff] %v4859
        %4897 = vst [vmem:[%s272 + $0x10] sm:$0xff] %v4861
        %4898 = vst [vmem:[%s272 + $0x18] sm:$0xff] %v4863
        %4899 = vst [vmem:[%s272 + $0x20] sm:$0xff] %v4867
        %4900 = vst [vmem:[%s272 + $0x28] sm:$0xff] %v4869
        %4901 = vst [vmem:[%s272 + $0x30] sm:$0xff] %v4871
        %4902 = vst [vmem:[%s272 + $0x38] sm:$0xff] %v4873
        %4903 = vst [vmem:[%s272 + $0x40] sm:$0xff] %v4877
        %4904 = vst [vmem:[%s272 + $0x48] sm:$0xff] %v4879
        %4905 = vst [vmem:[%s272 + $0x50] sm:$0xff] %v4881
        %4906 = vst [vmem:[%s272 + $0x58] sm:$0xff] %v4883
        %4907 = vst [vmem:[%s272 + $0x60] sm:$0xff] %v4887
        %4908 = vst [vmem:[%s272 + $0x68] sm:$0xff] %v4889
        %4909 = vst [vmem:[%s272 + $0x70] sm:$0xff] %v4891
        %4910 = vst [vmem:[%s272 + $0x78] sm:$0xff] %v4893
        %s4911 = sand.u32 %s181, 1
        %s4912 = scalar_lea.sflag [#allocation3], %s4911
        %s4913 = sand.u32 %s181, 1
        %s4914 = smul.addr %s4913, 128
        %s4915 = scalar_lea.vmem [#allocation2], %s4914
        // Predicated region
        $region49: #{embedder_forward.1} parent=47 // pred_check
          %p4916 = pneg %p191
        $region50: #{embedder_forward.1} parent=47 // pred_check_branch
          %4918 = sbr.rel (%p4916) target = $region52
        $region51: #{embedder_forward.1} parent=47 // pred_region
          %s4919 = smul.u32 8, %s21
          %s4921 = ssub.s32 2048, 2048
          %4922 = vsyncadd %s4912, %s4921
          %s4923 = smul.addr %s4919, 2
          %s4924 = smul.addr %s4923, 128
          %s4925 = scalar_lea.hbm %s7, %s4924
          %s4926 = sshll.u32 %s4915, 4
          %s4927 = int_to_ptr.vmem [resolvable:$true] %s4926
          %4932 = dma.vmem_to_hbm [thread:$0]  %s4927, 2048, %s4925, %s4912, 256, 256, 16
        $region52: #{embedder_forward.1} parent=47 // pred_fallthru
          _
      $region48: #{embedder_forward.1} parent=5 // pred_fallthru
        _
      %p4933 = scmp.le.s32.totalorder 2, %s16
      // Predicated region
      $region53: #{embedder_forward.1} parent=5 // pred_check
        %p4934 = pneg %p4933
      $region54: #{embedder_forward.1} parent=5 // pred_check_branch
        %4936 = sbr.rel (%p4934) target = $region56
      $region55: #{embedder_forward.1} parent=5 // pred_region
        %s4937 = ssub.s32 %s16, 2
        // Predicated region
        $region57: #{embedder_forward.1} parent=55 // pred_check
          %p4938 = pneg %p197
        $region58: #{embedder_forward.1} parent=55 // pred_check_branch
          %4940 = sbr.rel (%p4938) target = $region60
        $region59: #{embedder_forward.1} parent=55 // pred_region
          %s4941 = sand.u32 %s182, 1
          %s4942 = scalar_lea.sflag [#allocation3], %s4941
          %s4943 = sand.u32 %s182, 1
          %s4944 = smul.addr %s4943, 128
          %s4945 = scalar_lea.vmem [#allocation2], %s4944
          %4946 = dma.done %s4942, 2048
        $region60: #{embedder_forward.1} parent=55 // pred_fallthru
          _
      $region56: #{embedder_forward.1} parent=5 // pred_fallthru
        _
    $region6: #{embedder_forward.1} parent=1 // loop_footer
      %s20 = sadd.s32 1, %s16
    $region7: #{embedder_forward.1} parent=1 // loop_footer_branch
      %15 = sbr.rel target = $region3
    $region8: #{embedder_forward.1} parent=1 // loop_exit
      _
    %4947 = vsyncpa [#allocation3], 1
    %s4948 = scalar_lea.sflag [#allocation3], 1
    %4949 = vsyncpa %s4948, 1

</llo_original>
